<compile_context>
chip_gen: v6e
topology: v6e:2x2x1
jax: 0.10.0
libtpu: 0.0.40
codegen_flags: <defaults>
</compile_context>

<pallas_src>
import functools

import numpy as np

import jax
import jax.numpy as jnp
from jax.experimental import pallas as pl
from jax.experimental.pallas import tpu as pltpu


# ------------------------------ Pallas kernel ------------------------------ #

def _fused_agent_kernel(img_ref, nrgb_ref, h_ref,
                        w1_ref, b1_ref, w2_ref, b2_ref,
                        wf1_ref, bf1_ref, wf2_ref, bf2_ref,
                        wio_ref, whh_ref, gb_ref,
                        wq_ref, bq_ref,
                        q_out_ref, h_out_ref):
    """Whole RNNCNNAgent forward for one row-block, fully VMEM-resident.

    All feature dims are zero-padded to multiples of 128 at prepare time, so every
    matmul / load / store below is lane-dense.
      img  : [B, img_p]   bf16 raw pixels 0..255 (exact in bf16; /255 folded into w1)
      nrgb : [B, nrgb_p]  f32 concatenated non-RGB observations (zero padded)
      h    : [B, rnn_p]   f32 previous hidden state (zero padded)
    """
    f32 = jnp.float32
    bf16 = jnp.bfloat16
    R = gb_ref.shape[-1]                       # rnn_p (static)

    def mm(x, w_ref):
        # bf16 x bf16 MXU matmul with f32 accumulation.
        return jnp.dot(x, w_ref[...], preferred_element_type=f32)

    relu = lambda v: jnp.maximum(v, 0.0)

    # conv1 + relu (dense linear operator, /255 folded into w1), conv2 + relu,
    # fc1 + relu, fc2 + relu -- a chain of plain 2-D MXU matmuls.
    x = img_ref[...]                                            # bf16 [B, img_p]
    x = relu(mm(x, w1_ref) + b1_ref[...]).astype(bf16)          # [B, c1_p]
    x = relu(mm(x, w2_ref) + b2_ref[...]).astype(bf16)          # [B, c2_p]
    x = relu(mm(x, wf1_ref) + bf1_ref[...]).astype(bf16)        # [B, mlp_p]
    x = relu(mm(x, wf2_ref) + bf2_ref[...]).astype(bf16)        # [B, mlp_p]

    o = nrgb_ref[...].astype(bf16)                              # [B, nrgb_p]
    h = h_ref[...]                                              # f32 [B, rnn_p]
    hb = h.astype(bf16)                                         # cast once for MXU

    # GRUCell (PyTorch gate order r, z, n) as TWO wide matmuls:
    #   ih = [x, o] @ W_io   (gates stacked along N: [r | z | n], each rnn_p lanes)
    #   hh =   h    @ W_hh
    xo = jnp.concatenate([x, o], axis=1)                        # [B, mlp_p + nrgb_p]
    ih = mm(xo, wio_ref)                                        # [B, 3*rnn_p] f32
    hh = mm(hb, whh_ref)                                        # [B, 3*rnn_p] f32

    i_r, i_z, i_n = ih[:, 0:R], ih[:, R:2 * R], ih[:, 2 * R:3 * R]
    h_r, h_z, h_n = hh[:, 0:R], hh[:, R:2 * R], hh[:, 2 * R:3 * R]

    # gb = [b_r(=bih_r+bhh_r), b_z(=bih_z+bhh_z), bih_n, bhh_n], each [1, rnn_p].
    r = jax.nn.sigmoid(i_r + h_r + gb_ref[0])
    z = jax.nn.sigmoid(i_z + h_z + gb_ref[1])
    n = jnp.tanh(i_n + gb_ref[2] + r * (h_n + gb_ref[3]))
    h_new = (1.0 - z) * n + z * h                               # padded lanes stay 0

    # fc3
    q = mm(h_new.astype(bf16), wq_ref) + bq_ref[...]

    q_out_ref[...] = q.astype(q_out_ref.dtype)
    h_out_ref[...] = h_new.astype(h_out_ref.dtype)


_KPARAM_ORDER = ("w1", "b1", "w2", "b2", "wf1", "bf1", "wf2", "bf2",
                 "wio", "whh", "gb", "wq", "bq")
_MATMUL_WEIGHTS = ("w1", "w2", "wf1", "wf2", "wio", "whh", "wq")


def fused_agent_pallas(img, nrgb, h_in, fp, cfg, *, row_block=512):
    """Single pallas_call for the whole forward; rows (bs*n_agents) are block-tiled."""
    N = img.shape[0]
    # For v7x megacore, N > row_block gives >=2 grid steps so "parallel" shards rows
    # across both TensorCores; at demo sizes it is a single grid step.
    rb = N if N <= row_block else row_block
    grid = (pl.cdiv(N, rb),)

    data = [img, nrgb, h_in]
    weights = [fp[k] for k in _KPARAM_ORDER]

    def row_spec(a):
        return pl.BlockSpec((rb, a.shape[1]), lambda i: (i, 0))

    def full_spec(a):
        zeros = (0,) * a.ndim
        # Constant block index across the grid -> Pallas skips re-DMA of the weights.
        return pl.BlockSpec(a.shape, lambda i, _z=zeros: _z)

    in_specs = [row_spec(a) for a in data] + [full_spec(a) for a in weights]

    na_p, rnn_p = cfg["na_p"], cfg["rnn_p"]
    out_shape = (jax.ShapeDtypeStruct((N, na_p), jnp.float32),
                 jax.ShapeDtypeStruct((N, rnn_p), jnp.float32))
    out_specs = (pl.BlockSpec((rb, na_p), lambda i: (i, 0)),
                 pl.BlockSpec((rb, rnn_p), lambda i: (i, 0)))

    # Advisory cost estimate so XLA schedules surrounding ops sensibly.
    mm_cols = (cfg["img_p"] * cfg["c1_p"] + cfg["c1_p"] * cfg["c2_p"]
               + cfg["c2_p"] * cfg["mlp_p"] + cfg["mlp_p"] * cfg["mlp_p"]
               + (cfg["mlp_p"] + cfg["nrgb_p"]) * 3 * rnn_p
               + rnn_p * 3 * rnn_p + rnn_p * na_p)
    flops = int(2 * N * mm_cols)
    transcendentals = int(3 * N * rnn_p)
    weight_bytes = sum(int(np.prod(w.shape)) * w.dtype.itemsize for w in weights)
    bytes_accessed = int(img.size * img.dtype.itemsize
                         + nrgb.size * nrgb.dtype.itemsize
                         + h_in.size * h_in.dtype.itemsize
                         + N * (na_p + rnn_p) * 4 + weight_bytes)

    return pl.pallas_call(
        _fused_agent_kernel,
        out_shape=out_shape,
        grid=grid,
        in_specs=in_specs,
        out_specs=out_specs,
        compiler_params=pltpu.CompilerParams(
            dimension_semantics=("parallel",)),
        cost_estimate=pl.CostEstimate(flops=flops,
                                      transcendentals=transcendentals,
                                      bytes_accessed=bytes_accessed),
    )(*data, *weights)


# --------------------------- parameter preparation -------------------------- #

def _conv_out(in_size, k, s, p=0):
    return (in_size - k + 2 * p) // s + 1


def _round_up(n, m):
    return ((n + m - 1) // m) * m


def _pad2(a, rows, cols):
    out = np.zeros((rows, cols), np.float32)
    out[:a.shape[0], :a.shape[1]] = a
    return out


def _pad1(a, n):
    out = np.zeros((n,), np.float32)
    out[:a.shape[0]] = a
    return out


def init_params(key, cfg):
    """PyTorch-layout parameters with PyTorch-default uniform init bounds."""
    def uniform(k, shape, fan_in):
        bound = 1.0 / np.sqrt(float(fan_in))
        return jax.random.uniform(k, shape, jnp.float32, -bound, bound)

    ks = jax.random.split(key, 14)
    C, oc1, k1 = cfg["in_c"], cfg["oc1"], cfg["k1"]
    oc2, k2 = cfg["oc2"], cfg["k2"]
    mlp, rnn, na = cfg["mlp_size"], cfg["rnn_size"], cfg["n_actions"]
    flat = oc2 * cfg["h2"] * cfg["w2"]
    gru_in = mlp + cfg["non_rgb"]

    p = {}
    p["conv1_w"] = uniform(ks[0], (oc1, C, k1, k1), C * k1 * k1)
    p["conv1_b"] = uniform(ks[1], (oc1,), C * k1 * k1)
    p["conv2_w"] = uniform(ks[2], (oc2, oc1, k2, k2), oc1 * k2 * k2)
    p["conv2_b"] = uniform(ks[3], (oc2,), oc1 * k2 * k2)
    p["fc1_w"] = uniform(ks[4], (mlp, flat), flat)
    p["fc1_b"] = uniform(ks[5], (mlp,), flat)
    p["fc2_w"] = uniform(ks[6], (mlp, mlp), mlp)
    p["fc2_b"] = uniform(ks[7], (mlp,), mlp)
    p["gru_wih"] = uniform(ks[8], (3 * rnn, gru_in), rnn)   # gates stacked (r, z, n)
    p["gru_whh"] = uniform(ks[9], (3 * rnn, rnn), rnn)
    p["gru_bih"] = uniform(ks[10], (3 * rnn,), rnn)
    p["gru_bhh"] = uniform(ks[11], (3 * rnn,), rnn)
    p["fc3_w"] = uniform(ks[12], (na, rnn), rnn)
    p["fc3_b"] = uniform(ks[13], (na,), rnn)
    return p


def prepare_fused_params(params, cfg):
    """Densify convs into [in, out] operators, fuse GRU gates, pad to 128 lanes.

    Runs once on the host (numpy).  conv1 is built in torch's `.view(N, C, H, W)`
    coordinates (memory reinterpretation of the (H, W, C) observation); conv2's
    output feature order is torch's NCHW flatten order so fc1 connects directly.
    All padded rows/cols/biases are zero, so the padding is numerically exact.
    """
    H, W, C = cfg["H"], cfg["W"], cfg["in_c"]
    k1, s1, oc1 = cfg["k1"], cfg["s1"], cfg["oc1"]
    k2, s2, oc2 = cfg["k2"], cfg["s2"], cfg["oc2"]
    h1, w1, h2, w2 = cfg["h1"], cfg["w1"], cfg["h2"], cfg["w2"]
    mlp, rnn, non_rgb = cfg["mlp_size"], cfg["rnn_size"], cfg["non_rgb"]
    img_p, c1_p, c2_p = cfg["img_p"], cfg["c1_p"], cfg["c2_p"]
    mlp_p, rnn_p, nrgb_p, na_p = cfg["mlp_p"], cfg["rnn_p"], cfg["nrgb_p"], cfg["na_p"]

    w1t = np.asarray(params["conv1_w"], np.float32)          # [oc1, C, k1, k1]
    w2t = np.asarray(params["conv2_w"], np.float32)          # [oc2, oc1, k2, k2]

    # conv1 dense matrix: rows = (c, h, w) of the *viewed* input, cols = (oc1, oh, ow)
    M1 = np.zeros((C, H, W, oc1, h1, w1), np.float32)
    tap1 = np.transpose(w1t, (1, 2, 3, 0))                   # [C, k1, k1, oc1]
    for oh in range(h1):
        for ow in range(w1):
            M1[:, s1 * oh:s1 * oh + k1, s1 * ow:s1 * ow + k1, :, oh, ow] = tap1
    W1d = M1.reshape(C * H * W, oc1 * h1 * w1) / 255.0       # fold img/255 into w1
    b1d = np.repeat(np.asarray(params["conv1_b"], np.float32), h1 * w1)

    # conv2 dense matrix: rows = (oc1, h1, w1), cols = (oc2, h2, w2)  [NCHW flatten]
    M2 = np.zeros((oc1, h1, w1, oc2, h2, w2), np.float32)
    tap2 = np.transpose(w2t, (1, 2, 3, 0))                   # [oc1, k2, k2, oc2]
    for oh in range(h2):
        for ow in range(w2):
            M2[:, s2 * oh:s2 * oh + k2, s2 * ow:s2 * ow + k2, :, oh, ow] = tap2
    W2d = M2.reshape(oc1 * h1 * w1, oc2 * h2 * w2)
    b2d = np.repeat(np.asarray(params["conv2_b"], np.float32), h2 * w2)

    # GRUCell: fuse the ih path over [x(mlp_p) ; o(nrgb_p)] and stack gates along N.
    wih = np.asarray(params["gru_wih"], np.float32)          # [3*rnn, mlp + non_rgb]
    whh = np.asarray(params["gru_whh"], np.float32)          # [3*rnn, rnn]
    bih = np.asarray(params["gru_bih"], np.float32)
    bhh = np.asarray(params["gru_bhh"], np.float32)

    W_io = np.zeros((mlp_p + nrgb_p, 3 * rnn_p), np.float32)
    W_hh = np.zeros((rnn_p, 3 * rnn_p), np.float32)
    gb = np.zeros((4, 1, rnn_p), np.float32)
    for g in range(3):                                       # gate order r, z, n
        wg = wih[g * rnn:(g + 1) * rnn]                      # [rnn, mlp + non_rgb]
        W_io[:mlp, g * rnn_p:g * rnn_p + rnn] = wg[:, :mlp].T
        W_io[mlp_p:mlp_p + non_rgb, g * rnn_p:g * rnn_p + rnn] = wg[:, mlp:].T
        W_hh[:rnn, g * rnn_p:g * rnn_p + rnn] = whh[g * rnn:(g + 1) * rnn].T
    gb[0, 0, :rnn] = bih[0:rnn] + bhh[0:rnn]                 # r gate bias (ih + hh)
    gb[1, 0, :rnn] = bih[rnn:2 * rnn] + bhh[rnn:2 * rnn]     # z gate bias (ih + hh)
    gb[2, 0, :rnn] = bih[2 * rnn:3 * rnn]                    # n gate input bias
    gb[3, 0, :rnn] = bhh[2 * rnn:3 * rnn]                    # n gate hidden bias

    fp = dict(
        w1=_pad2(W1d, img_p, c1_p), b1=_pad1(b1d, c1_p)[None, :],
        w2=_pad2(W2d, c1_p, c2_p), b2=_pad1(b2d, c2_p)[None, :],
        wf1=_pad2(np.asarray(params["fc1_w"], np.float32).T, c2_p, mlp_p),
        bf1=_pad1(np.asarray(params["fc1_b"], np.float32), mlp_p)[None, :],
        wf2=_pad2(np.asarray(params["fc2_w"], np.float32).T, mlp_p, mlp_p),
        bf2=_pad1(np.asarray(params["fc2_b"], np.float32), mlp_p)[None, :],
        wio=W_io, whh=W_hh, gb=gb,
        wq=_pad2(np.asarray(params["fc3_w"], np.float32).T, rnn_p, na_p),
        bq=_pad1(np.asarray(params["fc3_b"], np.float32), na_p)[None, :],
    )
    return {k: jnp.asarray(v) for k, v in fp.items()}


def cast_matmul_weights(fp, dtype):
    """Cast MXU operands (weights) to dtype (bf16); keep biases f32."""
    return {k: (v.astype(dtype) if k in _MATMUL_WEIGHTS else v) for k, v in fp.items()}


# ------------------------------- forward glue ------------------------------- #

def rnn_cnn_agent_forward(fused_params, inputs, hidden_state, t, cfg):
    """ag_index == -1 path of RNNCNNAgent.forward (single fused Pallas kernel)."""
    rgb = inputs["RGB"]                                   # [bs, T, n_agents, H, W, C]
    bs, _, n_agents = rgb.shape[:3]
    H, W, C = cfg["H"], cfg["W"], cfg["in_c"]
    N = bs * n_agents

    # Flatten the timestep image in raw memory order (matches torch's .view).
    # Pixel values 0..255 are exact in bf16 -> halves the dominant HBM stream.
    img = rgb[:, t].reshape(N, H * W * C).astype(jnp.bfloat16)
    if cfg["img_p"] > H * W * C:
        img = jnp.pad(img, ((0, 0), (0, cfg["img_p"] - H * W * C)))

    nrgb = jnp.concatenate(
        [inputs[k][:, t].reshape(N, -1).astype(jnp.float32) for k in cfg["non_rgb_keys"]],
        axis=1)
    nrgb = jnp.pad(nrgb, ((0, 0), (0, cfg["nrgb_p"] - nrgb.shape[1])))

    h_in = hidden_state.reshape(-1, cfg["rnn_size"]).astype(jnp.float32)
    h_in = jnp.pad(h_in, ((0, 0), (0, cfg["rnn_p"] - cfg["rnn_size"])))

    q_p, h_p = fused_agent_pallas(img, nrgb, h_in, fused_params, cfg)
    return q_p[:, :cfg["n_actions"]], h_p[:, :cfg["rnn_size"]]


def reference_forward_torch(params, cfg, img_flat, nrgb, h):
    """Pure-JAX f32 reference with the ORIGINAL torch-layout parameters.

    Uses lax.conv on the `.view(N, C, H, W)`-reinterpreted image, HIGHEST precision,
    so it validates the densification + lane-padding + bf16 kernel end to end.
    """
    hp = jax.lax.Precision.HIGHEST
    relu = lambda v: jnp.maximum(v, 0.0)
    N = img_flat.shape[0]
    C, H, W = cfg["in_c"], cfg["H"], cfg["W"]
    rnn = cfg["rnn_size"]

    img = img_flat.reshape(N, C, H, W) / 255.0            # torch .view reinterpretation
    x = jax.lax.conv_general_dilated(
        img, params["conv1_w"], (cfg["s1"], cfg["s1"]), "VALID",
        dimension_numbers=("NCHW", "OIHW", "NCHW"), precision=hp)
    x = relu(x + params["conv1_b"][None, :, None, None])
    x = jax.lax.conv_general_dilated(
        x, params["conv2_w"], (cfg["s2"], cfg["s2"]), "VALID",
        dimension_numbers=("NCHW", "OIHW", "NCHW"), precision=hp)
    x = relu(x + params["conv2_b"][None, :, None, None])
    x = x.reshape(N, -1)
    x = relu(jnp.dot(x, params["fc1_w"].T, precision=hp) + params["fc1_b"])
    x = relu(jnp.dot(x, params["fc2_w"].T, precision=hp) + params["fc2_b"])
    xo = jnp.concatenate([x, nrgb], axis=1)
    gi = jnp.dot(xo, params["gru_wih"].T, precision=hp) + params["gru_bih"]
    gh = jnp.dot(h, params["gru_whh"].T, precision=hp) + params["gru_bhh"]
    i_r, i_z, i_n = gi[:, :rnn], gi[:, rnn:2 * rnn], gi[:, 2 * rnn:]
    h_r, h_z, h_n = gh[:, :rnn], gh[:, rnn:2 * rnn], gh[:, 2 * rnn:]
    r = jax.nn.sigmoid(i_r + h_r)
    z = jax.nn.sigmoid(i_z + h_z)
    n = jnp.tanh(i_n + r * h_n)
    h_new = (1.0 - z) * n + z * h
    q = jnp.dot(h_new, params["fc3_w"].T, precision=hp) + params["fc3_b"]
    return q, h_new


# ----------------------------------- main ----------------------------------- #

if __name__ == "__main__":
    bs, T, n_agents = 2, 3, 2
    H = W = 16
    C = 3
    cfg = dict(
        H=H, W=W, in_c=C, k1=4, s1=2, oc1=8, k2=3, s2=1, oc2=8,
        mlp_size=32, rnn_size=32, n_actions=6,
        non_rgb_keys=["POSITION", "READY_TO_SHOOT"], non_rgb=3,
    )
    cfg["h1"] = _conv_out(H, cfg["k1"], cfg["s1"])
    cfg["w1"] = _conv_out(W, cfg["k1"], cfg["s1"])
    cfg["h2"] = _conv_out(cfg["h1"], cfg["k2"], cfg["s2"])
    cfg["w2"] = _conv_out(cfg["w1"], cfg["k2"], cfg["s2"])
    # Lane-padded (multiple-of-128) internal feature dims.
    cfg["img_p"] = _round_up(H * W * C, 128)                              # 768
    cfg["c1_p"] = _round_up(cfg["oc1"] * cfg["h1"] * cfg["w1"], 128)      # 392 -> 512
    cfg["c2_p"] = _round_up(cfg["oc2"] * cfg["h2"] * cfg["w2"], 128)      # 200 -> 256
    cfg["mlp_p"] = _round_up(cfg["mlp_size"], 128)                        # 128
    cfg["rnn_p"] = _round_up(cfg["rnn_size"], 128)                        # 128
    cfg["nrgb_p"] = _round_up(cfg["non_rgb"], 128)                        # 128
    cfg["na_p"] = _round_up(cfg["n_actions"], 128)                        # 128

    key = jax.random.PRNGKey(0)
    kp, k_rgb, k_pos, k_rts = jax.random.split(key, 4)

    params = init_params(kp, cfg)                    # torch-layout params
    fp_f32 = prepare_fused_params(params, cfg)       # fused, padded dense operators
    fp_kern = cast_matmul_weights(fp_f32, jnp.bfloat16)

    inputs = {
        "RGB": jax.random.randint(k_rgb, (bs, T, n_agents, H, W, C), 0, 256
                                  ).astype(jnp.float32),
        "POSITION": jax.random.normal(k_pos, (bs, T, n_agents, 2), jnp.float32),
        "READY_TO_SHOOT": jax.random.normal(k_rts, (bs, T, n_agents), jnp.float32),
    }
    hidden = jnp.zeros((bs * n_agents, cfg["rnn_size"]), jnp.float32)
    t = 1

    fwd = jax.jit(functools.partial(rnn_cnn_agent_forward, cfg=cfg),
                  static_argnames=("t",))
    q, h = fwd(fp_kern, inputs, hidden, t=t)
    jax.block_until_ready((q, h))

    assert q.shape == (bs * n_agents, cfg["n_actions"])
    assert h.shape == (bs * n_agents, cfg["rnn_size"])

    # Correctness check against a pure-JAX f32 reference with the ORIGINAL
    # torch-layout parameters (conv via lax.conv, HIGHEST precision).
    N = bs * n_agents
    img_flat = inputs["RGB"][:, t].reshape(N, H * W * C).astype(jnp.float32)
    nrgb = jnp.concatenate(
        [inputs[k][:, t].reshape(N, -1).astype(jnp.float32) for k in cfg["non_rgb_keys"]],
        axis=1)
    q_ref, h_ref = reference_forward_torch(params, cfg, img_flat, nrgb, hidden)
    assert np.allclose(np.asarray(q), np.asarray(q_ref), atol=5e-2, rtol=5e-2), \
        "q mismatch vs reference"
    assert np.allclose(np.asarray(h), np.asarray(h_ref), atol=5e-2, rtol=5e-2), \
        "h mismatch vs reference"

    print("KERNEL_OK")
</pallas_src>

<mosaic_0001>
module attributes {stable_mosaic.version = 11 : i64} {
  func.func @_fused_agent_kernel(%arg0: i32, %arg1: memref<4x768xbf16, #tpu.memory_space<vmem>>, %arg2: memref<4x128xf32, #tpu.memory_space<vmem>>, %arg3: memref<4x128xf32, #tpu.memory_space<vmem>>, %arg4: memref<768x512xbf16, #tpu.memory_space<vmem>>, %arg5: memref<1x512xf32, #tpu.memory_space<vmem>>, %arg6: memref<512x256xbf16, #tpu.memory_space<vmem>>, %arg7: memref<1x256xf32, #tpu.memory_space<vmem>>, %arg8: memref<256x128xbf16, #tpu.memory_space<vmem>>, %arg9: memref<1x128xf32, #tpu.memory_space<vmem>>, %arg10: memref<128x128xbf16, #tpu.memory_space<vmem>>, %arg11: memref<1x128xf32, #tpu.memory_space<vmem>>, %arg12: memref<256x384xbf16, #tpu.memory_space<vmem>>, %arg13: memref<128x384xbf16, #tpu.memory_space<vmem>>, %arg14: memref<4x1x128xf32, #tpu.memory_space<vmem>>, %arg15: memref<128x128xbf16, #tpu.memory_space<vmem>>, %arg16: memref<1x128xf32, #tpu.memory_space<vmem>>, %arg17: memref<4x128xf32, #tpu.memory_space<vmem>>, %arg18: memref<4x128xf32, #tpu.memory_space<vmem>>) attributes {dimension_semantics = [#tpu.dimension_semantics<parallel>], iteration_bounds = array<i64: 1>, scalar_prefetch = 0 : i64, scratch_operands = 0 : i64, tpu.core_type = #tpu.core_type<tc>, window_params = [{transform_indices = @transform_0, window_bounds = array<i64: 4, 768>}, {transform_indices = @transform_1, window_bounds = array<i64: 4, 128>}, {transform_indices = @transform_2, window_bounds = array<i64: 4, 128>}, {pipeline_mode = #tpu.pipeline_mode<synchronous>, transform_indices = @transform_3, window_bounds = array<i64: 768, 512>}, {pipeline_mode = #tpu.pipeline_mode<synchronous>, transform_indices = @transform_4, window_bounds = array<i64: 1, 512>}, {pipeline_mode = #tpu.pipeline_mode<synchronous>, transform_indices = @transform_5, window_bounds = array<i64: 512, 256>}, {pipeline_mode = #tpu.pipeline_mode<synchronous>, transform_indices = @transform_6, window_bounds = array<i64: 1, 256>}, {pipeline_mode = #tpu.pipeline_mode<synchronous>, transform_indices = @transform_7, window_bounds = array<i64: 256, 128>}, {pipeline_mode = #tpu.pipeline_mode<synchronous>, transform_indices = @transform_8, window_bounds = array<i64: 1, 128>}, {pipeline_mode = #tpu.pipeline_mode<synchronous>, transform_indices = @transform_9, window_bounds = array<i64: 128, 128>}, {pipeline_mode = #tpu.pipeline_mode<synchronous>, transform_indices = @transform_10, window_bounds = array<i64: 1, 128>}, {pipeline_mode = #tpu.pipeline_mode<synchronous>, transform_indices = @transform_11, window_bounds = array<i64: 256, 384>}, {pipeline_mode = #tpu.pipeline_mode<synchronous>, transform_indices = @transform_12, window_bounds = array<i64: 128, 384>}, {pipeline_mode = #tpu.pipeline_mode<synchronous>, transform_indices = @transform_13, window_bounds = array<i64: 4, 1, 128>}, {pipeline_mode = #tpu.pipeline_mode<synchronous>, transform_indices = @transform_14, window_bounds = array<i64: 128, 128>}, {pipeline_mode = #tpu.pipeline_mode<synchronous>, transform_indices = @transform_15, window_bounds = array<i64: 1, 128>}, {transform_indices = @transform_16, window_bounds = array<i64: 4, 128>}, {transform_indices = @transform_17, window_bounds = array<i64: 4, 128>}]} {
    %c0 = arith.constant 0 : index
    %c0_0 = arith.constant 0 : index
    %0 = vector.load %arg1[%c0, %c0_0] : memref<4x768xbf16, #tpu.memory_space<vmem>>, vector<4x768xbf16>
    %c0_1 = arith.constant 0 : index
    %c0_2 = arith.constant 0 : index
    %1 = vector.load %arg4[%c0_1, %c0_2] : memref<768x512xbf16, #tpu.memory_space<vmem>>, vector<768x512xbf16>
    %cst = arith.constant dense<0.000000e+00> : vector<4x512xf32>
    %2 = tpu.matmul %0, %1, %cst {dimension_numbers = #tpu.dot_dimension_numbers<[1], [0], [0], [1], [0, 0, 1, 1], [], []>} : vector<4x768xbf16>, vector<768x512xbf16>, vector<4x512xf32> -> vector<4x512xf32>
    %c0_3 = arith.constant 0 : index
    %c0_4 = arith.constant 0 : index
    %3 = vector.load %arg5[%c0_3, %c0_4] : memref<1x512xf32, #tpu.memory_space<vmem>>, vector<1x512xf32>
    %4 = vector.broadcast %3 : vector<1x512xf32> to vector<4x512xf32>
    %5 = arith.addf %2, %4 : vector<4x512xf32>
    %cst_5 = arith.constant 0.000000e+00 : f32
    %6 = vector.broadcast %cst_5 : f32 to vector<4x512xf32>
    %7 = arith.maximumf %5, %6 : vector<4x512xf32>
    %8 = arith.truncf %7 : vector<4x512xf32> to vector<4x512xbf16>
    %c0_6 = arith.constant 0 : index
    %c0_7 = arith.constant 0 : index
    %9 = vector.load %arg6[%c0_6, %c0_7] : memref<512x256xbf16, #tpu.memory_space<vmem>>, vector<512x256xbf16>
    %cst_8 = arith.constant dense<0.000000e+00> : vector<4x256xf32>
    %10 = tpu.matmul %8, %9, %cst_8 {dimension_numbers = #tpu.dot_dimension_numbers<[1], [0], [0], [1], [0, 0, 1, 1], [], []>} : vector<4x512xbf16>, vector<512x256xbf16>, vector<4x256xf32> -> vector<4x256xf32>
    %c0_9 = arith.constant 0 : index
    %c0_10 = arith.constant 0 : index
    %11 = vector.load %arg7[%c0_9, %c0_10] : memref<1x256xf32, #tpu.memory_space<vmem>>, vector<1x256xf32>
    %12 = vector.broadcast %11 : vector<1x256xf32> to vector<4x256xf32>
    %13 = arith.addf %10, %12 : vector<4x256xf32>
    %cst_11 = arith.constant 0.000000e+00 : f32
    %14 = vector.broadcast %cst_11 : f32 to vector<4x256xf32>
    %15 = arith.maximumf %13, %14 : vector<4x256xf32>
    %16 = arith.truncf %15 : vector<4x256xf32> to vector<4x256xbf16>
    %c0_12 = arith.constant 0 : index
    %c0_13 = arith.constant 0 : index
    %17 = vector.load %arg8[%c0_12, %c0_13] : memref<256x128xbf16, #tpu.memory_space<vmem>>, vector<256x128xbf16>
    %cst_14 = arith.constant dense<0.000000e+00> : vector<4x128xf32>
    %18 = tpu.matmul %16, %17, %cst_14 {dimension_numbers = #tpu.dot_dimension_numbers<[1], [0], [0], [1], [0, 0, 1, 1], [], []>} : vector<4x256xbf16>, vector<256x128xbf16>, vector<4x128xf32> -> vector<4x128xf32>
    %c0_15 = arith.constant 0 : index
    %c0_16 = arith.constant 0 : index
    %19 = vector.load %arg9[%c0_15, %c0_16] : memref<1x128xf32, #tpu.memory_space<vmem>>, vector<1x128xf32>
    %20 = vector.broadcast %19 : vector<1x128xf32> to vector<4x128xf32>
    %21 = arith.addf %18, %20 : vector<4x128xf32>
    %cst_17 = arith.constant 0.000000e+00 : f32
    %22 = vector.broadcast %cst_17 : f32 to vector<4x128xf32>
    %23 = arith.maximumf %21, %22 : vector<4x128xf32>
    %24 = arith.truncf %23 : vector<4x128xf32> to vector<4x128xbf16>
    %c0_18 = arith.constant 0 : index
    %c0_19 = arith.constant 0 : index
    %25 = vector.load %arg10[%c0_18, %c0_19] : memref<128x128xbf16, #tpu.memory_space<vmem>>, vector<128x128xbf16>
    %cst_20 = arith.constant dense<0.000000e+00> : vector<4x128xf32>
    %26 = tpu.matmul %24, %25, %cst_20 {dimension_numbers = #tpu.dot_dimension_numbers<[1], [0], [0], [1], [0, 0, 1, 1], [], []>} : vector<4x128xbf16>, vector<128x128xbf16>, vector<4x128xf32> -> vector<4x128xf32>
    %c0_21 = arith.constant 0 : index
    %c0_22 = arith.constant 0 : index
    %27 = vector.load %arg11[%c0_21, %c0_22] : memref<1x128xf32, #tpu.memory_space<vmem>>, vector<1x128xf32>
    %28 = vector.broadcast %27 : vector<1x128xf32> to vector<4x128xf32>
    %29 = arith.addf %26, %28 : vector<4x128xf32>
    %cst_23 = arith.constant 0.000000e+00 : f32
    %30 = vector.broadcast %cst_23 : f32 to vector<4x128xf32>
    %31 = arith.maximumf %29, %30 : vector<4x128xf32>
    %32 = arith.truncf %31 : vector<4x128xf32> to vector<4x128xbf16>
    %c0_24 = arith.constant 0 : index
    %c0_25 = arith.constant 0 : index
    %33 = vector.load %arg2[%c0_24, %c0_25] : memref<4x128xf32, #tpu.memory_space<vmem>>, vector<4x128xf32>
    %34 = arith.truncf %33 : vector<4x128xf32> to vector<4x128xbf16>
    %c0_26 = arith.constant 0 : index
    %c0_27 = arith.constant 0 : index
    %35 = vector.load %arg3[%c0_26, %c0_27] : memref<4x128xf32, #tpu.memory_space<vmem>>, vector<4x128xf32>
    %36 = arith.truncf %35 : vector<4x128xf32> to vector<4x128xbf16>
    %37 = tpu.concatenate %32, %34 in 1 : vector<4x128xbf16>, vector<4x128xbf16> -> vector<4x256xbf16>
    %c0_28 = arith.constant 0 : index
    %c0_29 = arith.constant 0 : index
    %38 = vector.load %arg12[%c0_28, %c0_29] : memref<256x384xbf16, #tpu.memory_space<vmem>>, vector<256x384xbf16>
    %cst_30 = arith.constant dense<0.000000e+00> : vector<4x384xf32>
    %39 = tpu.matmul %37, %38, %cst_30 {dimension_numbers = #tpu.dot_dimension_numbers<[1], [0], [0], [1], [0, 0, 1, 1], [], []>} : vector<4x256xbf16>, vector<256x384xbf16>, vector<4x384xf32> -> vector<4x384xf32>
    %c0_31 = arith.constant 0 : index
    %c0_32 = arith.constant 0 : index
    %40 = vector.load %arg13[%c0_31, %c0_32] : memref<128x384xbf16, #tpu.memory_space<vmem>>, vector<128x384xbf16>
    %cst_33 = arith.constant dense<0.000000e+00> : vector<4x384xf32>
    %41 = tpu.matmul %36, %40, %cst_33 {dimension_numbers = #tpu.dot_dimension_numbers<[1], [0], [0], [1], [0, 0, 1, 1], [], []>} : vector<4x128xbf16>, vector<128x384xbf16>, vector<4x384xf32> -> vector<4x384xf32>
    %42 = vector.extract_strided_slice %39 {offsets = [0, 0], sizes = [4, 128], strides = [1, 1]} : vector<4x384xf32> to vector<4x128xf32>
    %43 = vector.extract_strided_slice %39 {offsets = [0, 128], sizes = [4, 128], strides = [1, 1]} : vector<4x384xf32> to vector<4x128xf32>
    %44 = vector.extract_strided_slice %39 {offsets = [0, 256], sizes = [4, 128], strides = [1, 1]} : vector<4x384xf32> to vector<4x128xf32>
    %45 = vector.extract_strided_slice %41 {offsets = [0, 0], sizes = [4, 128], strides = [1, 1]} : vector<4x384xf32> to vector<4x128xf32>
    %46 = vector.extract_strided_slice %41 {offsets = [0, 128], sizes = [4, 128], strides = [1, 1]} : vector<4x384xf32> to vector<4x128xf32>
    %47 = vector.extract_strided_slice %41 {offsets = [0, 256], sizes = [4, 128], strides = [1, 1]} : vector<4x384xf32> to vector<4x128xf32>
    %48 = arith.addf %42, %45 : vector<4x128xf32>
    %c0_34 = arith.constant 0 : index
    %c0_35 = arith.constant 0 : index
    %c0_36 = arith.constant 0 : index
    %49 = vector.load %arg14[%c0_34, %c0_35, %c0_36] : memref<4x1x128xf32, #tpu.memory_space<vmem>>, vector<1x1x128xf32>
    %50 = vector.shape_cast %49 : vector<1x1x128xf32> to vector<1x128xf32>
    %51 = vector.broadcast %50 : vector<1x128xf32> to vector<4x128xf32>
    %52 = arith.addf %48, %51 : vector<4x128xf32>
    %53 = arith.negf %52 : vector<4x128xf32>
    %54 = math.exp %53 : vector<4x128xf32>
    %cst_37 = arith.constant 1.000000e+00 : f32
    %55 = vector.broadcast %cst_37 : f32 to vector<4x128xf32>
    %56 = arith.addf %55, %54 : vector<4x128xf32>
    %57 = arith.divf %55, %56 : vector<4x128xf32>
    %58 = arith.addf %43, %46 : vector<4x128xf32>
    %c1 = arith.constant 1 : index
    %c0_38 = arith.constant 0 : index
    %c0_39 = arith.constant 0 : index
    %59 = vector.load %arg14[%c1, %c0_38, %c0_39] : memref<4x1x128xf32, #tpu.memory_space<vmem>>, vector<1x1x128xf32>
    %60 = vector.shape_cast %59 : vector<1x1x128xf32> to vector<1x128xf32>
    %61 = vector.broadcast %60 : vector<1x128xf32> to vector<4x128xf32>
    %62 = arith.addf %58, %61 : vector<4x128xf32>
    %63 = arith.negf %62 : vector<4x128xf32>
    %64 = math.exp %63 : vector<4x128xf32>
    %cst_40 = arith.constant 1.000000e+00 : f32
    %65 = vector.broadcast %cst_40 : f32 to vector<4x128xf32>
    %66 = arith.addf %65, %64 : vector<4x128xf32>
    %67 = arith.divf %65, %66 : vector<4x128xf32>
    %c2 = arith.constant 2 : index
    %c0_41 = arith.constant 0 : index
    %c0_42 = arith.constant 0 : index
    %68 = vector.load %arg14[%c2, %c0_41, %c0_42] : memref<4x1x128xf32, #tpu.memory_space<vmem>>, vector<1x1x128xf32>
    %69 = vector.shape_cast %68 : vector<1x1x128xf32> to vector<1x128xf32>
    %70 = vector.broadcast %69 : vector<1x128xf32> to vector<4x128xf32>
    %71 = arith.addf %44, %70 : vector<4x128xf32>
    %c3 = arith.constant 3 : index
    %c0_43 = arith.constant 0 : index
    %c0_44 = arith.constant 0 : index
    %72 = vector.load %arg14[%c3, %c0_43, %c0_44] : memref<4x1x128xf32, #tpu.memory_space<vmem>>, vector<1x1x128xf32>
    %73 = vector.shape_cast %72 : vector<1x1x128xf32> to vector<1x128xf32>
    %74 = vector.broadcast %73 : vector<1x128xf32> to vector<4x128xf32>
    %75 = arith.addf %47, %74 : vector<4x128xf32>
    %76 = arith.mulf %57, %75 : vector<4x128xf32>
    %77 = arith.addf %71, %76 : vector<4x128xf32>
    %78 = math.tanh %77 : vector<4x128xf32>
    %cst_45 = arith.constant 1.000000e+00 : f32
    %79 = vector.broadcast %cst_45 : f32 to vector<4x128xf32>
    %80 = arith.subf %79, %67 : vector<4x128xf32>
    %81 = arith.mulf %80, %78 : vector<4x128xf32>
    %82 = arith.mulf %67, %35 : vector<4x128xf32>
    %83 = arith.addf %81, %82 : vector<4x128xf32>
    %84 = arith.truncf %83 : vector<4x128xf32> to vector<4x128xbf16>
    %c0_46 = arith.constant 0 : index
    %c0_47 = arith.constant 0 : index
    %85 = vector.load %arg15[%c0_46, %c0_47] : memref<128x128xbf16, #tpu.memory_space<vmem>>, vector<128x128xbf16>
    %cst_48 = arith.constant dense<0.000000e+00> : vector<4x128xf32>
    %86 = tpu.matmul %84, %85, %cst_48 {dimension_numbers = #tpu.dot_dimension_numbers<[1], [0], [0], [1], [0, 0, 1, 1], [], []>} : vector<4x128xbf16>, vector<128x128xbf16>, vector<4x128xf32> -> vector<4x128xf32>
    %c0_49 = arith.constant 0 : index
    %c0_50 = arith.constant 0 : index
    %87 = vector.load %arg16[%c0_49, %c0_50] : memref<1x128xf32, #tpu.memory_space<vmem>>, vector<1x128xf32>
    %88 = vector.broadcast %87 : vector<1x128xf32> to vector<4x128xf32>
    %89 = arith.addf %86, %88 : vector<4x128xf32>
    %c0_51 = arith.constant 0 : index
    %c0_52 = arith.constant 0 : index
    %90 = vector.load %arg17[%c0_51, %c0_52] : memref<4x128xf32, #tpu.memory_space<vmem>>, vector<4x128xf32>
    tpu.vector_store %arg17[%c0_51, %c0_52], %89 {strides = array<i32>} : memref<4x128xf32, #tpu.memory_space<vmem>>, vector<4x128xf32>,
    %c0_53 = arith.constant 0 : index
    %c0_54 = arith.constant 0 : index
    %91 = vector.load %arg18[%c0_53, %c0_54] : memref<4x128xf32, #tpu.memory_space<vmem>>, vector<4x128xf32>
    tpu.vector_store %arg18[%c0_53, %c0_54], %83 {strides = array<i32>} : memref<4x128xf32, #tpu.memory_space<vmem>>, vector<4x128xf32>,
    return
  }
  func.func @transform_0(%arg0: i32) -> (i32, i32) {
    %c0_i32 = arith.constant 0 : i32
    %c0_i32_0 = arith.constant 0 : i32
    return %arg0, %c0_i32 : i32, i32
  }
  func.func @transform_1(%arg0: i32) -> (i32, i32) {
    %c0_i32 = arith.constant 0 : i32
    %c0_i32_0 = arith.constant 0 : i32
    return %arg0, %c0_i32 : i32, i32
  }
  func.func @transform_2(%arg0: i32) -> (i32, i32) {
    %c0_i32 = arith.constant 0 : i32
    %c0_i32_0 = arith.constant 0 : i32
    return %arg0, %c0_i32 : i32, i32
  }
  func.func @transform_3(%arg0: i32) -> (i32, i32) {
    %c0_i32 = arith.constant 0 : i32
    %c0_i32_0 = arith.constant 0 : i32
    %c0_i32_1 = arith.constant 0 : i32
    return %c0_i32, %c0_i32_0 : i32, i32
  }
  func.func @transform_4(%arg0: i32) -> (i32, i32) {
    %c0_i32 = arith.constant 0 : i32
    %c0_i32_0 = arith.constant 0 : i32
    %c0_i32_1 = arith.constant 0 : i32
    return %c0_i32, %c0_i32_0 : i32, i32
  }
  func.func @transform_5(%arg0: i32) -> (i32, i32) {
    %c0_i32 = arith.constant 0 : i32
    %c0_i32_0 = arith.constant 0 : i32
    %c0_i32_1 = arith.constant 0 : i32
    return %c0_i32, %c0_i32_0 : i32, i32
  }
  func.func @transform_6(%arg0: i32) -> (i32, i32) {
    %c0_i32 = arith.constant 0 : i32
    %c0_i32_0 = arith.constant 0 : i32
    %c0_i32_1 = arith.constant 0 : i32
    return %c0_i32, %c0_i32_0 : i32, i32
  }
  func.func @transform_7(%arg0: i32) -> (i32, i32) {
    %c0_i32 = arith.constant 0 : i32
    %c0_i32_0 = arith.constant 0 : i32
    %c0_i32_1 = arith.constant 0 : i32
    return %c0_i32, %c0_i32_0 : i32, i32
  }
  func.func @transform_8(%arg0: i32) -> (i32, i32) {
    %c0_i32 = arith.constant 0 : i32
    %c0_i32_0 = arith.constant 0 : i32
    %c0_i32_1 = arith.constant 0 : i32
    return %c0_i32, %c0_i32_0 : i32, i32
  }
  func.func @transform_9(%arg0: i32) -> (i32, i32) {
    %c0_i32 = arith.constant 0 : i32
    %c0_i32_0 = arith.constant 0 : i32
    %c0_i32_1 = arith.constant 0 : i32
    return %c0_i32, %c0_i32_0 : i32, i32
  }
  func.func @transform_10(%arg0: i32) -> (i32, i32) {
    %c0_i32 = arith.constant 0 : i32
    %c0_i32_0 = arith.constant 0 : i32
    %c0_i32_1 = arith.constant 0 : i32
    return %c0_i32, %c0_i32_0 : i32, i32
  }
  func.func @transform_11(%arg0: i32) -> (i32, i32) {
    %c0_i32 = arith.constant 0 : i32
    %c0_i32_0 = arith.constant 0 : i32
    %c0_i32_1 = arith.constant 0 : i32
    return %c0_i32, %c0_i32_0 : i32, i32
  }
  func.func @transform_12(%arg0: i32) -> (i32, i32) {
    %c0_i32 = arith.constant 0 : i32
    %c0_i32_0 = arith.constant 0 : i32
    %c0_i32_1 = arith.constant 0 : i32
    return %c0_i32, %c0_i32_0 : i32, i32
  }
  func.func @transform_13(%arg0: i32) -> (i32, i32, i32) {
    %c0_i32 = arith.constant 0 : i32
    %c0_i32_0 = arith.constant 0 : i32
    %c0_i32_1 = arith.constant 0 : i32
    %c0_i32_2 = arith.constant 0 : i32
    return %c0_i32, %c0_i32_0, %c0_i32_1 : i32, i32, i32
  }
  func.func @transform_14(%arg0: i32) -> (i32, i32) {
    %c0_i32 = arith.constant 0 : i32
    %c0_i32_0 = arith.constant 0 : i32
    %c0_i32_1 = arith.constant 0 : i32
    return %c0_i32, %c0_i32_0 : i32, i32
  }
  func.func @transform_15(%arg0: i32) -> (i32, i32) {
    %c0_i32 = arith.constant 0 : i32
    %c0_i32_0 = arith.constant 0 : i32
    %c0_i32_1 = arith.constant 0 : i32
    return %c0_i32, %c0_i32_0 : i32, i32
  }
  func.func @transform_16(%arg0: i32) -> (i32, i32) {
    %c0_i32 = arith.constant 0 : i32
    %c0_i32_0 = arith.constant 0 : i32
    return %arg0, %c0_i32 : i32, i32
  }
  func.func @transform_17(%arg0: i32) -> (i32, i32) {
    %c0_i32 = arith.constant 0 : i32
    %c0_i32_0 = arith.constant 0 : i32
    return %arg0, %c0_i32 : i32, i32
  }
}

</mosaic_0001>

<llo_original>
// kernel: rnn_cnn_agent_forward.1
$region0: #{rnn_cnn_agent_forward.1}
  #allocation0 [shape = 'u32[]', space=smem, size = 0x4, offset = 0x4, fixed_abs, tag = 'smem constant byte address 0x4 - core index']
  #allocation1 [shape = 'u32[144,128]{1,0:T(1,128)}', space=vmem, size = 0x12000, scoped, tag = 'internal scratch']
  %s0 = inlined_call_operand.vmem [shape: bf16[4,768], index: 0, kind: input, shape index: {}]
  %s1 = inlined_call_operand.vmem [shape: f32[4,128], index: 1, kind: input, shape index: {}]
  %s2 = inlined_call_operand.vmem [shape: f32[4,128], index: 2, kind: input, shape index: {}]
  %s3 = inlined_call_operand.hbm [shape: bf16[768,512], index: 3, kind: input, shape index: {}]
  %s4 = inlined_call_operand.vmem [shape: f32[1,512], index: 4, kind: input, shape index: {}]
  %s5 = inlined_call_operand.vmem [shape: bf16[512,256], index: 5, kind: input, shape index: {}]
  %s6 = inlined_call_operand.vmem [shape: f32[1,256], index: 6, kind: input, shape index: {}]
  %s7 = inlined_call_operand.vmem [shape: bf16[256,128], index: 7, kind: input, shape index: {}]
  %s8 = inlined_call_operand.vmem [shape: f32[1,128], index: 8, kind: input, shape index: {}]
  %s9 = inlined_call_operand.vmem [shape: bf16[128,128], index: 9, kind: input, shape index: {}]
  %s10 = inlined_call_operand.vmem [shape: f32[1,128], index: 10, kind: input, shape index: {}]
  %s11 = inlined_call_operand.vmem [shape: bf16[256,384], index: 11, kind: input, shape index: {}]
  %s12 = inlined_call_operand.vmem [shape: bf16[128,384], index: 12, kind: input, shape index: {}]
  %s13 = inlined_call_operand.vmem [shape: f32[4,1,128], index: 13, kind: input, shape index: {}]
  %s14 = inlined_call_operand.vmem [shape: bf16[128,128], index: 14, kind: input, shape index: {}]
  %s15 = inlined_call_operand.vmem [shape: f32[1,128], index: 15, kind: input, shape index: {}]
  %s16 = inlined_call_operand.hbm [shape: f32[4,128], index: 16, kind: output, shape index: {0}]
  %s17 = inlined_call_operand.hbm [shape: f32[4,128], index: 17, kind: output, shape index: {1}]
  %18 = xla_tuple %s16, %s17
  %s19 = sld [smem:[#allocation0]]
  $region86: #{rnn_cnn_agent_forward.1} parent=0
    _
  %s21 = ssub.s32 1, %s19
  %s22 = scalar_select 0, %s21, %s19
  $region1: #{rnn_cnn_agent_forward.1} parent=0
    #allocation2 [shape = 'u8[786432]{0}', space=vmem, size = 0xc0000, scoped, tag = 'input window, operand 3, single buffered']
    #allocation3 [shape = 's32[1]{0}', space=sflag, size = 0x4, scoped, tag = 'scoped memory for rnn_cnn_agent_forward.1']
    #allocation4 [shape = 's32[1]{0}', space=sflag, size = 0x4, scoped, tag = 'scoped memory for rnn_cnn_agent_forward.1']
    #allocation5 [shape = 'u8[2048]{0}', space=vmem, size = 0x800, scoped, tag = 'output window, operand 0, single buffered']
    #allocation6 [shape = 'u8[2048]{0}', space=vmem, size = 0x800, scoped, tag = 'output window, operand 1, single buffered']
    #allocation7 [shape = 's32[1]{0}', space=sflag, size = 0x4, scoped, tag = 'scoped memory for rnn_cnn_agent_forward.1']
    %23 = vsyncpa [#allocation3], 0
    %24 = vsyncpa [#allocation4], 0
    %25 = vsyncpa [#allocation7], 0
    // Predicated region
    $region2: #{rnn_cnn_agent_forward.1} parent=1 // pred_check
      _
    $region3: #{rnn_cnn_agent_forward.1} parent=1 // pred_check_branch
      %27 = sbr.rel (0) target = $region5
    $region4: #{rnn_cnn_agent_forward.1} parent=1 // pred_region
      _
    $region5: #{rnn_cnn_agent_forward.1} parent=1 // pred_fallthru
      _
    // Predicated region
    $region6: #{rnn_cnn_agent_forward.1} parent=1 // pred_check
      _
    $region7: #{rnn_cnn_agent_forward.1} parent=1 // pred_check_branch
      %29 = sbr.rel (0) target = $region9
    $region8: #{rnn_cnn_agent_forward.1} parent=1 // pred_region
      _
    $region9: #{rnn_cnn_agent_forward.1} parent=1 // pred_fallthru
      _
    // Predicated region
    $region10: #{rnn_cnn_agent_forward.1} parent=1 // pred_check
      _
    $region11: #{rnn_cnn_agent_forward.1} parent=1 // pred_check_branch
      %31 = sbr.rel (0) target = $region13
    $region12: #{rnn_cnn_agent_forward.1} parent=1 // pred_region
      _
    $region13: #{rnn_cnn_agent_forward.1} parent=1 // pred_fallthru
      _
    // Predicated region
    $region14: #{rnn_cnn_agent_forward.1} parent=1 // pred_check
      _
    $region15: #{rnn_cnn_agent_forward.1} parent=1 // pred_check_branch
      %33 = sbr.rel (0) target = $region17
    $region16: #{rnn_cnn_agent_forward.1} parent=1 // pred_region
      %s35 = ssub.s32 24576, 24576
      %36 = vsyncadd [#allocation3], %s35
      %s37 = sshll.u32 [#allocation2], 4
      %s38 = int_to_ptr.vmem [resolvable:$true] %s37
      %43 = dma.hbm_to_vmem [thread:$0]  %s3, 24576, %s38, [#allocation3], 256, 256, 16
    $region17: #{rnn_cnn_agent_forward.1} parent=1 // pred_fallthru
      _
    // Predicated region
    $region18: #{rnn_cnn_agent_forward.1} parent=1 // pred_check
      _
    $region19: #{rnn_cnn_agent_forward.1} parent=1 // pred_check_branch
      %45 = sbr.rel (0) target = $region21
    $region20: #{rnn_cnn_agent_forward.1} parent=1 // pred_region
      _
    $region21: #{rnn_cnn_agent_forward.1} parent=1 // pred_fallthru
      _
    // Predicated region
    $region22: #{rnn_cnn_agent_forward.1} parent=1 // pred_check
      _
    $region23: #{rnn_cnn_agent_forward.1} parent=1 // pred_check_branch
      %47 = sbr.rel (0) target = $region25
    $region24: #{rnn_cnn_agent_forward.1} parent=1 // pred_region
      _
    $region25: #{rnn_cnn_agent_forward.1} parent=1 // pred_fallthru
      _
    // Predicated region
    $region26: #{rnn_cnn_agent_forward.1} parent=1 // pred_check
      _
    $region27: #{rnn_cnn_agent_forward.1} parent=1 // pred_check_branch
      %49 = sbr.rel (0) target = $region29
    $region28: #{rnn_cnn_agent_forward.1} parent=1 // pred_region
      _
    $region29: #{rnn_cnn_agent_forward.1} parent=1 // pred_fallthru
      _
    // Predicated region
    $region30: #{rnn_cnn_agent_forward.1} parent=1 // pred_check
      _
    $region31: #{rnn_cnn_agent_forward.1} parent=1 // pred_check_branch
      %51 = sbr.rel (0) target = $region33
    $region32: #{rnn_cnn_agent_forward.1} parent=1 // pred_region
      _
    $region33: #{rnn_cnn_agent_forward.1} parent=1 // pred_fallthru
      _
    // Predicated region
    $region34: #{rnn_cnn_agent_forward.1} parent=1 // pred_check
      _
    $region35: #{rnn_cnn_agent_forward.1} parent=1 // pred_check_branch
      %53 = sbr.rel (0) target = $region37
    $region36: #{rnn_cnn_agent_forward.1} parent=1 // pred_region
      _
    $region37: #{rnn_cnn_agent_forward.1} parent=1 // pred_fallthru
      _
    // Predicated region
    $region38: #{rnn_cnn_agent_forward.1} parent=1 // pred_check
      _
    $region39: #{rnn_cnn_agent_forward.1} parent=1 // pred_check_branch
      %55 = sbr.rel (0) target = $region41
    $region40: #{rnn_cnn_agent_forward.1} parent=1 // pred_region
      _
    $region41: #{rnn_cnn_agent_forward.1} parent=1 // pred_fallthru
      _
    // Predicated region
    $region42: #{rnn_cnn_agent_forward.1} parent=1 // pred_check
      _
    $region43: #{rnn_cnn_agent_forward.1} parent=1 // pred_check_branch
      %57 = sbr.rel (0) target = $region45
    $region44: #{rnn_cnn_agent_forward.1} parent=1 // pred_region
      _
    $region45: #{rnn_cnn_agent_forward.1} parent=1 // pred_fallthru
      _
    // Predicated region
    $region46: #{rnn_cnn_agent_forward.1} parent=1 // pred_check
      _
    $region47: #{rnn_cnn_agent_forward.1} parent=1 // pred_check_branch
      %59 = sbr.rel (0) target = $region49
    $region48: #{rnn_cnn_agent_forward.1} parent=1 // pred_region
      _
    $region49: #{rnn_cnn_agent_forward.1} parent=1 // pred_fallthru
      _
    // Predicated region
    $region50: #{rnn_cnn_agent_forward.1} parent=1 // pred_check
      _
    $region51: #{rnn_cnn_agent_forward.1} parent=1 // pred_check_branch
      %61 = sbr.rel (0) target = $region53
    $region52: #{rnn_cnn_agent_forward.1} parent=1 // pred_region
      _
    $region53: #{rnn_cnn_agent_forward.1} parent=1 // pred_fallthru
      _
    // Predicated region
    $region54: #{rnn_cnn_agent_forward.1} parent=1 // pred_check
      _
    $region55: #{rnn_cnn_agent_forward.1} parent=1 // pred_check_branch
      %63 = sbr.rel (0) target = $region57
    $region56: #{rnn_cnn_agent_forward.1} parent=1 // pred_region
      _
    $region57: #{rnn_cnn_agent_forward.1} parent=1 // pred_fallthru
      _
    // Predicated region
    $region58: #{rnn_cnn_agent_forward.1} parent=1 // pred_check
      _
    $region59: #{rnn_cnn_agent_forward.1} parent=1 // pred_check_branch
      %65 = sbr.rel (0) target = $region61
    $region60: #{rnn_cnn_agent_forward.1} parent=1 // pred_region
      _
    $region61: #{rnn_cnn_agent_forward.1} parent=1 // pred_fallthru
      _
    // Predicated region
    $region62: #{rnn_cnn_agent_forward.1} parent=1 // pred_check
      _
    $region63: #{rnn_cnn_agent_forward.1} parent=1 // pred_check_branch
      %67 = sbr.rel (0) target = $region65
    $region64: #{rnn_cnn_agent_forward.1} parent=1 // pred_region
      _
    $region65: #{rnn_cnn_agent_forward.1} parent=1 // pred_fallthru
      _
    // Predicated region
    $region66: #{rnn_cnn_agent_forward.1} parent=1 // pred_check
      _
    $region67: #{rnn_cnn_agent_forward.1} parent=1 // pred_check_branch
      %69 = sbr.rel (0) target = $region69
    $region68: #{rnn_cnn_agent_forward.1} parent=1 // pred_region
      %70 = dma.done [#allocation3], 24576
    $region69: #{rnn_cnn_agent_forward.1} parent=1 // pred_fallthru
      _
    %v72 = vld [vmem:[%s0] sm:$0xff]
    %v73 = vld [vmem:[%s0 + $0x8] sm:$0xf]
    %v74 = vld [vmem:[#allocation2] sm:$0xff]
    %v75 = vld [vmem:[#allocation2 + $0x8] sm:$0xff]
    %v76 = vld [vmem:[#allocation2 + $0x10] sm:$0xff]
    %v77 = vld [vmem:[#allocation2 + $0x18] sm:$0xff]
    %v78 = vld [vmem:[#allocation2 + $0x20] sm:$0xff]
    %v79 = vld [vmem:[#allocation2 + $0x28] sm:$0xff]
    %v80 = vld [vmem:[#allocation2 + $0x30] sm:$0xff]
    %v81 = vld [vmem:[#allocation2 + $0x38] sm:$0xff]
    %v82 = vld [vmem:[#allocation2 + $0x40] sm:$0xff]
    %v83 = vld [vmem:[#allocation2 + $0x48] sm:$0xff]
    %v84 = vld [vmem:[#allocation2 + $0x50] sm:$0xff]
    %v85 = vld [vmem:[#allocation2 + $0x58] sm:$0xff]
    %v86 = vld [vmem:[#allocation2 + $0x60] sm:$0xff]
    %v87 = vld [vmem:[#allocation2 + $0x68] sm:$0xff]
    %v88 = vld [vmem:[#allocation2 + $0x70] sm:$0xff]
    %v89 = vld [vmem:[#allocation2 + $0x78] sm:$0xff]
    %v90 = vld [vmem:[#allocation2 + $0x80] sm:$0xff]
    %v91 = vld [vmem:[#allocation2 + $0x88] sm:$0xff]
    %v92 = vld [vmem:[#allocation2 + $0x90] sm:$0xff]
    %v93 = vld [vmem:[#allocation2 + $0x98] sm:$0xff]
    %v94 = vld [vmem:[#allocation2 + $0xa0] sm:$0xff]
    %v95 = vld [vmem:[#allocation2 + $0xa8] sm:$0xff]
    %v96 = vld [vmem:[#allocation2 + $0xb0] sm:$0xff]
    %v97 = vld [vmem:[#allocation2 + $0xb8] sm:$0xff]
    %v98 = vld [vmem:[#allocation2 + $0xc0] sm:$0xff]
    %v99 = vld [vmem:[#allocation2 + $0xc8] sm:$0xff]
    %v100 = vld [vmem:[#allocation2 + $0xd0] sm:$0xff]
    %v101 = vld [vmem:[#allocation2 + $0xd8] sm:$0xff]
    %v102 = vld [vmem:[#allocation2 + $0xe0] sm:$0xff]
    %v103 = vld [vmem:[#allocation2 + $0xe8] sm:$0xff]
    %v104 = vld [vmem:[#allocation2 + $0xf0] sm:$0xff]
    %v105 = vld [vmem:[#allocation2 + $0xf8] sm:$0xff]
    %v106 = vld [vmem:[#allocation2 + $0x100] sm:$0xff]
    %v107 = vld [vmem:[#allocation2 + $0x108] sm:$0xff]
    %v108 = vld [vmem:[#allocation2 + $0x110] sm:$0xff]
    %v109 = vld [vmem:[#allocation2 + $0x118] sm:$0xff]
    %v110 = vld [vmem:[#allocation2 + $0x120] sm:$0xff]
    %v111 = vld [vmem:[#allocation2 + $0x128] sm:$0xff]
    %v112 = vld [vmem:[#allocation2 + $0x130] sm:$0xff]
    %v113 = vld [vmem:[#allocation2 + $0x138] sm:$0xff]
    %v114 = vld [vmem:[#allocation2 + $0x140] sm:$0xff]
    %v115 = vld [vmem:[#allocation2 + $0x148] sm:$0xff]
    %v116 = vld [vmem:[#allocation2 + $0x150] sm:$0xff]
    %v117 = vld [vmem:[#allocation2 + $0x158] sm:$0xff]
    %v118 = vld [vmem:[#allocation2 + $0x160] sm:$0xff]
    %v119 = vld [vmem:[#allocation2 + $0x168] sm:$0xff]
    %v120 = vld [vmem:[#allocation2 + $0x170] sm:$0xff]
    %v121 = vld [vmem:[#allocation2 + $0x178] sm:$0xff]
    %v122 = vld [vmem:[#allocation2 + $0x180] sm:$0xff]
    %v123 = vld [vmem:[#allocation2 + $0x188] sm:$0xff]
    %v124 = vld [vmem:[#allocation2 + $0x190] sm:$0xff]
    %v125 = vld [vmem:[#allocation2 + $0x198] sm:$0xff]
    %v126 = vld [vmem:[#allocation2 + $0x1a0] sm:$0xff]
    %v127 = vld [vmem:[#allocation2 + $0x1a8] sm:$0xff]
    %v128 = vld [vmem:[#allocation2 + $0x1b0] sm:$0xff]
    %v129 = vld [vmem:[#allocation2 + $0x1b8] sm:$0xff]
    %v130 = vld [vmem:[#allocation2 + $0x1c0] sm:$0xff]
    %v131 = vld [vmem:[#allocation2 + $0x1c8] sm:$0xff]
    %v132 = vld [vmem:[#allocation2 + $0x1d0] sm:$0xff]
    %v133 = vld [vmem:[#allocation2 + $0x1d8] sm:$0xff]
    %v134 = vld [vmem:[#allocation2 + $0x1e0] sm:$0xff]
    %v135 = vld [vmem:[#allocation2 + $0x1e8] sm:$0xff]
    %v136 = vld [vmem:[#allocation2 + $0x1f0] sm:$0xff]
    %v137 = vld [vmem:[#allocation2 + $0x1f8] sm:$0xff]
    %v138 = vld [vmem:[#allocation2 + $0x200] sm:$0xff]
    %v139 = vld [vmem:[#allocation2 + $0x208] sm:$0xff]
    %v140 = vld [vmem:[#allocation2 + $0x210] sm:$0xff]
    %v141 = vld [vmem:[#allocation2 + $0x218] sm:$0xff]
    %v142 = vld [vmem:[#allocation2 + $0x220] sm:$0xff]
    %v143 = vld [vmem:[#allocation2 + $0x228] sm:$0xff]
    %v144 = vld [vmem:[#allocation2 + $0x230] sm:$0xff]
    %v145 = vld [vmem:[#allocation2 + $0x238] sm:$0xff]
    %v146 = vld [vmem:[#allocation2 + $0x240] sm:$0xff]
    %v147 = vld [vmem:[#allocation2 + $0x248] sm:$0xff]
    %v148 = vld [vmem:[#allocation2 + $0x250] sm:$0xff]
    %v149 = vld [vmem:[#allocation2 + $0x258] sm:$0xff]
    %v150 = vld [vmem:[#allocation2 + $0x260] sm:$0xff]
    %v151 = vld [vmem:[#allocation2 + $0x268] sm:$0xff]
    %v152 = vld [vmem:[#allocation2 + $0x270] sm:$0xff]
    %v153 = vld [vmem:[#allocation2 + $0x278] sm:$0xff]
    %v154 = vld [vmem:[#allocation2 + $0x280] sm:$0xff]
    %v155 = vld [vmem:[#allocation2 + $0x288] sm:$0xff]
    %v156 = vld [vmem:[#allocation2 + $0x290] sm:$0xff]
    %v157 = vld [vmem:[#allocation2 + $0x298] sm:$0xff]
    %v158 = vld [vmem:[#allocation2 + $0x2a0] sm:$0xff]
    %v159 = vld [vmem:[#allocation2 + $0x2a8] sm:$0xff]
    %v160 = vld [vmem:[#allocation2 + $0x2b0] sm:$0xff]
    %v161 = vld [vmem:[#allocation2 + $0x2b8] sm:$0xff]
    %v162 = vld [vmem:[#allocation2 + $0x2c0] sm:$0xff]
    %v163 = vld [vmem:[#allocation2 + $0x2c8] sm:$0xff]
    %v164 = vld [vmem:[#allocation2 + $0x2d0] sm:$0xff]
    %v165 = vld [vmem:[#allocation2 + $0x2d8] sm:$0xff]
    %v166 = vld [vmem:[#allocation2 + $0x2e0] sm:$0xff]
    %v167 = vld [vmem:[#allocation2 + $0x2e8] sm:$0xff]
    %v168 = vld [vmem:[#allocation2 + $0x2f0] sm:$0xff]
    %v169 = vld [vmem:[#allocation2 + $0x2f8] sm:$0xff]
    %v170 = vld [vmem:[#allocation2 + $0x300] sm:$0xff]
    %v171 = vld [vmem:[#allocation2 + $0x308] sm:$0xff]
    %v172 = vld [vmem:[#allocation2 + $0x310] sm:$0xff]
    %v173 = vld [vmem:[#allocation2 + $0x318] sm:$0xff]
    %v174 = vld [vmem:[#allocation2 + $0x320] sm:$0xff]
    %v175 = vld [vmem:[#allocation2 + $0x328] sm:$0xff]
    %v176 = vld [vmem:[#allocation2 + $0x330] sm:$0xff]
    %v177 = vld [vmem:[#allocation2 + $0x338] sm:$0xff]
    %v178 = vld [vmem:[#allocation2 + $0x340] sm:$0xff]
    %v179 = vld [vmem:[#allocation2 + $0x348] sm:$0xff]
    %v180 = vld [vmem:[#allocation2 + $0x350] sm:$0xff]
    %v181 = vld [vmem:[#allocation2 + $0x358] sm:$0xff]
    %v182 = vld [vmem:[#allocation2 + $0x360] sm:$0xff]
    %v183 = vld [vmem:[#allocation2 + $0x368] sm:$0xff]
    %v184 = vld [vmem:[#allocation2 + $0x370] sm:$0xff]
    %v185 = vld [vmem:[#allocation2 + $0x378] sm:$0xff]
    %v186 = vld [vmem:[#allocation2 + $0x380] sm:$0xff]
    %v187 = vld [vmem:[#allocation2 + $0x388] sm:$0xff]
    %v188 = vld [vmem:[#allocation2 + $0x390] sm:$0xff]
    %v189 = vld [vmem:[#allocation2 + $0x398] sm:$0xff]
    %v190 = vld [vmem:[#allocation2 + $0x3a0] sm:$0xff]
    %v191 = vld [vmem:[#allocation2 + $0x3a8] sm:$0xff]
    %v192 = vld [vmem:[#allocation2 + $0x3b0] sm:$0xff]
    %v193 = vld [vmem:[#allocation2 + $0x3b8] sm:$0xff]
    %v194 = vld [vmem:[#allocation2 + $0x3c0] sm:$0xff]
    %v195 = vld [vmem:[#allocation2 + $0x3c8] sm:$0xff]
    %v196 = vld [vmem:[#allocation2 + $0x3d0] sm:$0xff]
    %v197 = vld [vmem:[#allocation2 + $0x3d8] sm:$0xff]
    %v198 = vld [vmem:[#allocation2 + $0x3e0] sm:$0xff]
    %v199 = vld [vmem:[#allocation2 + $0x3e8] sm:$0xff]
    %v200 = vld [vmem:[#allocation2 + $0x3f0] sm:$0xff]
    %v201 = vld [vmem:[#allocation2 + $0x3f8] sm:$0xff]
    %v202 = vld [vmem:[#allocation2 + $0x400] sm:$0xff]
    %v203 = vld [vmem:[#allocation2 + $0x408] sm:$0xff]
    %v204 = vld [vmem:[#allocation2 + $0x410] sm:$0xff]
    %v205 = vld [vmem:[#allocation2 + $0x418] sm:$0xff]
    %v206 = vld [vmem:[#allocation2 + $0x420] sm:$0xff]
    %v207 = vld [vmem:[#allocation2 + $0x428] sm:$0xff]
    %v208 = vld [vmem:[#allocation2 + $0x430] sm:$0xff]
    %v209 = vld [vmem:[#allocation2 + $0x438] sm:$0xff]
    %v210 = vld [vmem:[#allocation2 + $0x440] sm:$0xff]
    %v211 = vld [vmem:[#allocation2 + $0x448] sm:$0xff]
    %v212 = vld [vmem:[#allocation2 + $0x450] sm:$0xff]
    %v213 = vld [vmem:[#allocation2 + $0x458] sm:$0xff]
    %v214 = vld [vmem:[#allocation2 + $0x460] sm:$0xff]
    %v215 = vld [vmem:[#allocation2 + $0x468] sm:$0xff]
    %v216 = vld [vmem:[#allocation2 + $0x470] sm:$0xff]
    %v217 = vld [vmem:[#allocation2 + $0x478] sm:$0xff]
    %v218 = vld [vmem:[#allocation2 + $0x480] sm:$0xff]
    %v219 = vld [vmem:[#allocation2 + $0x488] sm:$0xff]
    %v220 = vld [vmem:[#allocation2 + $0x490] sm:$0xff]
    %v221 = vld [vmem:[#allocation2 + $0x498] sm:$0xff]
    %v222 = vld [vmem:[#allocation2 + $0x4a0] sm:$0xff]
    %v223 = vld [vmem:[#allocation2 + $0x4a8] sm:$0xff]
    %v224 = vld [vmem:[#allocation2 + $0x4b0] sm:$0xff]
    %v225 = vld [vmem:[#allocation2 + $0x4b8] sm:$0xff]
    %v226 = vld [vmem:[#allocation2 + $0x4c0] sm:$0xff]
    %v227 = vld [vmem:[#allocation2 + $0x4c8] sm:$0xff]
    %v228 = vld [vmem:[#allocation2 + $0x4d0] sm:$0xff]
    %v229 = vld [vmem:[#allocation2 + $0x4d8] sm:$0xff]
    %v230 = vld [vmem:[#allocation2 + $0x4e0] sm:$0xff]
    %v231 = vld [vmem:[#allocation2 + $0x4e8] sm:$0xff]
    %v232 = vld [vmem:[#allocation2 + $0x4f0] sm:$0xff]
    %v233 = vld [vmem:[#allocation2 + $0x4f8] sm:$0xff]
    %v234 = vld [vmem:[#allocation2 + $0x500] sm:$0xff]
    %v235 = vld [vmem:[#allocation2 + $0x508] sm:$0xff]
    %v236 = vld [vmem:[#allocation2 + $0x510] sm:$0xff]
    %v237 = vld [vmem:[#allocation2 + $0x518] sm:$0xff]
    %v238 = vld [vmem:[#allocation2 + $0x520] sm:$0xff]
    %v239 = vld [vmem:[#allocation2 + $0x528] sm:$0xff]
    %v240 = vld [vmem:[#allocation2 + $0x530] sm:$0xff]
    %v241 = vld [vmem:[#allocation2 + $0x538] sm:$0xff]
    %v242 = vld [vmem:[#allocation2 + $0x540] sm:$0xff]
    %v243 = vld [vmem:[#allocation2 + $0x548] sm:$0xff]
    %v244 = vld [vmem:[#allocation2 + $0x550] sm:$0xff]
    %v245 = vld [vmem:[#allocation2 + $0x558] sm:$0xff]
    %v246 = vld [vmem:[#allocation2 + $0x560] sm:$0xff]
    %v247 = vld [vmem:[#allocation2 + $0x568] sm:$0xff]
    %v248 = vld [vmem:[#allocation2 + $0x570] sm:$0xff]
    %v249 = vld [vmem:[#allocation2 + $0x578] sm:$0xff]
    %v250 = vld [vmem:[#allocation2 + $0x580] sm:$0xff]
    %v251 = vld [vmem:[#allocation2 + $0x588] sm:$0xff]
    %v252 = vld [vmem:[#allocation2 + $0x590] sm:$0xff]
    %v253 = vld [vmem:[#allocation2 + $0x598] sm:$0xff]
    %v254 = vld [vmem:[#allocation2 + $0x5a0] sm:$0xff]
    %v255 = vld [vmem:[#allocation2 + $0x5a8] sm:$0xff]
    %v256 = vld [vmem:[#allocation2 + $0x5b0] sm:$0xff]
    %v257 = vld [vmem:[#allocation2 + $0x5b8] sm:$0xff]
    %v258 = vld [vmem:[#allocation2 + $0x5c0] sm:$0xff]
    %v259 = vld [vmem:[#allocation2 + $0x5c8] sm:$0xff]
    %v260 = vld [vmem:[#allocation2 + $0x5d0] sm:$0xff]
    %v261 = vld [vmem:[#allocation2 + $0x5d8] sm:$0xff]
    %v262 = vld [vmem:[#allocation2 + $0x5e0] sm:$0xff]
    %v263 = vld [vmem:[#allocation2 + $0x5e8] sm:$0xff]
    %v264 = vld [vmem:[#allocation2 + $0x5f0] sm:$0xff]
    %v265 = vld [vmem:[#allocation2 + $0x5f8] sm:$0xff]
    %v266 = vld [vmem:[%s4] sm:$0xf]
    %v268 = vlaneseq
    %v269 = vshrl.u32 %v268, 7
    %v270 = vsub.s32 0, %v269
    %v271 = vrot.slane %v266, %v270
    %v272 = vlaneseq
    %v273 = vshrl.u32 %v272, 7
    %v274 = vsub.s32 1, %v273
    %v275 = vrot.slane %v266, %v274
    %v276 = vlaneseq
    %v277 = vshrl.u32 %v276, 7
    %v278 = vsub.s32 2, %v277
    %v279 = vrot.slane %v266, %v278
    %v280 = vlaneseq
    %v281 = vshrl.u32 %v280, 7
    %v282 = vsub.s32 3, %v281
    %v283 = vrot.slane %v266, %v282
    %v290 = vcombine.high %v72, %v72
    %v292 = vunpack.c.l.s4 1983009808
    %v293 = vunpack.c.0.s8 %v292
    %v294 = vlaneseq
    %v295 = vshrl.u32 %v294, 7
    %v296 = vsub.s32 %v293, %v295
    %v297 = vrot.slane %v72, %v296
    %v299 = vunpack.c.l.s4 1983009808
    %v300 = vunpack.c.0.s8 %v299
    %v301 = vlaneseq
    %v302 = vshrl.u32 %v301, 7
    %v303 = vsub.s32 %v300, %v302
    %v304 = vrot.slane %v290, %v303
    %v305 = vcombine.high %v297, %v297
    %v306 = vcombine.high %v304, %v304
    %v308 = vunpack.c.l.s4 1983009808
    %v309 = vunpack.c.0.s8 %v308
    %v310 = vlaneseq
    %v311 = vshrl.u32 %v310, 7
    %v312 = vsub.s32 %v309, %v311
    %v313 = vrot.slane %v73, %v312
    %v314 = vcombine.high %v313, %v313
    %v513 = vunpack.c.l.b16 %v74
    %v514 = vunpack.c.h.b16 %v74
    %v515 = vunpack.c.l.b16 %v75
    %v516 = vunpack.c.h.b16 %v75
    %v517 = vunpack.c.l.b16 %v76
    %v518 = vunpack.c.h.b16 %v76
    %v519 = vunpack.c.l.b16 %v77
    %v520 = vunpack.c.h.b16 %v77
    %v521 = vunpack.c.l.b16 %v78
    %v522 = vunpack.c.h.b16 %v78
    %v523 = vunpack.c.l.b16 %v79
    %v524 = vunpack.c.h.b16 %v79
    %v525 = vunpack.c.l.b16 %v80
    %v526 = vunpack.c.h.b16 %v80
    %v527 = vunpack.c.l.b16 %v81
    %v528 = vunpack.c.h.b16 %v81
    %v529 = vunpack.c.l.b16 %v82
    %v530 = vunpack.c.h.b16 %v82
    %v531 = vunpack.c.l.b16 %v83
    %v532 = vunpack.c.h.b16 %v83
    %v533 = vunpack.c.l.b16 %v84
    %v534 = vunpack.c.h.b16 %v84
    %v535 = vunpack.c.l.b16 %v85
    %v536 = vunpack.c.h.b16 %v85
    %v537 = vunpack.c.l.b16 %v86
    %v538 = vunpack.c.h.b16 %v86
    %v539 = vunpack.c.l.b16 %v87
    %v540 = vunpack.c.h.b16 %v87
    %v541 = vunpack.c.l.b16 %v88
    %v542 = vunpack.c.h.b16 %v88
    %v543 = vunpack.c.l.b16 %v89
    %v544 = vunpack.c.h.b16 %v89
    %v545 = vunpack.c.l.b16 %v90
    %v546 = vunpack.c.h.b16 %v90
    %v547 = vunpack.c.l.b16 %v91
    %v548 = vunpack.c.h.b16 %v91
    %v549 = vunpack.c.l.b16 %v92
    %v550 = vunpack.c.h.b16 %v92
    %v551 = vunpack.c.l.b16 %v93
    %v552 = vunpack.c.h.b16 %v93
    %v553 = vunpack.c.l.b16 %v94
    %v554 = vunpack.c.h.b16 %v94
    %v555 = vunpack.c.l.b16 %v95
    %v556 = vunpack.c.h.b16 %v95
    %v557 = vunpack.c.l.b16 %v96
    %v558 = vunpack.c.h.b16 %v96
    %v559 = vunpack.c.l.b16 %v97
    %v560 = vunpack.c.h.b16 %v97
    %v561 = vunpack.c.l.b16 %v98
    %v562 = vunpack.c.h.b16 %v98
    %v563 = vunpack.c.l.b16 %v99
    %v564 = vunpack.c.h.b16 %v99
    %v565 = vunpack.c.l.b16 %v100
    %v566 = vunpack.c.h.b16 %v100
    %v567 = vunpack.c.l.b16 %v101
    %v568 = vunpack.c.h.b16 %v101
    %v569 = vunpack.c.l.b16 %v102
    %v570 = vunpack.c.h.b16 %v102
    %v571 = vunpack.c.l.b16 %v103
    %v572 = vunpack.c.h.b16 %v103
    %v573 = vunpack.c.l.b16 %v104
    %v574 = vunpack.c.h.b16 %v104
    %v575 = vunpack.c.l.b16 %v105
    %v576 = vunpack.c.h.b16 %v105
    %v577 = vunpack.c.l.b16 %v106
    %v578 = vunpack.c.h.b16 %v106
    %v579 = vunpack.c.l.b16 %v107
    %v580 = vunpack.c.h.b16 %v107
    %v581 = vunpack.c.l.b16 %v108
    %v582 = vunpack.c.h.b16 %v108
    %v583 = vunpack.c.l.b16 %v109
    %v584 = vunpack.c.h.b16 %v109
    %v585 = vunpack.c.l.b16 %v110
    %v586 = vunpack.c.h.b16 %v110
    %v587 = vunpack.c.l.b16 %v111
    %v588 = vunpack.c.h.b16 %v111
    %v589 = vunpack.c.l.b16 %v112
    %v590 = vunpack.c.h.b16 %v112
    %v591 = vunpack.c.l.b16 %v113
    %v592 = vunpack.c.h.b16 %v113
    %v593 = vunpack.c.l.b16 %v114
    %v594 = vunpack.c.h.b16 %v114
    %v595 = vunpack.c.l.b16 %v115
    %v596 = vunpack.c.h.b16 %v115
    %v597 = vunpack.c.l.b16 %v116
    %v598 = vunpack.c.h.b16 %v116
    %v599 = vunpack.c.l.b16 %v117
    %v600 = vunpack.c.h.b16 %v117
    %v601 = vunpack.c.l.b16 %v118
    %v602 = vunpack.c.h.b16 %v118
    %v603 = vunpack.c.l.b16 %v119
    %v604 = vunpack.c.h.b16 %v119
    %v605 = vunpack.c.l.b16 %v120
    %v606 = vunpack.c.h.b16 %v120
    %v607 = vunpack.c.l.b16 %v121
    %v608 = vunpack.c.h.b16 %v121
    %v609 = vunpack.c.l.b16 %v122
    %v610 = vunpack.c.h.b16 %v122
    %v611 = vunpack.c.l.b16 %v123
    %v612 = vunpack.c.h.b16 %v123
    %v613 = vunpack.c.l.b16 %v124
    %v614 = vunpack.c.h.b16 %v124
    %v615 = vunpack.c.l.b16 %v125
    %v616 = vunpack.c.h.b16 %v125
    %v617 = vunpack.c.l.b16 %v126
    %v618 = vunpack.c.h.b16 %v126
    %v619 = vunpack.c.l.b16 %v127
    %v620 = vunpack.c.h.b16 %v127
    %v621 = vunpack.c.l.b16 %v128
    %v622 = vunpack.c.h.b16 %v128
    %v623 = vunpack.c.l.b16 %v129
    %v624 = vunpack.c.h.b16 %v129
    %v625 = vunpack.c.l.b16 %v130
    %v626 = vunpack.c.h.b16 %v130
    %v627 = vunpack.c.l.b16 %v131
    %v628 = vunpack.c.h.b16 %v131
    %v629 = vunpack.c.l.b16 %v132
    %v630 = vunpack.c.h.b16 %v132
    %v631 = vunpack.c.l.b16 %v133
    %v632 = vunpack.c.h.b16 %v133
    %v633 = vunpack.c.l.b16 %v134
    %v634 = vunpack.c.h.b16 %v134
    %v635 = vunpack.c.l.b16 %v135
    %v636 = vunpack.c.h.b16 %v135
    %v637 = vunpack.c.l.b16 %v136
    %v638 = vunpack.c.h.b16 %v136
    %v639 = vunpack.c.l.b16 %v137
    %v640 = vunpack.c.h.b16 %v137
    %v641 = vunpack.c.l.b16 %v138
    %v642 = vunpack.c.h.b16 %v138
    %v643 = vunpack.c.l.b16 %v139
    %v644 = vunpack.c.h.b16 %v139
    %v645 = vunpack.c.l.b16 %v140
    %v646 = vunpack.c.h.b16 %v140
    %v647 = vunpack.c.l.b16 %v141
    %v648 = vunpack.c.h.b16 %v141
    %v649 = vunpack.c.l.b16 %v142
    %v650 = vunpack.c.h.b16 %v142
    %v651 = vunpack.c.l.b16 %v143
    %v652 = vunpack.c.h.b16 %v143
    %v653 = vunpack.c.l.b16 %v144
    %v654 = vunpack.c.h.b16 %v144
    %v655 = vunpack.c.l.b16 %v145
    %v656 = vunpack.c.h.b16 %v145
    %v657 = vunpack.c.l.b16 %v146
    %v658 = vunpack.c.h.b16 %v146
    %v659 = vunpack.c.l.b16 %v147
    %v660 = vunpack.c.h.b16 %v147
    %v661 = vunpack.c.l.b16 %v148
    %v662 = vunpack.c.h.b16 %v148
    %v663 = vunpack.c.l.b16 %v149
    %v664 = vunpack.c.h.b16 %v149
    %v665 = vunpack.c.l.b16 %v150
    %v666 = vunpack.c.h.b16 %v150
    %v667 = vunpack.c.l.b16 %v151
    %v668 = vunpack.c.h.b16 %v151
    %v669 = vunpack.c.l.b16 %v152
    %v670 = vunpack.c.h.b16 %v152
    %v671 = vunpack.c.l.b16 %v153
    %v672 = vunpack.c.h.b16 %v153
    %v673 = vunpack.c.l.b16 %v154
    %v674 = vunpack.c.h.b16 %v154
    %v675 = vunpack.c.l.b16 %v155
    %v676 = vunpack.c.h.b16 %v155
    %v677 = vunpack.c.l.b16 %v156
    %v678 = vunpack.c.h.b16 %v156
    %v679 = vunpack.c.l.b16 %v157
    %v680 = vunpack.c.h.b16 %v157
    %v681 = vunpack.c.l.b16 %v158
    %v682 = vunpack.c.h.b16 %v158
    %v683 = vunpack.c.l.b16 %v159
    %v684 = vunpack.c.h.b16 %v159
    %v685 = vunpack.c.l.b16 %v160
    %v686 = vunpack.c.h.b16 %v160
    %v687 = vunpack.c.l.b16 %v161
    %v688 = vunpack.c.h.b16 %v161
    %v689 = vunpack.c.l.b16 %v162
    %v690 = vunpack.c.h.b16 %v162
    %v691 = vunpack.c.l.b16 %v163
    %v692 = vunpack.c.h.b16 %v163
    %v693 = vunpack.c.l.b16 %v164
    %v694 = vunpack.c.h.b16 %v164
    %v695 = vunpack.c.l.b16 %v165
    %v696 = vunpack.c.h.b16 %v165
    %v697 = vunpack.c.l.b16 %v166
    %v698 = vunpack.c.h.b16 %v166
    %v699 = vunpack.c.l.b16 %v167
    %v700 = vunpack.c.h.b16 %v167
    %v701 = vunpack.c.l.b16 %v168
    %v702 = vunpack.c.h.b16 %v168
    %v703 = vunpack.c.l.b16 %v169
    %v704 = vunpack.c.h.b16 %v169
    %v705 = vunpack.c.l.b16 %v170
    %v706 = vunpack.c.h.b16 %v170
    %v707 = vunpack.c.l.b16 %v171
    %v708 = vunpack.c.h.b16 %v171
    %v709 = vunpack.c.l.b16 %v172
    %v710 = vunpack.c.h.b16 %v172
    %v711 = vunpack.c.l.b16 %v173
    %v712 = vunpack.c.h.b16 %v173
    %v713 = vunpack.c.l.b16 %v174
    %v714 = vunpack.c.h.b16 %v174
    %v715 = vunpack.c.l.b16 %v175
    %v716 = vunpack.c.h.b16 %v175
    %v717 = vunpack.c.l.b16 %v176
    %v718 = vunpack.c.h.b16 %v176
    %v719 = vunpack.c.l.b16 %v177
    %v720 = vunpack.c.h.b16 %v177
    %v721 = vunpack.c.l.b16 %v178
    %v722 = vunpack.c.h.b16 %v178
    %v723 = vunpack.c.l.b16 %v179
    %v724 = vunpack.c.h.b16 %v179
    %v725 = vunpack.c.l.b16 %v180
    %v726 = vunpack.c.h.b16 %v180
    %v727 = vunpack.c.l.b16 %v181
    %v728 = vunpack.c.h.b16 %v181
    %v729 = vunpack.c.l.b16 %v182
    %v730 = vunpack.c.h.b16 %v182
    %v731 = vunpack.c.l.b16 %v183
    %v732 = vunpack.c.h.b16 %v183
    %v733 = vunpack.c.l.b16 %v184
    %v734 = vunpack.c.h.b16 %v184
    %v735 = vunpack.c.l.b16 %v185
    %v736 = vunpack.c.h.b16 %v185
    %v737 = vunpack.c.l.b16 %v186
    %v738 = vunpack.c.h.b16 %v186
    %v739 = vunpack.c.l.b16 %v187
    %v740 = vunpack.c.h.b16 %v187
    %v741 = vunpack.c.l.b16 %v188
    %v742 = vunpack.c.h.b16 %v188
    %v743 = vunpack.c.l.b16 %v189
    %v744 = vunpack.c.h.b16 %v189
    %v745 = vunpack.c.l.b16 %v190
    %v746 = vunpack.c.h.b16 %v190
    %v747 = vunpack.c.l.b16 %v191
    %v748 = vunpack.c.h.b16 %v191
    %v749 = vunpack.c.l.b16 %v192
    %v750 = vunpack.c.h.b16 %v192
    %v751 = vunpack.c.l.b16 %v193
    %v752 = vunpack.c.h.b16 %v193
    %v753 = vunpack.c.l.b16 %v194
    %v754 = vunpack.c.h.b16 %v194
    %v755 = vunpack.c.l.b16 %v195
    %v756 = vunpack.c.h.b16 %v195
    %v757 = vunpack.c.l.b16 %v196
    %v758 = vunpack.c.h.b16 %v196
    %v759 = vunpack.c.l.b16 %v197
    %v760 = vunpack.c.h.b16 %v197
    %v761 = vunpack.c.l.b16 %v198
    %v762 = vunpack.c.h.b16 %v198
    %v763 = vunpack.c.l.b16 %v199
    %v764 = vunpack.c.h.b16 %v199
    %v765 = vunpack.c.l.b16 %v200
    %v766 = vunpack.c.h.b16 %v200
    %v767 = vunpack.c.l.b16 %v201
    %v768 = vunpack.c.h.b16 %v201
    %v769 = vunpack.c.l.b16 %v202
    %v770 = vunpack.c.h.b16 %v202
    %v771 = vunpack.c.l.b16 %v203
    %v772 = vunpack.c.h.b16 %v203
    %v773 = vunpack.c.l.b16 %v204
    %v774 = vunpack.c.h.b16 %v204
    %v775 = vunpack.c.l.b16 %v205
    %v776 = vunpack.c.h.b16 %v205
    %v777 = vunpack.c.l.b16 %v206
    %v778 = vunpack.c.h.b16 %v206
    %v779 = vunpack.c.l.b16 %v207
    %v780 = vunpack.c.h.b16 %v207
    %v781 = vunpack.c.l.b16 %v208
    %v782 = vunpack.c.h.b16 %v208
    %v783 = vunpack.c.l.b16 %v209
    %v784 = vunpack.c.h.b16 %v209
    %v785 = vunpack.c.l.b16 %v210
    %v786 = vunpack.c.h.b16 %v210
    %v787 = vunpack.c.l.b16 %v211
    %v788 = vunpack.c.h.b16 %v211
    %v789 = vunpack.c.l.b16 %v212
    %v790 = vunpack.c.h.b16 %v212
    %v791 = vunpack.c.l.b16 %v213
    %v792 = vunpack.c.h.b16 %v213
    %v793 = vunpack.c.l.b16 %v214
    %v794 = vunpack.c.h.b16 %v214
    %v795 = vunpack.c.l.b16 %v215
    %v796 = vunpack.c.h.b16 %v215
    %v797 = vunpack.c.l.b16 %v216
    %v798 = vunpack.c.h.b16 %v216
    %v799 = vunpack.c.l.b16 %v217
    %v800 = vunpack.c.h.b16 %v217
    %v801 = vunpack.c.l.b16 %v218
    %v802 = vunpack.c.h.b16 %v218
    %v803 = vunpack.c.l.b16 %v219
    %v804 = vunpack.c.h.b16 %v219
    %v805 = vunpack.c.l.b16 %v220
    %v806 = vunpack.c.h.b16 %v220
    %v807 = vunpack.c.l.b16 %v221
    %v808 = vunpack.c.h.b16 %v221
    %v809 = vunpack.c.l.b16 %v222
    %v810 = vunpack.c.h.b16 %v222
    %v811 = vunpack.c.l.b16 %v223
    %v812 = vunpack.c.h.b16 %v223
    %v813 = vunpack.c.l.b16 %v224
    %v814 = vunpack.c.h.b16 %v224
    %v815 = vunpack.c.l.b16 %v225
    %v816 = vunpack.c.h.b16 %v225
    %v817 = vunpack.c.l.b16 %v226
    %v818 = vunpack.c.h.b16 %v226
    %v819 = vunpack.c.l.b16 %v227
    %v820 = vunpack.c.h.b16 %v227
    %v821 = vunpack.c.l.b16 %v228
    %v822 = vunpack.c.h.b16 %v228
    %v823 = vunpack.c.l.b16 %v229
    %v824 = vunpack.c.h.b16 %v229
    %v825 = vunpack.c.l.b16 %v230
    %v826 = vunpack.c.h.b16 %v230
    %v827 = vunpack.c.l.b16 %v231
    %v828 = vunpack.c.h.b16 %v231
    %v829 = vunpack.c.l.b16 %v232
    %v830 = vunpack.c.h.b16 %v232
    %v831 = vunpack.c.l.b16 %v233
    %v832 = vunpack.c.h.b16 %v233
    %v833 = vunpack.c.l.b16 %v234
    %v834 = vunpack.c.h.b16 %v234
    %v835 = vunpack.c.l.b16 %v235
    %v836 = vunpack.c.h.b16 %v235
    %v837 = vunpack.c.l.b16 %v236
    %v838 = vunpack.c.h.b16 %v236
    %v839 = vunpack.c.l.b16 %v237
    %v840 = vunpack.c.h.b16 %v237
    %v841 = vunpack.c.l.b16 %v238
    %v842 = vunpack.c.h.b16 %v238
    %v843 = vunpack.c.l.b16 %v239
    %v844 = vunpack.c.h.b16 %v239
    %v845 = vunpack.c.l.b16 %v240
    %v846 = vunpack.c.h.b16 %v240
    %v847 = vunpack.c.l.b16 %v241
    %v848 = vunpack.c.h.b16 %v241
    %v849 = vunpack.c.l.b16 %v242
    %v850 = vunpack.c.h.b16 %v242
    %v851 = vunpack.c.l.b16 %v243
    %v852 = vunpack.c.h.b16 %v243
    %v853 = vunpack.c.l.b16 %v244
    %v854 = vunpack.c.h.b16 %v244
    %v855 = vunpack.c.l.b16 %v245
    %v856 = vunpack.c.h.b16 %v245
    %v857 = vunpack.c.l.b16 %v246
    %v858 = vunpack.c.h.b16 %v246
    %v859 = vunpack.c.l.b16 %v247
    %v860 = vunpack.c.h.b16 %v247
    %v861 = vunpack.c.l.b16 %v248
    %v862 = vunpack.c.h.b16 %v248
    %v863 = vunpack.c.l.b16 %v249
    %v864 = vunpack.c.h.b16 %v249
    %v865 = vunpack.c.l.b16 %v250
    %v866 = vunpack.c.h.b16 %v250
    %v867 = vunpack.c.l.b16 %v251
    %v868 = vunpack.c.h.b16 %v251
    %v869 = vunpack.c.l.b16 %v252
    %v870 = vunpack.c.h.b16 %v252
    %v871 = vunpack.c.l.b16 %v253
    %v872 = vunpack.c.h.b16 %v253
    %v873 = vunpack.c.l.b16 %v254
    %v874 = vunpack.c.h.b16 %v254
    %v875 = vunpack.c.l.b16 %v255
    %v876 = vunpack.c.h.b16 %v255
    %v877 = vunpack.c.l.b16 %v256
    %v878 = vunpack.c.h.b16 %v256
    %v879 = vunpack.c.l.b16 %v257
    %v880 = vunpack.c.h.b16 %v257
    %v881 = vunpack.c.l.b16 %v258
    %v882 = vunpack.c.h.b16 %v258
    %v883 = vunpack.c.l.b16 %v259
    %v884 = vunpack.c.h.b16 %v259
    %v885 = vunpack.c.l.b16 %v260
    %v886 = vunpack.c.h.b16 %v260
    %v887 = vunpack.c.l.b16 %v261
    %v888 = vunpack.c.h.b16 %v261
    %v889 = vunpack.c.l.b16 %v262
    %v890 = vunpack.c.h.b16 %v262
    %v891 = vunpack.c.l.b16 %v263
    %v892 = vunpack.c.h.b16 %v263
    %v893 = vunpack.c.l.b16 %v264
    %v894 = vunpack.c.h.b16 %v264
    %v895 = vunpack.c.l.b16 %v265
    %v896 = vunpack.c.h.b16 %v265
    %v897 = vpack.c.b16 %v517, %v513
    %v898 = vpack.c.b16 %v518, %v514
    %v899 = vpack.c.b16 %v519, %v515
    %v900 = vpack.c.b16 %v520, %v516
    %v901 = vpack.c.b16 %v525, %v521
    %v902 = vpack.c.b16 %v526, %v522
    %v903 = vpack.c.b16 %v527, %v523
    %v904 = vpack.c.b16 %v528, %v524
    %v905 = vpack.c.b16 %v533, %v529
    %v906 = vpack.c.b16 %v534, %v530
    %v907 = vpack.c.b16 %v535, %v531
    %v908 = vpack.c.b16 %v536, %v532
    %v909 = vpack.c.b16 %v541, %v537
    %v910 = vpack.c.b16 %v542, %v538
    %v911 = vpack.c.b16 %v543, %v539
    %v912 = vpack.c.b16 %v544, %v540
    %v913 = vpack.c.b16 %v549, %v545
    %v914 = vpack.c.b16 %v550, %v546
    %v915 = vpack.c.b16 %v551, %v547
    %v916 = vpack.c.b16 %v552, %v548
    %v917 = vpack.c.b16 %v557, %v553
    %v918 = vpack.c.b16 %v558, %v554
    %v919 = vpack.c.b16 %v559, %v555
    %v920 = vpack.c.b16 %v560, %v556
    %v921 = vpack.c.b16 %v565, %v561
    %v922 = vpack.c.b16 %v566, %v562
    %v923 = vpack.c.b16 %v567, %v563
    %v924 = vpack.c.b16 %v568, %v564
    %v925 = vpack.c.b16 %v573, %v569
    %v926 = vpack.c.b16 %v574, %v570
    %v927 = vpack.c.b16 %v575, %v571
    %v928 = vpack.c.b16 %v576, %v572
    %v929 = vpack.c.b16 %v581, %v577
    %v930 = vpack.c.b16 %v582, %v578
    %v931 = vpack.c.b16 %v583, %v579
    %v932 = vpack.c.b16 %v584, %v580
    %v933 = vpack.c.b16 %v589, %v585
    %v934 = vpack.c.b16 %v590, %v586
    %v935 = vpack.c.b16 %v591, %v587
    %v936 = vpack.c.b16 %v592, %v588
    %v937 = vpack.c.b16 %v597, %v593
    %v938 = vpack.c.b16 %v598, %v594
    %v939 = vpack.c.b16 %v599, %v595
    %v940 = vpack.c.b16 %v600, %v596
    %v941 = vpack.c.b16 %v605, %v601
    %v942 = vpack.c.b16 %v606, %v602
    %v943 = vpack.c.b16 %v607, %v603
    %v944 = vpack.c.b16 %v608, %v604
    %v945 = vpack.c.b16 %v613, %v609
    %v946 = vpack.c.b16 %v614, %v610
    %v947 = vpack.c.b16 %v615, %v611
    %v948 = vpack.c.b16 %v616, %v612
    %v949 = vpack.c.b16 %v621, %v617
    %v950 = vpack.c.b16 %v622, %v618
    %v951 = vpack.c.b16 %v623, %v619
    %v952 = vpack.c.b16 %v624, %v620
    %v953 = vpack.c.b16 %v629, %v625
    %v954 = vpack.c.b16 %v630, %v626
    %v955 = vpack.c.b16 %v631, %v627
    %v956 = vpack.c.b16 %v632, %v628
    %v957 = vpack.c.b16 %v637, %v633
    %v958 = vpack.c.b16 %v638, %v634
    %v959 = vpack.c.b16 %v639, %v635
    %v960 = vpack.c.b16 %v640, %v636
    %v961 = vpack.c.b16 %v645, %v641
    %v962 = vpack.c.b16 %v646, %v642
    %v963 = vpack.c.b16 %v647, %v643
    %v964 = vpack.c.b16 %v648, %v644
    %v965 = vpack.c.b16 %v653, %v649
    %v966 = vpack.c.b16 %v654, %v650
    %v967 = vpack.c.b16 %v655, %v651
    %v968 = vpack.c.b16 %v656, %v652
    %v969 = vpack.c.b16 %v661, %v657
    %v970 = vpack.c.b16 %v662, %v658
    %v971 = vpack.c.b16 %v663, %v659
    %v972 = vpack.c.b16 %v664, %v660
    %v973 = vpack.c.b16 %v669, %v665
    %v974 = vpack.c.b16 %v670, %v666
    %v975 = vpack.c.b16 %v671, %v667
    %v976 = vpack.c.b16 %v672, %v668
    %v977 = vpack.c.b16 %v677, %v673
    %v978 = vpack.c.b16 %v678, %v674
    %v979 = vpack.c.b16 %v679, %v675
    %v980 = vpack.c.b16 %v680, %v676
    %v981 = vpack.c.b16 %v685, %v681
    %v982 = vpack.c.b16 %v686, %v682
    %v983 = vpack.c.b16 %v687, %v683
    %v984 = vpack.c.b16 %v688, %v684
    %v985 = vpack.c.b16 %v693, %v689
    %v986 = vpack.c.b16 %v694, %v690
    %v987 = vpack.c.b16 %v695, %v691
    %v988 = vpack.c.b16 %v696, %v692
    %v989 = vpack.c.b16 %v701, %v697
    %v990 = vpack.c.b16 %v702, %v698
    %v991 = vpack.c.b16 %v703, %v699
    %v992 = vpack.c.b16 %v704, %v700
    %v993 = vpack.c.b16 %v709, %v705
    %v994 = vpack.c.b16 %v710, %v706
    %v995 = vpack.c.b16 %v711, %v707
    %v996 = vpack.c.b16 %v712, %v708
    %v997 = vpack.c.b16 %v717, %v713
    %v998 = vpack.c.b16 %v718, %v714
    %v999 = vpack.c.b16 %v719, %v715
    %v1000 = vpack.c.b16 %v720, %v716
    %v1001 = vpack.c.b16 %v725, %v721
    %v1002 = vpack.c.b16 %v726, %v722
    %v1003 = vpack.c.b16 %v727, %v723
    %v1004 = vpack.c.b16 %v728, %v724
    %v1005 = vpack.c.b16 %v733, %v729
    %v1006 = vpack.c.b16 %v734, %v730
    %v1007 = vpack.c.b16 %v735, %v731
    %v1008 = vpack.c.b16 %v736, %v732
    %v1009 = vpack.c.b16 %v741, %v737
    %v1010 = vpack.c.b16 %v742, %v738
    %v1011 = vpack.c.b16 %v743, %v739
    %v1012 = vpack.c.b16 %v744, %v740
    %v1013 = vpack.c.b16 %v749, %v745
    %v1014 = vpack.c.b16 %v750, %v746
    %v1015 = vpack.c.b16 %v751, %v747
    %v1016 = vpack.c.b16 %v752, %v748
    %v1017 = vpack.c.b16 %v757, %v753
    %v1018 = vpack.c.b16 %v758, %v754
    %v1019 = vpack.c.b16 %v759, %v755
    %v1020 = vpack.c.b16 %v760, %v756
    %v1021 = vpack.c.b16 %v765, %v761
    %v1022 = vpack.c.b16 %v766, %v762
    %v1023 = vpack.c.b16 %v767, %v763
    %v1024 = vpack.c.b16 %v768, %v764
    %v1025 = vpack.c.b16 %v773, %v769
    %v1026 = vpack.c.b16 %v774, %v770
    %v1027 = vpack.c.b16 %v775, %v771
    %v1028 = vpack.c.b16 %v776, %v772
    %v1029 = vpack.c.b16 %v781, %v777
    %v1030 = vpack.c.b16 %v782, %v778
    %v1031 = vpack.c.b16 %v783, %v779
    %v1032 = vpack.c.b16 %v784, %v780
    %v1033 = vpack.c.b16 %v789, %v785
    %v1034 = vpack.c.b16 %v790, %v786
    %v1035 = vpack.c.b16 %v791, %v787
    %v1036 = vpack.c.b16 %v792, %v788
    %v1037 = vpack.c.b16 %v797, %v793
    %v1038 = vpack.c.b16 %v798, %v794
    %v1039 = vpack.c.b16 %v799, %v795
    %v1040 = vpack.c.b16 %v800, %v796
    %v1041 = vpack.c.b16 %v805, %v801
    %v1042 = vpack.c.b16 %v806, %v802
    %v1043 = vpack.c.b16 %v807, %v803
    %v1044 = vpack.c.b16 %v808, %v804
    %v1045 = vpack.c.b16 %v813, %v809
    %v1046 = vpack.c.b16 %v814, %v810
    %v1047 = vpack.c.b16 %v815, %v811
    %v1048 = vpack.c.b16 %v816, %v812
    %v1049 = vpack.c.b16 %v821, %v817
    %v1050 = vpack.c.b16 %v822, %v818
    %v1051 = vpack.c.b16 %v823, %v819
    %v1052 = vpack.c.b16 %v824, %v820
    %v1053 = vpack.c.b16 %v829, %v825
    %v1054 = vpack.c.b16 %v830, %v826
    %v1055 = vpack.c.b16 %v831, %v827
    %v1056 = vpack.c.b16 %v832, %v828
    %v1057 = vpack.c.b16 %v837, %v833
    %v1058 = vpack.c.b16 %v838, %v834
    %v1059 = vpack.c.b16 %v839, %v835
    %v1060 = vpack.c.b16 %v840, %v836
    %v1061 = vpack.c.b16 %v845, %v841
    %v1062 = vpack.c.b16 %v846, %v842
    %v1063 = vpack.c.b16 %v847, %v843
    %v1064 = vpack.c.b16 %v848, %v844
    %v1065 = vpack.c.b16 %v853, %v849
    %v1066 = vpack.c.b16 %v854, %v850
    %v1067 = vpack.c.b16 %v855, %v851
    %v1068 = vpack.c.b16 %v856, %v852
    %v1069 = vpack.c.b16 %v861, %v857
    %v1070 = vpack.c.b16 %v862, %v858
    %v1071 = vpack.c.b16 %v863, %v859
    %v1072 = vpack.c.b16 %v864, %v860
    %v1073 = vpack.c.b16 %v869, %v865
    %v1074 = vpack.c.b16 %v870, %v866
    %v1075 = vpack.c.b16 %v871, %v867
    %v1076 = vpack.c.b16 %v872, %v868
    %v1077 = vpack.c.b16 %v877, %v873
    %v1078 = vpack.c.b16 %v878, %v874
    %v1079 = vpack.c.b16 %v879, %v875
    %v1080 = vpack.c.b16 %v880, %v876
    %v1081 = vpack.c.b16 %v885, %v881
    %v1082 = vpack.c.b16 %v886, %v882
    %v1083 = vpack.c.b16 %v887, %v883
    %v1084 = vpack.c.b16 %v888, %v884
    %v1085 = vpack.c.b16 %v893, %v889
    %v1086 = vpack.c.b16 %v894, %v890
    %v1087 = vpack.c.b16 %v895, %v891
    %v1088 = vpack.c.b16 %v896, %v892
    %1281 = vmatprep.subr.bf16.mxu0 %v926
    %1282 = vmatpush1.bf16.msra.mxu0 %v925
    %1283 = vmatprep.subr.bf16.mxu0 %v922
    %1284 = vmatpush1.bf16.msra.mxu0 %v921
    %1285 = vmatprep.subr.bf16.mxu0 %v918
    %1286 = vmatpush1.bf16.msra.mxu0 %v917
    %1287 = vmatprep.subr.bf16.mxu0 %v914
    %1288 = vmatpush1.bf16.msra.mxu0 %v913
    %1289 = vmatprep.subr.bf16.mxu0 %v910
    %1290 = vmatpush1.bf16.msra.mxu0 %v909
    %1291 = vmatprep.subr.bf16.mxu0 %v906
    %1292 = vmatpush1.bf16.msra.mxu0 %v905
    %1293 = vmatprep.subr.bf16.mxu0 %v902
    %1294 = vmatpush1.bf16.msra.mxu0 %v901
    %1295 = vmatprep.subr.bf16.mxu0 %v898
    %1296 = vmatpush1.bf16.msra.mxu0 %v897
    %1297 = vmatprep.subr.bf16.mxu0 %v958
    %1298 = vmatpush2.bf16.msra.mxu0 %v957
    %1299 = vmatprep.subr.bf16.mxu0 %v954
    %1300 = vmatpush2.bf16.msra.mxu0 %v953
    %1301 = vmatprep.subr.bf16.mxu0 %v950
    %1302 = vmatpush2.bf16.msra.mxu0 %v949
    %1303 = vmatprep.subr.bf16.mxu0 %v946
    %1304 = vmatpush2.bf16.msra.mxu0 %v945
    %1305 = vmatprep.subr.bf16.mxu0 %v942
    %1306 = vmatpush2.bf16.msra.mxu0 %v941
    %1307 = vmatprep.subr.bf16.mxu0 %v938
    %1308 = vmatpush2.bf16.msra.mxu0 %v937
    %1309 = vmatprep.subr.bf16.mxu0 %v934
    %1310 = vmatpush2.bf16.msra.mxu0 %v933
    %1311 = vmatprep.subr.bf16.mxu0 %v930
    %1312 = vmatpush2.bf16.msra.mxu0 %v929
    %1313 = vmatprep.mubr.bf16.mxu0 %v305
    %1314 = vmatmul.mubr.bf16.gmra.mxu0 %v297
    %v1315 = vpop.f32.mrf.mxu0
    %v1316 = vadd.f32 %v271, %v1315
    %v1317 = vpop.f32.mrf.mxu0
    %v1318 = vadd.f32 %v275, %v1317
    %v1319 = vpop.f32.mrf.mxu0
    %v1320 = vpop.f32.mrf.mxu0
    %1321 = vdwg.mxu0
    %1322 = vmatprep.subr.bf16.mxu0 %v990
    %1323 = vmatpush1.bf16.msra.mxu0 %v989
    %1324 = vmatprep.subr.bf16.mxu0 %v986
    %1325 = vmatpush1.bf16.msra.mxu0 %v985
    %1326 = vmatprep.subr.bf16.mxu0 %v982
    %1327 = vmatpush1.bf16.msra.mxu0 %v981
    %1328 = vmatprep.subr.bf16.mxu0 %v978
    %1329 = vmatpush1.bf16.msra.mxu0 %v977
    %1330 = vmatprep.subr.bf16.mxu0 %v974
    %1331 = vmatpush1.bf16.msra.mxu0 %v973
    %1332 = vmatprep.subr.bf16.mxu0 %v970
    %1333 = vmatpush1.bf16.msra.mxu0 %v969
    %1334 = vmatprep.subr.bf16.mxu0 %v966
    %1335 = vmatpush1.bf16.msra.mxu0 %v965
    %1336 = vmatprep.subr.bf16.mxu0 %v962
    %1337 = vmatpush1.bf16.msra.mxu0 %v961
    %1338 = vmatprep.subr.bf16.mxu0 %v1022
    %1339 = vmatpush2.bf16.msra.mxu0 %v1021
    %1340 = vmatprep.subr.bf16.mxu0 %v1018
    %1341 = vmatpush2.bf16.msra.mxu0 %v1017
    %1342 = vmatprep.subr.bf16.mxu0 %v1014
    %1343 = vmatpush2.bf16.msra.mxu0 %v1013
    %1344 = vmatprep.subr.bf16.mxu0 %v1010
    %1345 = vmatpush2.bf16.msra.mxu0 %v1009
    %1346 = vmatprep.subr.bf16.mxu0 %v1006
    %1347 = vmatpush2.bf16.msra.mxu0 %v1005
    %1348 = vmatprep.subr.bf16.mxu0 %v1002
    %1349 = vmatpush2.bf16.msra.mxu0 %v1001
    %1350 = vmatprep.subr.bf16.mxu0 %v998
    %1351 = vmatpush2.bf16.msra.mxu0 %v997
    %1352 = vmatprep.subr.bf16.mxu0 %v994
    %1353 = vmatpush2.bf16.msra.mxu0 %v993
    %1354 = vmatprep.mubr.bf16.mxu0 %v306
    %1355 = vmatmul.mubr.bf16.gmra.mxu0 %v304
    %v1356 = vpop.f32.mrf.mxu0
    %v1357 = vadd.f32 %v1316, %v1356
    %v1358 = vpop.f32.mrf.mxu0
    %v1359 = vadd.f32 %v1318, %v1358
    %v1360 = vpop.f32.mrf.mxu0
    %v1361 = vpop.f32.mrf.mxu0
    %1362 = vdwg.mxu0
    %1363 = vmatprep.subr.bf16.mxu0 %v1054
    %1364 = vmatpush1.bf16.msra.mxu0 %v1053
    %1365 = vmatprep.subr.bf16.mxu0 %v1050
    %1366 = vmatpush1.bf16.msra.mxu0 %v1049
    %1367 = vmatprep.subr.bf16.mxu0 %v1046
    %1368 = vmatpush1.bf16.msra.mxu0 %v1045
    %1369 = vmatprep.subr.bf16.mxu0 %v1042
    %1370 = vmatpush1.bf16.msra.mxu0 %v1041
    %1371 = vmatprep.subr.bf16.mxu0 %v1038
    %1372 = vmatpush1.bf16.msra.mxu0 %v1037
    %1373 = vmatprep.subr.bf16.mxu0 %v1034
    %1374 = vmatpush1.bf16.msra.mxu0 %v1033
    %1375 = vmatprep.subr.bf16.mxu0 %v1030
    %1376 = vmatpush1.bf16.msra.mxu0 %v1029
    %1377 = vmatprep.subr.bf16.mxu0 %v1026
    %1378 = vmatpush1.bf16.msra.mxu0 %v1025
    %1379 = vmatprep.subr.bf16.mxu0 %v1086
    %1380 = vmatpush2.bf16.msra.mxu0 %v1085
    %1381 = vmatprep.subr.bf16.mxu0 %v1082
    %1382 = vmatpush2.bf16.msra.mxu0 %v1081
    %1383 = vmatprep.subr.bf16.mxu0 %v1078
    %1384 = vmatpush2.bf16.msra.mxu0 %v1077
    %1385 = vmatprep.subr.bf16.mxu0 %v1074
    %1386 = vmatpush2.bf16.msra.mxu0 %v1073
    %1387 = vmatprep.subr.bf16.mxu0 %v1070
    %1388 = vmatpush2.bf16.msra.mxu0 %v1069
    %1389 = vmatprep.subr.bf16.mxu0 %v1066
    %1390 = vmatpush2.bf16.msra.mxu0 %v1065
    %1391 = vmatprep.subr.bf16.mxu0 %v1062
    %1392 = vmatpush2.bf16.msra.mxu0 %v1061
    %1393 = vmatprep.subr.bf16.mxu0 %v1058
    %1394 = vmatpush2.bf16.msra.mxu0 %v1057
    %1395 = vmatprep.mubr.bf16.mxu0 %v314
    %1396 = vmatmul.mubr.bf16.gmra.mxu0 %v313
    %v1397 = vpop.f32.mrf.mxu0
    %v1398 = vadd.f32 %v1357, %v1397
    %v1399 = vpop.f32.mrf.mxu0
    %v1400 = vadd.f32 %v1359, %v1399
    %v1401 = vpop.f32.mrf.mxu0
    %v1402 = vpop.f32.mrf.mxu0
    %1403 = vdwg.mxu0
    %1404 = vmatprep.subr.bf16.mxu0 %v928
    %1405 = vmatpush1.bf16.msra.mxu0 %v927
    %1406 = vmatprep.subr.bf16.mxu0 %v924
    %1407 = vmatpush1.bf16.msra.mxu0 %v923
    %1408 = vmatprep.subr.bf16.mxu0 %v920
    %1409 = vmatpush1.bf16.msra.mxu0 %v919
    %1410 = vmatprep.subr.bf16.mxu0 %v916
    %1411 = vmatpush1.bf16.msra.mxu0 %v915
    %1412 = vmatprep.subr.bf16.mxu0 %v912
    %1413 = vmatpush1.bf16.msra.mxu0 %v911
    %1414 = vmatprep.subr.bf16.mxu0 %v908
    %1415 = vmatpush1.bf16.msra.mxu0 %v907
    %1416 = vmatprep.subr.bf16.mxu0 %v904
    %1417 = vmatpush1.bf16.msra.mxu0 %v903
    %1418 = vmatprep.subr.bf16.mxu0 %v900
    %1419 = vmatpush1.bf16.msra.mxu0 %v899
    %1420 = vmatprep.subr.bf16.mxu0 %v960
    %1421 = vmatpush2.bf16.msra.mxu0 %v959
    %1422 = vmatprep.subr.bf16.mxu0 %v956
    %1423 = vmatpush2.bf16.msra.mxu0 %v955
    %1424 = vmatprep.subr.bf16.mxu0 %v952
    %1425 = vmatpush2.bf16.msra.mxu0 %v951
    %1426 = vmatprep.subr.bf16.mxu0 %v948
    %1427 = vmatpush2.bf16.msra.mxu0 %v947
    %1428 = vmatprep.subr.bf16.mxu0 %v944
    %1429 = vmatpush2.bf16.msra.mxu0 %v943
    %1430 = vmatprep.subr.bf16.mxu0 %v940
    %1431 = vmatpush2.bf16.msra.mxu0 %v939
    %1432 = vmatprep.subr.bf16.mxu0 %v936
    %1433 = vmatpush2.bf16.msra.mxu0 %v935
    %1434 = vmatprep.subr.bf16.mxu0 %v932
    %1435 = vmatpush2.bf16.msra.mxu0 %v931
    %1436 = vmatprep.mubr.bf16.mxu0 %v305
    %1437 = vmatmul.mubr.bf16.gmra.mxu0 %v297
    %v1438 = vpop.f32.mrf.mxu0
    %v1439 = vadd.f32 %v279, %v1438
    %v1440 = vpop.f32.mrf.mxu0
    %v1441 = vadd.f32 %v283, %v1440
    %v1442 = vpop.f32.mrf.mxu0
    %v1443 = vpop.f32.mrf.mxu0
    %1444 = vdwg.mxu0
    %1445 = vmatprep.subr.bf16.mxu0 %v992
    %1446 = vmatpush1.bf16.msra.mxu0 %v991
    %1447 = vmatprep.subr.bf16.mxu0 %v988
    %1448 = vmatpush1.bf16.msra.mxu0 %v987
    %1449 = vmatprep.subr.bf16.mxu0 %v984
    %1450 = vmatpush1.bf16.msra.mxu0 %v983
    %1451 = vmatprep.subr.bf16.mxu0 %v980
    %1452 = vmatpush1.bf16.msra.mxu0 %v979
    %1453 = vmatprep.subr.bf16.mxu0 %v976
    %1454 = vmatpush1.bf16.msra.mxu0 %v975
    %1455 = vmatprep.subr.bf16.mxu0 %v972
    %1456 = vmatpush1.bf16.msra.mxu0 %v971
    %1457 = vmatprep.subr.bf16.mxu0 %v968
    %1458 = vmatpush1.bf16.msra.mxu0 %v967
    %1459 = vmatprep.subr.bf16.mxu0 %v964
    %1460 = vmatpush1.bf16.msra.mxu0 %v963
    %1461 = vmatprep.subr.bf16.mxu0 %v1024
    %1462 = vmatpush2.bf16.msra.mxu0 %v1023
    %1463 = vmatprep.subr.bf16.mxu0 %v1020
    %1464 = vmatpush2.bf16.msra.mxu0 %v1019
    %1465 = vmatprep.subr.bf16.mxu0 %v1016
    %1466 = vmatpush2.bf16.msra.mxu0 %v1015
    %1467 = vmatprep.subr.bf16.mxu0 %v1012
    %1468 = vmatpush2.bf16.msra.mxu0 %v1011
    %1469 = vmatprep.subr.bf16.mxu0 %v1008
    %1470 = vmatpush2.bf16.msra.mxu0 %v1007
    %1471 = vmatprep.subr.bf16.mxu0 %v1004
    %1472 = vmatpush2.bf16.msra.mxu0 %v1003
    %1473 = vmatprep.subr.bf16.mxu0 %v1000
    %1474 = vmatpush2.bf16.msra.mxu0 %v999
    %1475 = vmatprep.subr.bf16.mxu0 %v996
    %1476 = vmatpush2.bf16.msra.mxu0 %v995
    %1477 = vmatprep.mubr.bf16.mxu0 %v306
    %1478 = vmatmul.mubr.bf16.gmra.mxu0 %v304
    %v1479 = vpop.f32.mrf.mxu0
    %v1480 = vadd.f32 %v1439, %v1479
    %v1481 = vpop.f32.mrf.mxu0
    %v1482 = vadd.f32 %v1441, %v1481
    %v1483 = vpop.f32.mrf.mxu0
    %v1484 = vpop.f32.mrf.mxu0
    %1485 = vdwg.mxu0
    %1486 = vmatprep.subr.bf16.mxu0 %v1056
    %1487 = vmatpush1.bf16.msra.mxu0 %v1055
    %1488 = vmatprep.subr.bf16.mxu0 %v1052
    %1489 = vmatpush1.bf16.msra.mxu0 %v1051
    %1490 = vmatprep.subr.bf16.mxu0 %v1048
    %1491 = vmatpush1.bf16.msra.mxu0 %v1047
    %1492 = vmatprep.subr.bf16.mxu0 %v1044
    %1493 = vmatpush1.bf16.msra.mxu0 %v1043
    %1494 = vmatprep.subr.bf16.mxu0 %v1040
    %1495 = vmatpush1.bf16.msra.mxu0 %v1039
    %1496 = vmatprep.subr.bf16.mxu0 %v1036
    %1497 = vmatpush1.bf16.msra.mxu0 %v1035
    %1498 = vmatprep.subr.bf16.mxu0 %v1032
    %1499 = vmatpush1.bf16.msra.mxu0 %v1031
    %1500 = vmatprep.subr.bf16.mxu0 %v1028
    %1501 = vmatpush1.bf16.msra.mxu0 %v1027
    %1502 = vmatprep.subr.bf16.mxu0 %v1088
    %1503 = vmatpush2.bf16.msra.mxu0 %v1087
    %1504 = vmatprep.subr.bf16.mxu0 %v1084
    %1505 = vmatpush2.bf16.msra.mxu0 %v1083
    %1506 = vmatprep.subr.bf16.mxu0 %v1080
    %1507 = vmatpush2.bf16.msra.mxu0 %v1079
    %1508 = vmatprep.subr.bf16.mxu0 %v1076
    %1509 = vmatpush2.bf16.msra.mxu0 %v1075
    %1510 = vmatprep.subr.bf16.mxu0 %v1072
    %1511 = vmatpush2.bf16.msra.mxu0 %v1071
    %1512 = vmatprep.subr.bf16.mxu0 %v1068
    %1513 = vmatpush2.bf16.msra.mxu0 %v1067
    %1514 = vmatprep.subr.bf16.mxu0 %v1064
    %1515 = vmatpush2.bf16.msra.mxu0 %v1063
    %1516 = vmatprep.subr.bf16.mxu0 %v1060
    %1517 = vmatpush2.bf16.msra.mxu0 %v1059
    %1518 = vmatprep.mubr.bf16.mxu0 %v314
    %1519 = vmatmul.mubr.bf16.gmra.mxu0 %v313
    %v1520 = vpop.f32.mrf.mxu0
    %v1521 = vadd.f32 %v1480, %v1520
    %v1522 = vpop.f32.mrf.mxu0
    %v1523 = vadd.f32 %v1482, %v1522
    %v1524 = vpop.f32.mrf.mxu0
    %v1525 = vpop.f32.mrf.mxu0
    %1526 = vdwg.mxu0
    %v1527 = vmax.f32 %v1398, 0.0
    %v1528 = vmax.f32 %v1400, 0.0
    %v1529 = vmax.f32 %v1521, 0.0
    %v1530 = vmax.f32 %v1523, 0.0
    %v1531 = vpack.c.bf16 %v1527, %v1527
    %v1532 = vpack.c.bf16 %v1528, %v1528
    %v1533 = vpack.c.bf16 %v1529, %v1529
    %v1534 = vpack.c.bf16 %v1530, %v1530
    %v1535 = vld [vmem:[%s5] sm:$0xff]
    %v1536 = vld [vmem:[%s5 + $0x8] sm:$0xff]
    %v1537 = vld [vmem:[%s5 + $0x10] sm:$0xff]
    %v1538 = vld [vmem:[%s5 + $0x18] sm:$0xff]
    %v1539 = vld [vmem:[%s5 + $0x20] sm:$0xff]
    %v1540 = vld [vmem:[%s5 + $0x28] sm:$0xff]
    %v1541 = vld [vmem:[%s5 + $0x30] sm:$0xff]
    %v1542 = vld [vmem:[%s5 + $0x38] sm:$0xff]
    %v1543 = vld [vmem:[%s5 + $0x40] sm:$0xff]
    %v1544 = vld [vmem:[%s5 + $0x48] sm:$0xff]
    %v1545 = vld [vmem:[%s5 + $0x50] sm:$0xff]
    %v1546 = vld [vmem:[%s5 + $0x58] sm:$0xff]
    %v1547 = vld [vmem:[%s5 + $0x60] sm:$0xff]
    %v1548 = vld [vmem:[%s5 + $0x68] sm:$0xff]
    %v1549 = vld [vmem:[%s5 + $0x70] sm:$0xff]
    %v1550 = vld [vmem:[%s5 + $0x78] sm:$0xff]
    %v1551 = vld [vmem:[%s5 + $0x80] sm:$0xff]
    %v1552 = vld [vmem:[%s5 + $0x88] sm:$0xff]
    %v1553 = vld [vmem:[%s5 + $0x90] sm:$0xff]
    %v1554 = vld [vmem:[%s5 + $0x98] sm:$0xff]
    %v1555 = vld [vmem:[%s5 + $0xa0] sm:$0xff]
    %v1556 = vld [vmem:[%s5 + $0xa8] sm:$0xff]
    %v1557 = vld [vmem:[%s5 + $0xb0] sm:$0xff]
    %v1558 = vld [vmem:[%s5 + $0xb8] sm:$0xff]
    %v1559 = vld [vmem:[%s5 + $0xc0] sm:$0xff]
    %v1560 = vld [vmem:[%s5 + $0xc8] sm:$0xff]
    %v1561 = vld [vmem:[%s5 + $0xd0] sm:$0xff]
    %v1562 = vld [vmem:[%s5 + $0xd8] sm:$0xff]
    %v1563 = vld [vmem:[%s5 + $0xe0] sm:$0xff]
    %v1564 = vld [vmem:[%s5 + $0xe8] sm:$0xff]
    %v1565 = vld [vmem:[%s5 + $0xf0] sm:$0xff]
    %v1566 = vld [vmem:[%s5 + $0xf8] sm:$0xff]
    %v1567 = vld [vmem:[%s5 + $0x100] sm:$0xff]
    %v1568 = vld [vmem:[%s5 + $0x108] sm:$0xff]
    %v1569 = vld [vmem:[%s5 + $0x110] sm:$0xff]
    %v1570 = vld [vmem:[%s5 + $0x118] sm:$0xff]
    %v1571 = vld [vmem:[%s5 + $0x120] sm:$0xff]
    %v1572 = vld [vmem:[%s5 + $0x128] sm:$0xff]
    %v1573 = vld [vmem:[%s5 + $0x130] sm:$0xff]
    %v1574 = vld [vmem:[%s5 + $0x138] sm:$0xff]
    %v1575 = vld [vmem:[%s5 + $0x140] sm:$0xff]
    %v1576 = vld [vmem:[%s5 + $0x148] sm:$0xff]
    %v1577 = vld [vmem:[%s5 + $0x150] sm:$0xff]
    %v1578 = vld [vmem:[%s5 + $0x158] sm:$0xff]
    %v1579 = vld [vmem:[%s5 + $0x160] sm:$0xff]
    %v1580 = vld [vmem:[%s5 + $0x168] sm:$0xff]
    %v1581 = vld [vmem:[%s5 + $0x170] sm:$0xff]
    %v1582 = vld [vmem:[%s5 + $0x178] sm:$0xff]
    %v1583 = vld [vmem:[%s5 + $0x180] sm:$0xff]
    %v1584 = vld [vmem:[%s5 + $0x188] sm:$0xff]
    %v1585 = vld [vmem:[%s5 + $0x190] sm:$0xff]
    %v1586 = vld [vmem:[%s5 + $0x198] sm:$0xff]
    %v1587 = vld [vmem:[%s5 + $0x1a0] sm:$0xff]
    %v1588 = vld [vmem:[%s5 + $0x1a8] sm:$0xff]
    %v1589 = vld [vmem:[%s5 + $0x1b0] sm:$0xff]
    %v1590 = vld [vmem:[%s5 + $0x1b8] sm:$0xff]
    %v1591 = vld [vmem:[%s5 + $0x1c0] sm:$0xff]
    %v1592 = vld [vmem:[%s5 + $0x1c8] sm:$0xff]
    %v1593 = vld [vmem:[%s5 + $0x1d0] sm:$0xff]
    %v1594 = vld [vmem:[%s5 + $0x1d8] sm:$0xff]
    %v1595 = vld [vmem:[%s5 + $0x1e0] sm:$0xff]
    %v1596 = vld [vmem:[%s5 + $0x1e8] sm:$0xff]
    %v1597 = vld [vmem:[%s5 + $0x1f0] sm:$0xff]
    %v1598 = vld [vmem:[%s5 + $0x1f8] sm:$0xff]
    %v1599 = vld [vmem:[%s6] sm:$0x3]
    %v1601 = vlaneseq
    %v1602 = vshrl.u32 %v1601, 7
    %v1603 = vsub.s32 0, %v1602
    %v1604 = vrot.slane %v1599, %v1603
    %v1605 = vlaneseq
    %v1606 = vshrl.u32 %v1605, 7
    %v1607 = vsub.s32 1, %v1606
    %v1608 = vrot.slane %v1599, %v1607
    %v1675 = vunpack.c.l.b16 %v1535
    %v1676 = vunpack.c.h.b16 %v1535
    %v1677 = vunpack.c.l.b16 %v1536
    %v1678 = vunpack.c.h.b16 %v1536
    %v1679 = vunpack.c.l.b16 %v1537
    %v1680 = vunpack.c.h.b16 %v1537
    %v1681 = vunpack.c.l.b16 %v1538
    %v1682 = vunpack.c.h.b16 %v1538
    %v1683 = vunpack.c.l.b16 %v1539
    %v1684 = vunpack.c.h.b16 %v1539
    %v1685 = vunpack.c.l.b16 %v1540
    %v1686 = vunpack.c.h.b16 %v1540
    %v1687 = vunpack.c.l.b16 %v1541
    %v1688 = vunpack.c.h.b16 %v1541
    %v1689 = vunpack.c.l.b16 %v1542
    %v1690 = vunpack.c.h.b16 %v1542
    %v1691 = vunpack.c.l.b16 %v1543
    %v1692 = vunpack.c.h.b16 %v1543
    %v1693 = vunpack.c.l.b16 %v1544
    %v1694 = vunpack.c.h.b16 %v1544
    %v1695 = vunpack.c.l.b16 %v1545
    %v1696 = vunpack.c.h.b16 %v1545
    %v1697 = vunpack.c.l.b16 %v1546
    %v1698 = vunpack.c.h.b16 %v1546
    %v1699 = vunpack.c.l.b16 %v1547
    %v1700 = vunpack.c.h.b16 %v1547
    %v1701 = vunpack.c.l.b16 %v1548
    %v1702 = vunpack.c.h.b16 %v1548
    %v1703 = vunpack.c.l.b16 %v1549
    %v1704 = vunpack.c.h.b16 %v1549
    %v1705 = vunpack.c.l.b16 %v1550
    %v1706 = vunpack.c.h.b16 %v1550
    %v1707 = vunpack.c.l.b16 %v1551
    %v1708 = vunpack.c.h.b16 %v1551
    %v1709 = vunpack.c.l.b16 %v1552
    %v1710 = vunpack.c.h.b16 %v1552
    %v1711 = vunpack.c.l.b16 %v1553
    %v1712 = vunpack.c.h.b16 %v1553
    %v1713 = vunpack.c.l.b16 %v1554
    %v1714 = vunpack.c.h.b16 %v1554
    %v1715 = vunpack.c.l.b16 %v1555
    %v1716 = vunpack.c.h.b16 %v1555
    %v1717 = vunpack.c.l.b16 %v1556
    %v1718 = vunpack.c.h.b16 %v1556
    %v1719 = vunpack.c.l.b16 %v1557
    %v1720 = vunpack.c.h.b16 %v1557
    %v1721 = vunpack.c.l.b16 %v1558
    %v1722 = vunpack.c.h.b16 %v1558
    %v1723 = vunpack.c.l.b16 %v1559
    %v1724 = vunpack.c.h.b16 %v1559
    %v1725 = vunpack.c.l.b16 %v1560
    %v1726 = vunpack.c.h.b16 %v1560
    %v1727 = vunpack.c.l.b16 %v1561
    %v1728 = vunpack.c.h.b16 %v1561
    %v1729 = vunpack.c.l.b16 %v1562
    %v1730 = vunpack.c.h.b16 %v1562
    %v1731 = vunpack.c.l.b16 %v1563
    %v1732 = vunpack.c.h.b16 %v1563
    %v1733 = vunpack.c.l.b16 %v1564
    %v1734 = vunpack.c.h.b16 %v1564
    %v1735 = vunpack.c.l.b16 %v1565
    %v1736 = vunpack.c.h.b16 %v1565
    %v1737 = vunpack.c.l.b16 %v1566
    %v1738 = vunpack.c.h.b16 %v1566
    %v1739 = vunpack.c.l.b16 %v1567
    %v1740 = vunpack.c.h.b16 %v1567
    %v1741 = vunpack.c.l.b16 %v1568
    %v1742 = vunpack.c.h.b16 %v1568
    %v1743 = vunpack.c.l.b16 %v1569
    %v1744 = vunpack.c.h.b16 %v1569
    %v1745 = vunpack.c.l.b16 %v1570
    %v1746 = vunpack.c.h.b16 %v1570
    %v1747 = vunpack.c.l.b16 %v1571
    %v1748 = vunpack.c.h.b16 %v1571
    %v1749 = vunpack.c.l.b16 %v1572
    %v1750 = vunpack.c.h.b16 %v1572
    %v1751 = vunpack.c.l.b16 %v1573
    %v1752 = vunpack.c.h.b16 %v1573
    %v1753 = vunpack.c.l.b16 %v1574
    %v1754 = vunpack.c.h.b16 %v1574
    %v1755 = vunpack.c.l.b16 %v1575
    %v1756 = vunpack.c.h.b16 %v1575
    %v1757 = vunpack.c.l.b16 %v1576
    %v1758 = vunpack.c.h.b16 %v1576
    %v1759 = vunpack.c.l.b16 %v1577
    %v1760 = vunpack.c.h.b16 %v1577
    %v1761 = vunpack.c.l.b16 %v1578
    %v1762 = vunpack.c.h.b16 %v1578
    %v1763 = vunpack.c.l.b16 %v1579
    %v1764 = vunpack.c.h.b16 %v1579
    %v1765 = vunpack.c.l.b16 %v1580
    %v1766 = vunpack.c.h.b16 %v1580
    %v1767 = vunpack.c.l.b16 %v1581
    %v1768 = vunpack.c.h.b16 %v1581
    %v1769 = vunpack.c.l.b16 %v1582
    %v1770 = vunpack.c.h.b16 %v1582
    %v1771 = vunpack.c.l.b16 %v1583
    %v1772 = vunpack.c.h.b16 %v1583
    %v1773 = vunpack.c.l.b16 %v1584
    %v1774 = vunpack.c.h.b16 %v1584
    %v1775 = vunpack.c.l.b16 %v1585
    %v1776 = vunpack.c.h.b16 %v1585
    %v1777 = vunpack.c.l.b16 %v1586
    %v1778 = vunpack.c.h.b16 %v1586
    %v1779 = vunpack.c.l.b16 %v1587
    %v1780 = vunpack.c.h.b16 %v1587
    %v1781 = vunpack.c.l.b16 %v1588
    %v1782 = vunpack.c.h.b16 %v1588
    %v1783 = vunpack.c.l.b16 %v1589
    %v1784 = vunpack.c.h.b16 %v1589
    %v1785 = vunpack.c.l.b16 %v1590
    %v1786 = vunpack.c.h.b16 %v1590
    %v1787 = vunpack.c.l.b16 %v1591
    %v1788 = vunpack.c.h.b16 %v1591
    %v1789 = vunpack.c.l.b16 %v1592
    %v1790 = vunpack.c.h.b16 %v1592
    %v1791 = vunpack.c.l.b16 %v1593
    %v1792 = vunpack.c.h.b16 %v1593
    %v1793 = vunpack.c.l.b16 %v1594
    %v1794 = vunpack.c.h.b16 %v1594
    %v1795 = vunpack.c.l.b16 %v1595
    %v1796 = vunpack.c.h.b16 %v1595
    %v1797 = vunpack.c.l.b16 %v1596
    %v1798 = vunpack.c.h.b16 %v1596
    %v1799 = vunpack.c.l.b16 %v1597
    %v1800 = vunpack.c.h.b16 %v1597
    %v1801 = vunpack.c.l.b16 %v1598
    %v1802 = vunpack.c.h.b16 %v1598
    %v1803 = vpack.c.b16 %v1677, %v1675
    %v1804 = vpack.c.b16 %v1678, %v1676
    %v1805 = vpack.c.b16 %v1681, %v1679
    %v1806 = vpack.c.b16 %v1682, %v1680
    %v1807 = vpack.c.b16 %v1685, %v1683
    %v1808 = vpack.c.b16 %v1686, %v1684
    %v1809 = vpack.c.b16 %v1689, %v1687
    %v1810 = vpack.c.b16 %v1690, %v1688
    %v1811 = vpack.c.b16 %v1693, %v1691
    %v1812 = vpack.c.b16 %v1694, %v1692
    %v1813 = vpack.c.b16 %v1697, %v1695
    %v1814 = vpack.c.b16 %v1698, %v1696
    %v1815 = vpack.c.b16 %v1701, %v1699
    %v1816 = vpack.c.b16 %v1702, %v1700
    %v1817 = vpack.c.b16 %v1705, %v1703
    %v1818 = vpack.c.b16 %v1706, %v1704
    %v1819 = vpack.c.b16 %v1709, %v1707
    %v1820 = vpack.c.b16 %v1710, %v1708
    %v1821 = vpack.c.b16 %v1713, %v1711
    %v1822 = vpack.c.b16 %v1714, %v1712
    %v1823 = vpack.c.b16 %v1717, %v1715
    %v1824 = vpack.c.b16 %v1718, %v1716
    %v1825 = vpack.c.b16 %v1721, %v1719
    %v1826 = vpack.c.b16 %v1722, %v1720
    %v1827 = vpack.c.b16 %v1725, %v1723
    %v1828 = vpack.c.b16 %v1726, %v1724
    %v1829 = vpack.c.b16 %v1729, %v1727
    %v1830 = vpack.c.b16 %v1730, %v1728
    %v1831 = vpack.c.b16 %v1733, %v1731
    %v1832 = vpack.c.b16 %v1734, %v1732
    %v1833 = vpack.c.b16 %v1737, %v1735
    %v1834 = vpack.c.b16 %v1738, %v1736
    %v1835 = vpack.c.b16 %v1741, %v1739
    %v1836 = vpack.c.b16 %v1742, %v1740
    %v1837 = vpack.c.b16 %v1745, %v1743
    %v1838 = vpack.c.b16 %v1746, %v1744
    %v1839 = vpack.c.b16 %v1749, %v1747
    %v1840 = vpack.c.b16 %v1750, %v1748
    %v1841 = vpack.c.b16 %v1753, %v1751
    %v1842 = vpack.c.b16 %v1754, %v1752
    %v1843 = vpack.c.b16 %v1757, %v1755
    %v1844 = vpack.c.b16 %v1758, %v1756
    %v1845 = vpack.c.b16 %v1761, %v1759
    %v1846 = vpack.c.b16 %v1762, %v1760
    %v1847 = vpack.c.b16 %v1765, %v1763
    %v1848 = vpack.c.b16 %v1766, %v1764
    %v1849 = vpack.c.b16 %v1769, %v1767
    %v1850 = vpack.c.b16 %v1770, %v1768
    %v1851 = vpack.c.b16 %v1773, %v1771
    %v1852 = vpack.c.b16 %v1774, %v1772
    %v1853 = vpack.c.b16 %v1777, %v1775
    %v1854 = vpack.c.b16 %v1778, %v1776
    %v1855 = vpack.c.b16 %v1781, %v1779
    %v1856 = vpack.c.b16 %v1782, %v1780
    %v1857 = vpack.c.b16 %v1785, %v1783
    %v1858 = vpack.c.b16 %v1786, %v1784
    %v1859 = vpack.c.b16 %v1789, %v1787
    %v1860 = vpack.c.b16 %v1790, %v1788
    %v1861 = vpack.c.b16 %v1793, %v1791
    %v1862 = vpack.c.b16 %v1794, %v1792
    %v1863 = vpack.c.b16 %v1797, %v1795
    %v1864 = vpack.c.b16 %v1798, %v1796
    %v1865 = vpack.c.b16 %v1801, %v1799
    %v1866 = vpack.c.b16 %v1802, %v1800
    %1931 = vmatprep.subr.bf16.mxu0 %v1818
    %1932 = vmatpush1.bf16.msra.mxu0 %v1817
    %1933 = vmatprep.subr.bf16.mxu0 %v1816
    %1934 = vmatpush1.bf16.msra.mxu0 %v1815
    %1935 = vmatprep.subr.bf16.mxu0 %v1814
    %1936 = vmatpush1.bf16.msra.mxu0 %v1813
    %1937 = vmatprep.subr.bf16.mxu0 %v1812
    %1938 = vmatpush1.bf16.msra.mxu0 %v1811
    %1939 = vmatprep.subr.bf16.mxu0 %v1810
    %1940 = vmatpush1.bf16.msra.mxu0 %v1809
    %1941 = vmatprep.subr.bf16.mxu0 %v1808
    %1942 = vmatpush1.bf16.msra.mxu0 %v1807
    %1943 = vmatprep.subr.bf16.mxu0 %v1806
    %1944 = vmatpush1.bf16.msra.mxu0 %v1805
    %1945 = vmatprep.subr.bf16.mxu0 %v1804
    %1946 = vmatpush1.bf16.msra.mxu0 %v1803
    %1947 = vmatprep.subr.bf16.mxu0 %v1834
    %1948 = vmatpush2.bf16.msra.mxu0 %v1833
    %1949 = vmatprep.subr.bf16.mxu0 %v1832
    %1950 = vmatpush2.bf16.msra.mxu0 %v1831
    %1951 = vmatprep.subr.bf16.mxu0 %v1830
    %1952 = vmatpush2.bf16.msra.mxu0 %v1829
    %1953 = vmatprep.subr.bf16.mxu0 %v1828
    %1954 = vmatpush2.bf16.msra.mxu0 %v1827
    %1955 = vmatprep.subr.bf16.mxu0 %v1826
    %1956 = vmatpush2.bf16.msra.mxu0 %v1825
    %1957 = vmatprep.subr.bf16.mxu0 %v1824
    %1958 = vmatpush2.bf16.msra.mxu0 %v1823
    %1959 = vmatprep.subr.bf16.mxu0 %v1822
    %1960 = vmatpush2.bf16.msra.mxu0 %v1821
    %1961 = vmatprep.subr.bf16.mxu0 %v1820
    %1962 = vmatpush2.bf16.msra.mxu0 %v1819
    %1963 = vmatprep.mubr.bf16.mxu0 %v1532
    %1964 = vmatmul.mubr.bf16.gmra.mxu0 %v1531
    %v1965 = vpop.f32.mrf.mxu0
    %v1966 = vadd.f32 %v1604, %v1965
    %v1967 = vpop.f32.mrf.mxu0
    %v1968 = vadd.f32 %v1608, %v1967
    %v1969 = vpop.f32.mrf.mxu0
    %v1970 = vpop.f32.mrf.mxu0
    %1971 = vdwg.mxu0
    %1972 = vmatprep.subr.bf16.mxu0 %v1850
    %1973 = vmatpush1.bf16.msra.mxu0 %v1849
    %1974 = vmatprep.subr.bf16.mxu0 %v1848
    %1975 = vmatpush1.bf16.msra.mxu0 %v1847
    %1976 = vmatprep.subr.bf16.mxu0 %v1846
    %1977 = vmatpush1.bf16.msra.mxu0 %v1845
    %1978 = vmatprep.subr.bf16.mxu0 %v1844
    %1979 = vmatpush1.bf16.msra.mxu0 %v1843
    %1980 = vmatprep.subr.bf16.mxu0 %v1842
    %1981 = vmatpush1.bf16.msra.mxu0 %v1841
    %1982 = vmatprep.subr.bf16.mxu0 %v1840
    %1983 = vmatpush1.bf16.msra.mxu0 %v1839
    %1984 = vmatprep.subr.bf16.mxu0 %v1838
    %1985 = vmatpush1.bf16.msra.mxu0 %v1837
    %1986 = vmatprep.subr.bf16.mxu0 %v1836
    %1987 = vmatpush1.bf16.msra.mxu0 %v1835
    %1988 = vmatprep.subr.bf16.mxu0 %v1866
    %1989 = vmatpush2.bf16.msra.mxu0 %v1865
    %1990 = vmatprep.subr.bf16.mxu0 %v1864
    %1991 = vmatpush2.bf16.msra.mxu0 %v1863
    %1992 = vmatprep.subr.bf16.mxu0 %v1862
    %1993 = vmatpush2.bf16.msra.mxu0 %v1861
    %1994 = vmatprep.subr.bf16.mxu0 %v1860
    %1995 = vmatpush2.bf16.msra.mxu0 %v1859
    %1996 = vmatprep.subr.bf16.mxu0 %v1858
    %1997 = vmatpush2.bf16.msra.mxu0 %v1857
    %1998 = vmatprep.subr.bf16.mxu0 %v1856
    %1999 = vmatpush2.bf16.msra.mxu0 %v1855
    %2000 = vmatprep.subr.bf16.mxu0 %v1854
    %2001 = vmatpush2.bf16.msra.mxu0 %v1853
    %2002 = vmatprep.subr.bf16.mxu0 %v1852
    %2003 = vmatpush2.bf16.msra.mxu0 %v1851
    %2004 = vmatprep.mubr.bf16.mxu0 %v1534
    %2005 = vmatmul.mubr.bf16.gmra.mxu0 %v1533
    %v2006 = vpop.f32.mrf.mxu0
    %v2007 = vadd.f32 %v1966, %v2006
    %v2008 = vpop.f32.mrf.mxu0
    %v2009 = vadd.f32 %v1968, %v2008
    %v2010 = vpop.f32.mrf.mxu0
    %v2011 = vpop.f32.mrf.mxu0
    %2012 = vdwg.mxu0
    %v2013 = vmax.f32 %v2007, 0.0
    %v2014 = vmax.f32 %v2009, 0.0
    %v2015 = vpack.c.bf16 %v2013, %v2013
    %v2016 = vpack.c.bf16 %v2014, %v2014
    %v2017 = vld [vmem:[%s7] sm:$0xf]
    %v2018 = vld [vmem:[%s7 + $0x4] sm:$0xf]
    %v2019 = vld [vmem:[%s7 + $0x8] sm:$0xf]
    %v2020 = vld [vmem:[%s7 + $0xc] sm:$0xf]
    %v2021 = vld [vmem:[%s7 + $0x10] sm:$0xf]
    %v2022 = vld [vmem:[%s7 + $0x14] sm:$0xf]
    %v2023 = vld [vmem:[%s7 + $0x18] sm:$0xf]
    %v2024 = vld [vmem:[%s7 + $0x1c] sm:$0xf]
    %v2025 = vld [vmem:[%s7 + $0x20] sm:$0xf]
    %v2026 = vld [vmem:[%s7 + $0x24] sm:$0xf]
    %v2027 = vld [vmem:[%s7 + $0x28] sm:$0xf]
    %v2028 = vld [vmem:[%s7 + $0x2c] sm:$0xf]
    %v2029 = vld [vmem:[%s7 + $0x30] sm:$0xf]
    %v2030 = vld [vmem:[%s7 + $0x34] sm:$0xf]
    %v2031 = vld [vmem:[%s7 + $0x38] sm:$0xf]
    %v2032 = vld [vmem:[%s7 + $0x3c] sm:$0xf]
    %v2033 = vld [vmem:[%s7 + $0x40] sm:$0xf]
    %v2034 = vld [vmem:[%s7 + $0x44] sm:$0xf]
    %v2035 = vld [vmem:[%s7 + $0x48] sm:$0xf]
    %v2036 = vld [vmem:[%s7 + $0x4c] sm:$0xf]
    %v2037 = vld [vmem:[%s7 + $0x50] sm:$0xf]
    %v2038 = vld [vmem:[%s7 + $0x54] sm:$0xf]
    %v2039 = vld [vmem:[%s7 + $0x58] sm:$0xf]
    %v2040 = vld [vmem:[%s7 + $0x5c] sm:$0xf]
    %v2041 = vld [vmem:[%s7 + $0x60] sm:$0xf]
    %v2042 = vld [vmem:[%s7 + $0x64] sm:$0xf]
    %v2043 = vld [vmem:[%s7 + $0x68] sm:$0xf]
    %v2044 = vld [vmem:[%s7 + $0x6c] sm:$0xf]
    %v2045 = vld [vmem:[%s7 + $0x70] sm:$0xf]
    %v2046 = vld [vmem:[%s7 + $0x74] sm:$0xf]
    %v2047 = vld [vmem:[%s7 + $0x78] sm:$0xf]
    %v2048 = vld [vmem:[%s7 + $0x7c] sm:$0xf]
    %v2049 = vld [vmem:[%s8] sm:$0x1]
    %v2051 = vlaneseq
    %v2052 = vshrl.u32 %v2051, 7
    %v2053 = vsub.s32 0, %v2052
    %v2054 = vrot.slane %v2049, %v2053
    %v2088 = vunpack.c.l.b16 %v2017
    %v2089 = vunpack.c.l.b16 %v2018
    %v2090 = vunpack.c.l.b16 %v2019
    %v2091 = vunpack.c.l.b16 %v2020
    %v2092 = vunpack.c.l.b16 %v2021
    %v2093 = vunpack.c.l.b16 %v2022
    %v2094 = vunpack.c.l.b16 %v2023
    %v2095 = vunpack.c.l.b16 %v2024
    %v2096 = vunpack.c.l.b16 %v2025
    %v2097 = vunpack.c.l.b16 %v2026
    %v2098 = vunpack.c.l.b16 %v2027
    %v2099 = vunpack.c.l.b16 %v2028
    %v2100 = vunpack.c.l.b16 %v2029
    %v2101 = vunpack.c.l.b16 %v2030
    %v2102 = vunpack.c.l.b16 %v2031
    %v2103 = vunpack.c.l.b16 %v2032
    %v2104 = vunpack.c.l.b16 %v2033
    %v2105 = vunpack.c.l.b16 %v2034
    %v2106 = vunpack.c.l.b16 %v2035
    %v2107 = vunpack.c.l.b16 %v2036
    %v2108 = vunpack.c.l.b16 %v2037
    %v2109 = vunpack.c.l.b16 %v2038
    %v2110 = vunpack.c.l.b16 %v2039
    %v2111 = vunpack.c.l.b16 %v2040
    %v2112 = vunpack.c.l.b16 %v2041
    %v2113 = vunpack.c.l.b16 %v2042
    %v2114 = vunpack.c.l.b16 %v2043
    %v2115 = vunpack.c.l.b16 %v2044
    %v2116 = vunpack.c.l.b16 %v2045
    %v2117 = vunpack.c.l.b16 %v2046
    %v2118 = vunpack.c.l.b16 %v2047
    %v2119 = vunpack.c.l.b16 %v2048
    %v2120 = vpack.c.b16 %v2089, %v2088
    %v2121 = vpack.c.b16 %v2091, %v2090
    %v2122 = vpack.c.b16 %v2093, %v2092
    %v2123 = vpack.c.b16 %v2095, %v2094
    %v2124 = vpack.c.b16 %v2097, %v2096
    %v2125 = vpack.c.b16 %v2099, %v2098
    %v2126 = vpack.c.b16 %v2101, %v2100
    %v2127 = vpack.c.b16 %v2103, %v2102
    %v2128 = vpack.c.b16 %v2105, %v2104
    %v2129 = vpack.c.b16 %v2107, %v2106
    %v2130 = vpack.c.b16 %v2109, %v2108
    %v2131 = vpack.c.b16 %v2111, %v2110
    %v2132 = vpack.c.b16 %v2113, %v2112
    %v2133 = vpack.c.b16 %v2115, %v2114
    %v2134 = vpack.c.b16 %v2117, %v2116
    %v2135 = vpack.c.b16 %v2119, %v2118
    %2152 = vmatprep.subr.bf16.mxu0 0
    %2153 = vmatpush1.bf16.msra.mxu0 %v2127
    %2154 = vmatprep.subr.bf16.mxu0 0
    %2155 = vmatpush1.bf16.msra.mxu0 %v2126
    %2156 = vmatprep.subr.bf16.mxu0 0
    %2157 = vmatpush1.bf16.msra.mxu0 %v2125
    %2158 = vmatprep.subr.bf16.mxu0 0
    %2159 = vmatpush1.bf16.msra.mxu0 %v2124
    %2160 = vmatprep.subr.bf16.mxu0 0
    %2161 = vmatpush1.bf16.msra.mxu0 %v2123
    %2162 = vmatprep.subr.bf16.mxu0 0
    %2163 = vmatpush1.bf16.msra.mxu0 %v2122
    %2164 = vmatprep.subr.bf16.mxu0 0
    %2165 = vmatpush1.bf16.msra.mxu0 %v2121
    %2166 = vmatprep.subr.bf16.mxu0 0
    %2167 = vmatpush1.bf16.msra.mxu0 %v2120
    %2168 = vmatprep.subr.bf16.mxu0 0
    %2169 = vmatpush2.bf16.msra.mxu0 %v2135
    %2170 = vmatprep.subr.bf16.mxu0 0
    %2171 = vmatpush2.bf16.msra.mxu0 %v2134
    %2172 = vmatprep.subr.bf16.mxu0 0
    %2173 = vmatpush2.bf16.msra.mxu0 %v2133
    %2174 = vmatprep.subr.bf16.mxu0 0
    %2175 = vmatpush2.bf16.msra.mxu0 %v2132
    %2176 = vmatprep.subr.bf16.mxu0 0
    %2177 = vmatpush2.bf16.msra.mxu0 %v2131
    %2178 = vmatprep.subr.bf16.mxu0 0
    %2179 = vmatpush2.bf16.msra.mxu0 %v2130
    %2180 = vmatprep.subr.bf16.mxu0 0
    %2181 = vmatpush2.bf16.msra.mxu0 %v2129
    %2182 = vmatprep.subr.bf16.mxu0 0
    %2183 = vmatpush2.bf16.msra.mxu0 %v2128
    %2184 = vmatprep.mubr.bf16.mxu0 %v2016
    %2185 = vmatmul.mubr.bf16.gmra.mxu0 %v2015
    %v2186 = vpop.f32.mrf.mxu0
    %v2187 = vadd.f32 %v2054, %v2186
    %v2188 = vpop.f32.mrf.mxu0
    %v2189 = vpop.f32.mrf.mxu0
    %v2190 = vpop.f32.mrf.mxu0
    %2191 = vdwg.mxu0
    %v2192 = vmax.f32 %v2187, 0.0
    %v2193 = vpack.c.bf16 %v2192, %v2192
    %v2194 = vld [vmem:[%s9] sm:$0xf]
    %v2195 = vld [vmem:[%s9 + $0x4] sm:$0xf]
    %v2196 = vld [vmem:[%s9 + $0x8] sm:$0xf]
    %v2197 = vld [vmem:[%s9 + $0xc] sm:$0xf]
    %v2198 = vld [vmem:[%s9 + $0x10] sm:$0xf]
    %v2199 = vld [vmem:[%s9 + $0x14] sm:$0xf]
    %v2200 = vld [vmem:[%s9 + $0x18] sm:$0xf]
    %v2201 = vld [vmem:[%s9 + $0x1c] sm:$0xf]
    %v2202 = vld [vmem:[%s9 + $0x20] sm:$0xf]
    %v2203 = vld [vmem:[%s9 + $0x24] sm:$0xf]
    %v2204 = vld [vmem:[%s9 + $0x28] sm:$0xf]
    %v2205 = vld [vmem:[%s9 + $0x2c] sm:$0xf]
    %v2206 = vld [vmem:[%s9 + $0x30] sm:$0xf]
    %v2207 = vld [vmem:[%s9 + $0x34] sm:$0xf]
    %v2208 = vld [vmem:[%s9 + $0x38] sm:$0xf]
    %v2209 = vld [vmem:[%s9 + $0x3c] sm:$0xf]
    %v2210 = vld [vmem:[%s10] sm:$0x1]
    %v2212 = vlaneseq
    %v2213 = vshrl.u32 %v2212, 7
    %v2214 = vsub.s32 0, %v2213
    %v2215 = vrot.slane %v2210, %v2214
    %v2233 = vunpack.c.l.b16 %v2194
    %v2234 = vunpack.c.l.b16 %v2195
    %v2235 = vunpack.c.l.b16 %v2196
    %v2236 = vunpack.c.l.b16 %v2197
    %v2237 = vunpack.c.l.b16 %v2198
    %v2238 = vunpack.c.l.b16 %v2199
    %v2239 = vunpack.c.l.b16 %v2200
    %v2240 = vunpack.c.l.b16 %v2201
    %v2241 = vunpack.c.l.b16 %v2202
    %v2242 = vunpack.c.l.b16 %v2203
    %v2243 = vunpack.c.l.b16 %v2204
    %v2244 = vunpack.c.l.b16 %v2205
    %v2245 = vunpack.c.l.b16 %v2206
    %v2246 = vunpack.c.l.b16 %v2207
    %v2247 = vunpack.c.l.b16 %v2208
    %v2248 = vunpack.c.l.b16 %v2209
    %v2249 = vpack.c.b16 %v2234, %v2233
    %v2250 = vpack.c.b16 %v2236, %v2235
    %v2251 = vpack.c.b16 %v2238, %v2237
    %v2252 = vpack.c.b16 %v2240, %v2239
    %v2253 = vpack.c.b16 %v2242, %v2241
    %v2254 = vpack.c.b16 %v2244, %v2243
    %v2255 = vpack.c.b16 %v2246, %v2245
    %v2256 = vpack.c.b16 %v2248, %v2247
    %2265 = vmatprep.subr.bf16.mxu0 0
    %2266 = vmatpush1.bf16.msra.mxu0 %v2256
    %2267 = vmatprep.subr.bf16.mxu0 0
    %2268 = vmatpush1.bf16.msra.mxu0 %v2255
    %2269 = vmatprep.subr.bf16.mxu0 0
    %2270 = vmatpush1.bf16.msra.mxu0 %v2254
    %2271 = vmatprep.subr.bf16.mxu0 0
    %2272 = vmatpush1.bf16.msra.mxu0 %v2253
    %2273 = vmatprep.subr.bf16.mxu0 0
    %2274 = vmatpush1.bf16.msra.mxu0 %v2252
    %2275 = vmatprep.subr.bf16.mxu0 0
    %2276 = vmatpush1.bf16.msra.mxu0 %v2251
    %2277 = vmatprep.subr.bf16.mxu0 0
    %2278 = vmatpush1.bf16.msra.mxu0 %v2250
    %2279 = vmatprep.subr.bf16.mxu0 0
    %2280 = vmatpush1.bf16.msra.mxu0 %v2249
    %2281 = vmatprep.subr.bf16.mxu0 0
    %2282 = vmatpush2.bf16.msra.mxu0 0
    %2283 = vmatprep.subr.bf16.mxu0 0
    %2284 = vmatpush2.bf16.msra.mxu0 0
    %2285 = vmatprep.subr.bf16.mxu0 0
    %2286 = vmatpush2.bf16.msra.mxu0 0
    %2287 = vmatprep.subr.bf16.mxu0 0
    %2288 = vmatpush2.bf16.msra.mxu0 0
    %2289 = vmatprep.subr.bf16.mxu0 0
    %2290 = vmatpush2.bf16.msra.mxu0 0
    %2291 = vmatprep.subr.bf16.mxu0 0
    %2292 = vmatpush2.bf16.msra.mxu0 0
    %2293 = vmatprep.subr.bf16.mxu0 0
    %2294 = vmatpush2.bf16.msra.mxu0 0
    %2295 = vmatprep.subr.bf16.mxu0 0
    %2296 = vmatpush2.bf16.msra.mxu0 0
    %2297 = vmatprep.mubr.bf16.mxu0 0
    %2298 = vmatmul.mubr.bf16.gmra.mxu0 %v2193
    %v2299 = vpop.f32.mrf.mxu0
    %v2300 = vadd.f32 %v2215, %v2299
    %v2301 = vpop.f32.mrf.mxu0
    %v2302 = vpop.f32.mrf.mxu0
    %v2303 = vpop.f32.mrf.mxu0
    %2304 = vdwg.mxu0
    %v2305 = vmax.f32 %v2300, 0.0
    %v2306 = vpack.c.bf16 %v2305, %v2305
    %v2307 = vld [vmem:[%s1] sm:$0xf]
    %v2308 = vpack.c.bf16 %v2307, %v2307
    %v2309 = vld [vmem:[%s2] sm:$0xf]
    %v2310 = vpack.c.bf16 %v2309, %v2309
    %v2311 = vld [vmem:[%s11] sm:$0xff]
    %v2312 = vld [vmem:[%s11 + $0x8] sm:$0xf]
    %v2313 = vld [vmem:[%s11 + $0xc] sm:$0xff]
    %v2314 = vld [vmem:[%s11 + $0x14] sm:$0xf]
    %v2315 = vld [vmem:[%s11 + $0x18] sm:$0xff]
    %v2316 = vld [vmem:[%s11 + $0x20] sm:$0xf]
    %v2317 = vld [vmem:[%s11 + $0x24] sm:$0xff]
    %v2318 = vld [vmem:[%s11 + $0x2c] sm:$0xf]
    %v2319 = vld [vmem:[%s11 + $0x30] sm:$0xff]
    %v2320 = vld [vmem:[%s11 + $0x38] sm:$0xf]
    %v2321 = vld [vmem:[%s11 + $0x3c] sm:$0xff]
    %v2322 = vld [vmem:[%s11 + $0x44] sm:$0xf]
    %v2323 = vld [vmem:[%s11 + $0x48] sm:$0xff]
    %v2324 = vld [vmem:[%s11 + $0x50] sm:$0xf]
    %v2325 = vld [vmem:[%s11 + $0x54] sm:$0xff]
    %v2326 = vld [vmem:[%s11 + $0x5c] sm:$0xf]
    %v2327 = vld [vmem:[%s11 + $0x60] sm:$0xff]
    %v2328 = vld [vmem:[%s11 + $0x68] sm:$0xf]
    %v2329 = vld [vmem:[%s11 + $0x6c] sm:$0xff]
    %v2330 = vld [vmem:[%s11 + $0x74] sm:$0xf]
    %v2331 = vld [vmem:[%s11 + $0x78] sm:$0xff]
    %v2332 = vld [vmem:[%s11 + $0x80] sm:$0xf]
    %v2333 = vld [vmem:[%s11 + $0x84] sm:$0xff]
    %v2334 = vld [vmem:[%s11 + $0x8c] sm:$0xf]
    %v2335 = vld [vmem:[%s11 + $0x90] sm:$0xff]
    %v2336 = vld [vmem:[%s11 + $0x98] sm:$0xf]
    %v2337 = vld [vmem:[%s11 + $0x9c] sm:$0xff]
    %v2338 = vld [vmem:[%s11 + $0xa4] sm:$0xf]
    %v2339 = vld [vmem:[%s11 + $0xa8] sm:$0xff]
    %v2340 = vld [vmem:[%s11 + $0xb0] sm:$0xf]
    %v2341 = vld [vmem:[%s11 + $0xb4] sm:$0xff]
    %v2342 = vld [vmem:[%s11 + $0xbc] sm:$0xf]
    %v2343 = vld [vmem:[%s11 + $0xc0] sm:$0xff]
    %v2344 = vld [vmem:[%s11 + $0xc8] sm:$0xf]
    %v2345 = vld [vmem:[%s11 + $0xcc] sm:$0xff]
    %v2346 = vld [vmem:[%s11 + $0xd4] sm:$0xf]
    %v2347 = vld [vmem:[%s11 + $0xd8] sm:$0xff]
    %v2348 = vld [vmem:[%s11 + $0xe0] sm:$0xf]
    %v2349 = vld [vmem:[%s11 + $0xe4] sm:$0xff]
    %v2350 = vld [vmem:[%s11 + $0xec] sm:$0xf]
    %v2351 = vld [vmem:[%s11 + $0xf0] sm:$0xff]
    %v2352 = vld [vmem:[%s11 + $0xf8] sm:$0xf]
    %v2353 = vld [vmem:[%s11 + $0xfc] sm:$0xff]
    %v2354 = vld [vmem:[%s11 + $0x104] sm:$0xf]
    %v2355 = vld [vmem:[%s11 + $0x108] sm:$0xff]
    %v2356 = vld [vmem:[%s11 + $0x110] sm:$0xf]
    %v2357 = vld [vmem:[%s11 + $0x114] sm:$0xff]
    %v2358 = vld [vmem:[%s11 + $0x11c] sm:$0xf]
    %v2359 = vld [vmem:[%s11 + $0x120] sm:$0xff]
    %v2360 = vld [vmem:[%s11 + $0x128] sm:$0xf]
    %v2361 = vld [vmem:[%s11 + $0x12c] sm:$0xff]
    %v2362 = vld [vmem:[%s11 + $0x134] sm:$0xf]
    %v2363 = vld [vmem:[%s11 + $0x138] sm:$0xff]
    %v2364 = vld [vmem:[%s11 + $0x140] sm:$0xf]
    %v2365 = vld [vmem:[%s11 + $0x144] sm:$0xff]
    %v2366 = vld [vmem:[%s11 + $0x14c] sm:$0xf]
    %v2367 = vld [vmem:[%s11 + $0x150] sm:$0xff]
    %v2368 = vld [vmem:[%s11 + $0x158] sm:$0xf]
    %v2369 = vld [vmem:[%s11 + $0x15c] sm:$0xff]
    %v2370 = vld [vmem:[%s11 + $0x164] sm:$0xf]
    %v2371 = vld [vmem:[%s11 + $0x168] sm:$0xff]
    %v2372 = vld [vmem:[%s11 + $0x170] sm:$0xf]
    %v2373 = vld [vmem:[%s11 + $0x174] sm:$0xff]
    %v2374 = vld [vmem:[%s11 + $0x17c] sm:$0xf]
    %v2439 = vunpack.c.l.b16 %v2311
    %v2440 = vunpack.c.h.b16 %v2311
    %v2441 = vunpack.c.l.b16 %v2312
    %v2442 = vunpack.c.l.b16 %v2313
    %v2443 = vunpack.c.h.b16 %v2313
    %v2444 = vunpack.c.l.b16 %v2314
    %v2445 = vunpack.c.l.b16 %v2315
    %v2446 = vunpack.c.h.b16 %v2315
    %v2447 = vunpack.c.l.b16 %v2316
    %v2448 = vunpack.c.l.b16 %v2317
    %v2449 = vunpack.c.h.b16 %v2317
    %v2450 = vunpack.c.l.b16 %v2318
    %v2451 = vunpack.c.l.b16 %v2319
    %v2452 = vunpack.c.h.b16 %v2319
    %v2453 = vunpack.c.l.b16 %v2320
    %v2454 = vunpack.c.l.b16 %v2321
    %v2455 = vunpack.c.h.b16 %v2321
    %v2456 = vunpack.c.l.b16 %v2322
    %v2457 = vunpack.c.l.b16 %v2323
    %v2458 = vunpack.c.h.b16 %v2323
    %v2459 = vunpack.c.l.b16 %v2324
    %v2460 = vunpack.c.l.b16 %v2325
    %v2461 = vunpack.c.h.b16 %v2325
    %v2462 = vunpack.c.l.b16 %v2326
    %v2463 = vunpack.c.l.b16 %v2327
    %v2464 = vunpack.c.h.b16 %v2327
    %v2465 = vunpack.c.l.b16 %v2328
    %v2466 = vunpack.c.l.b16 %v2329
    %v2467 = vunpack.c.h.b16 %v2329
    %v2468 = vunpack.c.l.b16 %v2330
    %v2469 = vunpack.c.l.b16 %v2331
    %v2470 = vunpack.c.h.b16 %v2331
    %v2471 = vunpack.c.l.b16 %v2332
    %v2472 = vunpack.c.l.b16 %v2333
    %v2473 = vunpack.c.h.b16 %v2333
    %v2474 = vunpack.c.l.b16 %v2334
    %v2475 = vunpack.c.l.b16 %v2335
    %v2476 = vunpack.c.h.b16 %v2335
    %v2477 = vunpack.c.l.b16 %v2336
    %v2478 = vunpack.c.l.b16 %v2337
    %v2479 = vunpack.c.h.b16 %v2337
    %v2480 = vunpack.c.l.b16 %v2338
    %v2481 = vunpack.c.l.b16 %v2339
    %v2482 = vunpack.c.h.b16 %v2339
    %v2483 = vunpack.c.l.b16 %v2340
    %v2484 = vunpack.c.l.b16 %v2341
    %v2485 = vunpack.c.h.b16 %v2341
    %v2486 = vunpack.c.l.b16 %v2342
    %v2487 = vunpack.c.l.b16 %v2343
    %v2488 = vunpack.c.h.b16 %v2343
    %v2489 = vunpack.c.l.b16 %v2344
    %v2490 = vunpack.c.l.b16 %v2345
    %v2491 = vunpack.c.h.b16 %v2345
    %v2492 = vunpack.c.l.b16 %v2346
    %v2493 = vunpack.c.l.b16 %v2347
    %v2494 = vunpack.c.h.b16 %v2347
    %v2495 = vunpack.c.l.b16 %v2348
    %v2496 = vunpack.c.l.b16 %v2349
    %v2497 = vunpack.c.h.b16 %v2349
    %v2498 = vunpack.c.l.b16 %v2350
    %v2499 = vunpack.c.l.b16 %v2351
    %v2500 = vunpack.c.h.b16 %v2351
    %v2501 = vunpack.c.l.b16 %v2352
    %v2502 = vunpack.c.l.b16 %v2353
    %v2503 = vunpack.c.h.b16 %v2353
    %v2504 = vunpack.c.l.b16 %v2354
    %v2505 = vunpack.c.l.b16 %v2355
    %v2506 = vunpack.c.h.b16 %v2355
    %v2507 = vunpack.c.l.b16 %v2356
    %v2508 = vunpack.c.l.b16 %v2357
    %v2509 = vunpack.c.h.b16 %v2357
    %v2510 = vunpack.c.l.b16 %v2358
    %v2511 = vunpack.c.l.b16 %v2359
    %v2512 = vunpack.c.h.b16 %v2359
    %v2513 = vunpack.c.l.b16 %v2360
    %v2514 = vunpack.c.l.b16 %v2361
    %v2515 = vunpack.c.h.b16 %v2361
    %v2516 = vunpack.c.l.b16 %v2362
    %v2517 = vunpack.c.l.b16 %v2363
    %v2518 = vunpack.c.h.b16 %v2363
    %v2519 = vunpack.c.l.b16 %v2364
    %v2520 = vunpack.c.l.b16 %v2365
    %v2521 = vunpack.c.h.b16 %v2365
    %v2522 = vunpack.c.l.b16 %v2366
    %v2523 = vunpack.c.l.b16 %v2367
    %v2524 = vunpack.c.h.b16 %v2367
    %v2525 = vunpack.c.l.b16 %v2368
    %v2526 = vunpack.c.l.b16 %v2369
    %v2527 = vunpack.c.h.b16 %v2369
    %v2528 = vunpack.c.l.b16 %v2370
    %v2529 = vunpack.c.l.b16 %v2371
    %v2530 = vunpack.c.h.b16 %v2371
    %v2531 = vunpack.c.l.b16 %v2372
    %v2532 = vunpack.c.l.b16 %v2373
    %v2533 = vunpack.c.h.b16 %v2373
    %v2534 = vunpack.c.l.b16 %v2374
    %v2535 = vpack.c.b16 %v2442, %v2439
    %v2536 = vpack.c.b16 %v2443, %v2440
    %v2537 = vpack.c.b16 %v2444, %v2441
    %v2538 = vpack.c.b16 %v2448, %v2445
    %v2539 = vpack.c.b16 %v2449, %v2446
    %v2540 = vpack.c.b16 %v2450, %v2447
    %v2541 = vpack.c.b16 %v2454, %v2451
    %v2542 = vpack.c.b16 %v2455, %v2452
    %v2543 = vpack.c.b16 %v2456, %v2453
    %v2544 = vpack.c.b16 %v2460, %v2457
    %v2545 = vpack.c.b16 %v2461, %v2458
    %v2546 = vpack.c.b16 %v2462, %v2459
    %v2547 = vpack.c.b16 %v2466, %v2463
    %v2548 = vpack.c.b16 %v2467, %v2464
    %v2549 = vpack.c.b16 %v2468, %v2465
    %v2550 = vpack.c.b16 %v2472, %v2469
    %v2551 = vpack.c.b16 %v2473, %v2470
    %v2552 = vpack.c.b16 %v2474, %v2471
    %v2553 = vpack.c.b16 %v2478, %v2475
    %v2554 = vpack.c.b16 %v2479, %v2476
    %v2555 = vpack.c.b16 %v2480, %v2477
    %v2556 = vpack.c.b16 %v2484, %v2481
    %v2557 = vpack.c.b16 %v2485, %v2482
    %v2558 = vpack.c.b16 %v2486, %v2483
    %v2559 = vpack.c.b16 %v2490, %v2487
    %v2560 = vpack.c.b16 %v2491, %v2488
    %v2561 = vpack.c.b16 %v2492, %v2489
    %v2562 = vpack.c.b16 %v2496, %v2493
    %v2563 = vpack.c.b16 %v2497, %v2494
    %v2564 = vpack.c.b16 %v2498, %v2495
    %v2565 = vpack.c.b16 %v2502, %v2499
    %v2566 = vpack.c.b16 %v2503, %v2500
    %v2567 = vpack.c.b16 %v2504, %v2501
    %v2568 = vpack.c.b16 %v2508, %v2505
    %v2569 = vpack.c.b16 %v2509, %v2506
    %v2570 = vpack.c.b16 %v2510, %v2507
    %v2571 = vpack.c.b16 %v2514, %v2511
    %v2572 = vpack.c.b16 %v2515, %v2512
    %v2573 = vpack.c.b16 %v2516, %v2513
    %v2574 = vpack.c.b16 %v2520, %v2517
    %v2575 = vpack.c.b16 %v2521, %v2518
    %v2576 = vpack.c.b16 %v2522, %v2519
    %v2577 = vpack.c.b16 %v2526, %v2523
    %v2578 = vpack.c.b16 %v2527, %v2524
    %v2579 = vpack.c.b16 %v2528, %v2525
    %v2580 = vpack.c.b16 %v2532, %v2529
    %v2581 = vpack.c.b16 %v2533, %v2530
    %v2582 = vpack.c.b16 %v2534, %v2531
    %2631 = vmatprep.subr.bf16.mxu0 %v2557
    %2632 = vmatpush1.bf16.msra.mxu0 %v2556
    %2633 = vmatprep.subr.bf16.mxu0 %v2554
    %2634 = vmatpush1.bf16.msra.mxu0 %v2553
    %2635 = vmatprep.subr.bf16.mxu0 %v2551
    %2636 = vmatpush1.bf16.msra.mxu0 %v2550
    %2637 = vmatprep.subr.bf16.mxu0 %v2548
    %2638 = vmatpush1.bf16.msra.mxu0 %v2547
    %2639 = vmatprep.subr.bf16.mxu0 %v2545
    %2640 = vmatpush1.bf16.msra.mxu0 %v2544
    %2641 = vmatprep.subr.bf16.mxu0 %v2542
    %2642 = vmatpush1.bf16.msra.mxu0 %v2541
    %2643 = vmatprep.subr.bf16.mxu0 %v2539
    %2644 = vmatpush1.bf16.msra.mxu0 %v2538
    %2645 = vmatprep.subr.bf16.mxu0 %v2536
    %2646 = vmatpush1.bf16.msra.mxu0 %v2535
    %2647 = vmatprep.subr.bf16.mxu0 %v2581
    %2648 = vmatpush2.bf16.msra.mxu0 %v2580
    %2649 = vmatprep.subr.bf16.mxu0 %v2578
    %2650 = vmatpush2.bf16.msra.mxu0 %v2577
    %2651 = vmatprep.subr.bf16.mxu0 %v2575
    %2652 = vmatpush2.bf16.msra.mxu0 %v2574
    %2653 = vmatprep.subr.bf16.mxu0 %v2572
    %2654 = vmatpush2.bf16.msra.mxu0 %v2571
    %2655 = vmatprep.subr.bf16.mxu0 %v2569
    %2656 = vmatpush2.bf16.msra.mxu0 %v2568
    %2657 = vmatprep.subr.bf16.mxu0 %v2566
    %2658 = vmatpush2.bf16.msra.mxu0 %v2565
    %2659 = vmatprep.subr.bf16.mxu0 %v2563
    %2660 = vmatpush2.bf16.msra.mxu0 %v2562
    %2661 = vmatprep.subr.bf16.mxu0 %v2560
    %2662 = vmatpush2.bf16.msra.mxu0 %v2559
    %2663 = vmatprep.mubr.bf16.mxu0 %v2308
    %2664 = vmatmul.mubr.bf16.gmra.mxu0 %v2306
    %v2665 = vpop.f32.mrf.mxu0
    %v2666 = vadd.f32 0.0, %v2665
    %v2667 = vpop.f32.mrf.mxu0
    %v2668 = vadd.f32 0.0, %v2667
    %v2669 = vpop.f32.mrf.mxu0
    %v2670 = vpop.f32.mrf.mxu0
    %2671 = vdwg.mxu0
    %2672 = vmatprep.subr.bf16.mxu0 0
    %2673 = vmatpush1.bf16.msra.mxu0 %v2558
    %2674 = vmatprep.subr.bf16.mxu0 0
    %2675 = vmatpush1.bf16.msra.mxu0 %v2555
    %2676 = vmatprep.subr.bf16.mxu0 0
    %2677 = vmatpush1.bf16.msra.mxu0 %v2552
    %2678 = vmatprep.subr.bf16.mxu0 0
    %2679 = vmatpush1.bf16.msra.mxu0 %v2549
    %2680 = vmatprep.subr.bf16.mxu0 0
    %2681 = vmatpush1.bf16.msra.mxu0 %v2546
    %2682 = vmatprep.subr.bf16.mxu0 0
    %2683 = vmatpush1.bf16.msra.mxu0 %v2543
    %2684 = vmatprep.subr.bf16.mxu0 0
    %2685 = vmatpush1.bf16.msra.mxu0 %v2540
    %2686 = vmatprep.subr.bf16.mxu0 0
    %2687 = vmatpush1.bf16.msra.mxu0 %v2537
    %2688 = vmatprep.subr.bf16.mxu0 0
    %2689 = vmatpush2.bf16.msra.mxu0 %v2582
    %2690 = vmatprep.subr.bf16.mxu0 0
    %2691 = vmatpush2.bf16.msra.mxu0 %v2579
    %2692 = vmatprep.subr.bf16.mxu0 0
    %2693 = vmatpush2.bf16.msra.mxu0 %v2576
    %2694 = vmatprep.subr.bf16.mxu0 0
    %2695 = vmatpush2.bf16.msra.mxu0 %v2573
    %2696 = vmatprep.subr.bf16.mxu0 0
    %2697 = vmatpush2.bf16.msra.mxu0 %v2570
    %2698 = vmatprep.subr.bf16.mxu0 0
    %2699 = vmatpush2.bf16.msra.mxu0 %v2567
    %2700 = vmatprep.subr.bf16.mxu0 0
    %2701 = vmatpush2.bf16.msra.mxu0 %v2564
    %2702 = vmatprep.subr.bf16.mxu0 0
    %2703 = vmatpush2.bf16.msra.mxu0 %v2561
    %2704 = vmatprep.mubr.bf16.mxu0 %v2308
    %2705 = vmatmul.mubr.bf16.gmra.mxu0 %v2306
    %v2706 = vpop.f32.mrf.mxu0
    %v2707 = vadd.f32 0.0, %v2706
    %v2708 = vpop.f32.mrf.mxu0
    %v2709 = vpop.f32.mrf.mxu0
    %v2710 = vpop.f32.mrf.mxu0
    %2711 = vdwg.mxu0
    %v2712 = vld [vmem:[%s12] sm:$0xff]
    %v2713 = vld [vmem:[%s12 + $0x8] sm:$0xf]
    %v2714 = vld [vmem:[%s12 + $0xc] sm:$0xff]
    %v2715 = vld [vmem:[%s12 + $0x14] sm:$0xf]
    %v2716 = vld [vmem:[%s12 + $0x18] sm:$0xff]
    %v2717 = vld [vmem:[%s12 + $0x20] sm:$0xf]
    %v2718 = vld [vmem:[%s12 + $0x24] sm:$0xff]
    %v2719 = vld [vmem:[%s12 + $0x2c] sm:$0xf]
    %v2720 = vld [vmem:[%s12 + $0x30] sm:$0xff]
    %v2721 = vld [vmem:[%s12 + $0x38] sm:$0xf]
    %v2722 = vld [vmem:[%s12 + $0x3c] sm:$0xff]
    %v2723 = vld [vmem:[%s12 + $0x44] sm:$0xf]
    %v2724 = vld [vmem:[%s12 + $0x48] sm:$0xff]
    %v2725 = vld [vmem:[%s12 + $0x50] sm:$0xf]
    %v2726 = vld [vmem:[%s12 + $0x54] sm:$0xff]
    %v2727 = vld [vmem:[%s12 + $0x5c] sm:$0xf]
    %v2728 = vld [vmem:[%s12 + $0x60] sm:$0xff]
    %v2729 = vld [vmem:[%s12 + $0x68] sm:$0xf]
    %v2730 = vld [vmem:[%s12 + $0x6c] sm:$0xff]
    %v2731 = vld [vmem:[%s12 + $0x74] sm:$0xf]
    %v2732 = vld [vmem:[%s12 + $0x78] sm:$0xff]
    %v2733 = vld [vmem:[%s12 + $0x80] sm:$0xf]
    %v2734 = vld [vmem:[%s12 + $0x84] sm:$0xff]
    %v2735 = vld [vmem:[%s12 + $0x8c] sm:$0xf]
    %v2736 = vld [vmem:[%s12 + $0x90] sm:$0xff]
    %v2737 = vld [vmem:[%s12 + $0x98] sm:$0xf]
    %v2738 = vld [vmem:[%s12 + $0x9c] sm:$0xff]
    %v2739 = vld [vmem:[%s12 + $0xa4] sm:$0xf]
    %v2740 = vld [vmem:[%s12 + $0xa8] sm:$0xff]
    %v2741 = vld [vmem:[%s12 + $0xb0] sm:$0xf]
    %v2742 = vld [vmem:[%s12 + $0xb4] sm:$0xff]
    %v2743 = vld [vmem:[%s12 + $0xbc] sm:$0xf]
    %v2776 = vunpack.c.l.b16 %v2712
    %v2777 = vunpack.c.h.b16 %v2712
    %v2778 = vunpack.c.l.b16 %v2713
    %v2779 = vunpack.c.l.b16 %v2714
    %v2780 = vunpack.c.h.b16 %v2714
    %v2781 = vunpack.c.l.b16 %v2715
    %v2782 = vunpack.c.l.b16 %v2716
    %v2783 = vunpack.c.h.b16 %v2716
    %v2784 = vunpack.c.l.b16 %v2717
    %v2785 = vunpack.c.l.b16 %v2718
    %v2786 = vunpack.c.h.b16 %v2718
    %v2787 = vunpack.c.l.b16 %v2719
    %v2788 = vunpack.c.l.b16 %v2720
    %v2789 = vunpack.c.h.b16 %v2720
    %v2790 = vunpack.c.l.b16 %v2721
    %v2791 = vunpack.c.l.b16 %v2722
    %v2792 = vunpack.c.h.b16 %v2722
    %v2793 = vunpack.c.l.b16 %v2723
    %v2794 = vunpack.c.l.b16 %v2724
    %v2795 = vunpack.c.h.b16 %v2724
    %v2796 = vunpack.c.l.b16 %v2725
    %v2797 = vunpack.c.l.b16 %v2726
    %v2798 = vunpack.c.h.b16 %v2726
    %v2799 = vunpack.c.l.b16 %v2727
    %v2800 = vunpack.c.l.b16 %v2728
    %v2801 = vunpack.c.h.b16 %v2728
    %v2802 = vunpack.c.l.b16 %v2729
    %v2803 = vunpack.c.l.b16 %v2730
    %v2804 = vunpack.c.h.b16 %v2730
    %v2805 = vunpack.c.l.b16 %v2731
    %v2806 = vunpack.c.l.b16 %v2732
    %v2807 = vunpack.c.h.b16 %v2732
    %v2808 = vunpack.c.l.b16 %v2733
    %v2809 = vunpack.c.l.b16 %v2734
    %v2810 = vunpack.c.h.b16 %v2734
    %v2811 = vunpack.c.l.b16 %v2735
    %v2812 = vunpack.c.l.b16 %v2736
    %v2813 = vunpack.c.h.b16 %v2736
    %v2814 = vunpack.c.l.b16 %v2737
    %v2815 = vunpack.c.l.b16 %v2738
    %v2816 = vunpack.c.h.b16 %v2738
    %v2817 = vunpack.c.l.b16 %v2739
    %v2818 = vunpack.c.l.b16 %v2740
    %v2819 = vunpack.c.h.b16 %v2740
    %v2820 = vunpack.c.l.b16 %v2741
    %v2821 = vunpack.c.l.b16 %v2742
    %v2822 = vunpack.c.h.b16 %v2742
    %v2823 = vunpack.c.l.b16 %v2743
    %v2824 = vpack.c.b16 %v2779, %v2776
    %v2825 = vpack.c.b16 %v2780, %v2777
    %v2826 = vpack.c.b16 %v2781, %v2778
    %v2827 = vpack.c.b16 %v2785, %v2782
    %v2828 = vpack.c.b16 %v2786, %v2783
    %v2829 = vpack.c.b16 %v2787, %v2784
    %v2830 = vpack.c.b16 %v2791, %v2788
    %v2831 = vpack.c.b16 %v2792, %v2789
    %v2832 = vpack.c.b16 %v2793, %v2790
    %v2833 = vpack.c.b16 %v2797, %v2794
    %v2834 = vpack.c.b16 %v2798, %v2795
    %v2835 = vpack.c.b16 %v2799, %v2796
    %v2836 = vpack.c.b16 %v2803, %v2800
    %v2837 = vpack.c.b16 %v2804, %v2801
    %v2838 = vpack.c.b16 %v2805, %v2802
    %v2839 = vpack.c.b16 %v2809, %v2806
    %v2840 = vpack.c.b16 %v2810, %v2807
    %v2841 = vpack.c.b16 %v2811, %v2808
    %v2842 = vpack.c.b16 %v2815, %v2812
    %v2843 = vpack.c.b16 %v2816, %v2813
    %v2844 = vpack.c.b16 %v2817, %v2814
    %v2845 = vpack.c.b16 %v2821, %v2818
    %v2846 = vpack.c.b16 %v2822, %v2819
    %v2847 = vpack.c.b16 %v2823, %v2820
    %2872 = vmatprep.subr.bf16.mxu0 %v2846
    %2873 = vmatpush1.bf16.msra.mxu0 %v2845
    %2874 = vmatprep.subr.bf16.mxu0 %v2843
    %2875 = vmatpush1.bf16.msra.mxu0 %v2842
    %2876 = vmatprep.subr.bf16.mxu0 %v2840
    %2877 = vmatpush1.bf16.msra.mxu0 %v2839
    %2878 = vmatprep.subr.bf16.mxu0 %v2837
    %2879 = vmatpush1.bf16.msra.mxu0 %v2836
    %2880 = vmatprep.subr.bf16.mxu0 %v2834
    %2881 = vmatpush1.bf16.msra.mxu0 %v2833
    %2882 = vmatprep.subr.bf16.mxu0 %v2831
    %2883 = vmatpush1.bf16.msra.mxu0 %v2830
    %2884 = vmatprep.subr.bf16.mxu0 %v2828
    %2885 = vmatpush1.bf16.msra.mxu0 %v2827
    %2886 = vmatprep.subr.bf16.mxu0 %v2825
    %2887 = vmatpush1.bf16.msra.mxu0 %v2824
    %2888 = vmatprep.subr.bf16.mxu0 0
    %2889 = vmatpush2.bf16.msra.mxu0 0
    %2890 = vmatprep.subr.bf16.mxu0 0
    %2891 = vmatpush2.bf16.msra.mxu0 0
    %2892 = vmatprep.subr.bf16.mxu0 0
    %2893 = vmatpush2.bf16.msra.mxu0 0
    %2894 = vmatprep.subr.bf16.mxu0 0
    %2895 = vmatpush2.bf16.msra.mxu0 0
    %2896 = vmatprep.subr.bf16.mxu0 0
    %2897 = vmatpush2.bf16.msra.mxu0 0
    %2898 = vmatprep.subr.bf16.mxu0 0
    %2899 = vmatpush2.bf16.msra.mxu0 0
    %2900 = vmatprep.subr.bf16.mxu0 0
    %2901 = vmatpush2.bf16.msra.mxu0 0
    %2902 = vmatprep.subr.bf16.mxu0 0
    %2903 = vmatpush2.bf16.msra.mxu0 0
    %2904 = vmatprep.mubr.bf16.mxu0 0
    %2905 = vmatmul.mubr.bf16.gmra.mxu0 %v2310
    %v2906 = vpop.f32.mrf.mxu0
    %v2907 = vadd.f32 0.0, %v2906
    %v2908 = vpop.f32.mrf.mxu0
    %v2909 = vadd.f32 0.0, %v2908
    %v2910 = vpop.f32.mrf.mxu0
    %v2911 = vpop.f32.mrf.mxu0
    %2912 = vdwg.mxu0
    %2913 = vmatprep.subr.bf16.mxu0 0
    %2914 = vmatpush1.bf16.msra.mxu0 %v2847
    %2915 = vmatprep.subr.bf16.mxu0 0
    %2916 = vmatpush1.bf16.msra.mxu0 %v2844
    %2917 = vmatprep.subr.bf16.mxu0 0
    %2918 = vmatpush1.bf16.msra.mxu0 %v2841
    %2919 = vmatprep.subr.bf16.mxu0 0
    %2920 = vmatpush1.bf16.msra.mxu0 %v2838
    %2921 = vmatprep.subr.bf16.mxu0 0
    %2922 = vmatpush1.bf16.msra.mxu0 %v2835
    %2923 = vmatprep.subr.bf16.mxu0 0
    %2924 = vmatpush1.bf16.msra.mxu0 %v2832
    %2925 = vmatprep.subr.bf16.mxu0 0
    %2926 = vmatpush1.bf16.msra.mxu0 %v2829
    %2927 = vmatprep.subr.bf16.mxu0 0
    %2928 = vmatpush1.bf16.msra.mxu0 %v2826
    %2929 = vmatprep.subr.bf16.mxu0 0
    %2930 = vmatpush2.bf16.msra.mxu0 0
    %2931 = vmatprep.subr.bf16.mxu0 0
    %2932 = vmatpush2.bf16.msra.mxu0 0
    %2933 = vmatprep.subr.bf16.mxu0 0
    %2934 = vmatpush2.bf16.msra.mxu0 0
    %2935 = vmatprep.subr.bf16.mxu0 0
    %2936 = vmatpush2.bf16.msra.mxu0 0
    %2937 = vmatprep.subr.bf16.mxu0 0
    %2938 = vmatpush2.bf16.msra.mxu0 0
    %2939 = vmatprep.subr.bf16.mxu0 0
    %2940 = vmatpush2.bf16.msra.mxu0 0
    %2941 = vmatprep.subr.bf16.mxu0 0
    %2942 = vmatpush2.bf16.msra.mxu0 0
    %2943 = vmatprep.subr.bf16.mxu0 0
    %2944 = vmatpush2.bf16.msra.mxu0 0
    %2945 = vmatprep.mubr.bf16.mxu0 0
    %2946 = vmatmul.mubr.bf16.gmra.mxu0 %v2310
    %v2947 = vpop.f32.mrf.mxu0
    %v2948 = vadd.f32 0.0, %v2947
    %v2949 = vpop.f32.mrf.mxu0
    %v2950 = vpop.f32.mrf.mxu0
    %v2951 = vpop.f32.mrf.mxu0
    %2952 = vdwg.mxu0
    %v2953 = vadd.f32 %v2666, %v2907
    %v2954 = vld [vmem:[%s13] sm:$0x1]
    %v2956 = vlaneseq
    %v2957 = vshrl.u32 %v2956, 7
    %v2958 = vsub.s32 0, %v2957
    %v2959 = vrot.slane %v2954, %v2958
    %v2961 = vadd.f32 %v2953, %v2959
    %v2962 = vxor.u32 %v2961, 2147483648
    %v2963 = vmul.f32 %v2962, 1.442695
    %v2964 = vpow.pop %v2963
    %v2965 = vadd.f32 %v2964, 1.0
    %v2966 = vrcp.pop %v2965
    %v2967 = vmul.f32 1.0, %v2966
    %v2968 = vadd.f32 %v2668, %v2909
    %s2969 = scalar_lea.vmem %s13, 1
    %v2970 = vld [vmem:[%s2969] sm:$0x1]
    %v2972 = vlaneseq
    %v2973 = vshrl.u32 %v2972, 7
    %v2974 = vsub.s32 0, %v2973
    %v2975 = vrot.slane %v2970, %v2974
    %v2977 = vadd.f32 %v2968, %v2975
    %v2978 = vxor.u32 %v2977, 2147483648
    %v2979 = vmul.f32 %v2978, 1.442695
    %v2980 = vpow.pop %v2979
    %v2981 = vadd.f32 %v2980, 1.0
    %v2982 = vrcp.pop %v2981
    %v2983 = vmul.f32 1.0, %v2982
    %s2984 = scalar_lea.vmem %s13, 2
    %v2985 = vld [vmem:[%s2984] sm:$0x1]
    %v2987 = vlaneseq
    %v2988 = vshrl.u32 %v2987, 7
    %v2989 = vsub.s32 0, %v2988
    %v2990 = vrot.slane %v2985, %v2989
    %v2992 = vadd.f32 %v2707, %v2990
    %s2993 = scalar_lea.vmem %s13, 3
    %v2994 = vld [vmem:[%s2993] sm:$0x1]
    %v2996 = vlaneseq
    %v2997 = vshrl.u32 %v2996, 7
    %v2998 = vsub.s32 0, %v2997
    %v2999 = vrot.slane %v2994, %v2998
    %v3001 = vadd.f32 %v2948, %v2999
    %v3002 = vmul.f32 %v2967, %v3001
    %v3003 = vadd.f32 %v2992, %v3002
    %v3004 = vtanh.pop %v3003
    %v3005 = vsub.f32 1.0, %v2983
    %v3006 = vmul.f32 %v3005, %v3004
    %v3007 = vmul.f32 %v2983, %v2309
    %v3008 = vadd.f32 %v3006, %v3007
    %v3009 = vpack.c.bf16 %v3008, %v3008
    %v3010 = vld [vmem:[%s14] sm:$0xf]
    %v3011 = vld [vmem:[%s14 + $0x4] sm:$0xf]
    %v3012 = vld [vmem:[%s14 + $0x8] sm:$0xf]
    %v3013 = vld [vmem:[%s14 + $0xc] sm:$0xf]
    %v3014 = vld [vmem:[%s14 + $0x10] sm:$0xf]
    %v3015 = vld [vmem:[%s14 + $0x14] sm:$0xf]
    %v3016 = vld [vmem:[%s14 + $0x18] sm:$0xf]
    %v3017 = vld [vmem:[%s14 + $0x1c] sm:$0xf]
    %v3018 = vld [vmem:[%s14 + $0x20] sm:$0xf]
    %v3019 = vld [vmem:[%s14 + $0x24] sm:$0xf]
    %v3020 = vld [vmem:[%s14 + $0x28] sm:$0xf]
    %v3021 = vld [vmem:[%s14 + $0x2c] sm:$0xf]
    %v3022 = vld [vmem:[%s14 + $0x30] sm:$0xf]
    %v3023 = vld [vmem:[%s14 + $0x34] sm:$0xf]
    %v3024 = vld [vmem:[%s14 + $0x38] sm:$0xf]
    %v3025 = vld [vmem:[%s14 + $0x3c] sm:$0xf]
    %v3026 = vld [vmem:[%s15] sm:$0x1]
    %v3028 = vlaneseq
    %v3029 = vshrl.u32 %v3028, 7
    %v3030 = vsub.s32 0, %v3029
    %v3031 = vrot.slane %v3026, %v3030
    %v3049 = vunpack.c.l.b16 %v3010
    %v3050 = vunpack.c.l.b16 %v3011
    %v3051 = vunpack.c.l.b16 %v3012
    %v3052 = vunpack.c.l.b16 %v3013
    %v3053 = vunpack.c.l.b16 %v3014
    %v3054 = vunpack.c.l.b16 %v3015
    %v3055 = vunpack.c.l.b16 %v3016
    %v3056 = vunpack.c.l.b16 %v3017
    %v3057 = vunpack.c.l.b16 %v3018
    %v3058 = vunpack.c.l.b16 %v3019
    %v3059 = vunpack.c.l.b16 %v3020
    %v3060 = vunpack.c.l.b16 %v3021
    %v3061 = vunpack.c.l.b16 %v3022
    %v3062 = vunpack.c.l.b16 %v3023
    %v3063 = vunpack.c.l.b16 %v3024
    %v3064 = vunpack.c.l.b16 %v3025
    %v3065 = vpack.c.b16 %v3050, %v3049
    %v3066 = vpack.c.b16 %v3052, %v3051
    %v3067 = vpack.c.b16 %v3054, %v3053
    %v3068 = vpack.c.b16 %v3056, %v3055
    %v3069 = vpack.c.b16 %v3058, %v3057
    %v3070 = vpack.c.b16 %v3060, %v3059
    %v3071 = vpack.c.b16 %v3062, %v3061
    %v3072 = vpack.c.b16 %v3064, %v3063
    %3081 = vmatprep.subr.bf16.mxu0 0
    %3082 = vmatpush1.bf16.msra.mxu0 %v3072
    %3083 = vmatprep.subr.bf16.mxu0 0
    %3084 = vmatpush1.bf16.msra.mxu0 %v3071
    %3085 = vmatprep.subr.bf16.mxu0 0
    %3086 = vmatpush1.bf16.msra.mxu0 %v3070
    %3087 = vmatprep.subr.bf16.mxu0 0
    %3088 = vmatpush1.bf16.msra.mxu0 %v3069
    %3089 = vmatprep.subr.bf16.mxu0 0
    %3090 = vmatpush1.bf16.msra.mxu0 %v3068
    %3091 = vmatprep.subr.bf16.mxu0 0
    %3092 = vmatpush1.bf16.msra.mxu0 %v3067
    %3093 = vmatprep.subr.bf16.mxu0 0
    %3094 = vmatpush1.bf16.msra.mxu0 %v3066
    %3095 = vmatprep.subr.bf16.mxu0 0
    %3096 = vmatpush1.bf16.msra.mxu0 %v3065
    %3097 = vmatprep.subr.bf16.mxu0 0
    %3098 = vmatpush2.bf16.msra.mxu0 0
    %3099 = vmatprep.subr.bf16.mxu0 0
    %3100 = vmatpush2.bf16.msra.mxu0 0
    %3101 = vmatprep.subr.bf16.mxu0 0
    %3102 = vmatpush2.bf16.msra.mxu0 0
    %3103 = vmatprep.subr.bf16.mxu0 0
    %3104 = vmatpush2.bf16.msra.mxu0 0
    %3105 = vmatprep.subr.bf16.mxu0 0
    %3106 = vmatpush2.bf16.msra.mxu0 0
    %3107 = vmatprep.subr.bf16.mxu0 0
    %3108 = vmatpush2.bf16.msra.mxu0 0
    %3109 = vmatprep.subr.bf16.mxu0 0
    %3110 = vmatpush2.bf16.msra.mxu0 0
    %3111 = vmatprep.subr.bf16.mxu0 0
    %3112 = vmatpush2.bf16.msra.mxu0 0
    %3113 = vmatprep.mubr.bf16.mxu0 0
    %3114 = vmatmul.mubr.bf16.gmra.mxu0 %v3009
    %v3115 = vpop.f32.mrf.mxu0
    %v3116 = vadd.f32 %v3031, %v3115
    %v3117 = vpop.f32.mrf.mxu0
    %v3118 = vpop.f32.mrf.mxu0
    %v3119 = vpop.f32.mrf.mxu0
    %3120 = vdwg.mxu0
    %3121 = vst [vmem:[#allocation5] sm:$0xf] %v3116
    %3122 = vst [vmem:[#allocation6] sm:$0xf] %v3008
    // Predicated region
    $region70: #{rnn_cnn_agent_forward.1} parent=1 // pred_check
      _
    $region71: #{rnn_cnn_agent_forward.1} parent=1 // pred_check_branch
      %3124 = sbr.rel (0) target = $region73
    $region72: #{rnn_cnn_agent_forward.1} parent=1 // pred_region
      %s3126 = ssub.s32 64, 64
      %3127 = vsyncadd [#allocation4], %s3126
      %s3129 = sshll.u32 [#allocation5], 4
      %s3130 = int_to_ptr.vmem [resolvable:$true] %s3129
      %3132 = dma.vmem_to_hbm [thread:$0]  %s3130, 64, %s16, [#allocation4]
    $region73: #{rnn_cnn_agent_forward.1} parent=1 // pred_fallthru
      _
    // Predicated region
    $region74: #{rnn_cnn_agent_forward.1} parent=1 // pred_check
      _
    $region75: #{rnn_cnn_agent_forward.1} parent=1 // pred_check_branch
      %3134 = sbr.rel (0) target = $region77
    $region76: #{rnn_cnn_agent_forward.1} parent=1 // pred_region
      %s3136 = ssub.s32 64, 64
      %3137 = vsyncadd [#allocation7], %s3136
      %s3139 = sshll.u32 [#allocation6], 4
      %s3140 = int_to_ptr.vmem [resolvable:$true] %s3139
      %3142 = dma.vmem_to_hbm [thread:$0]  %s3140, 64, %s17, [#allocation7]
    $region77: #{rnn_cnn_agent_forward.1} parent=1 // pred_fallthru
      _
    // Predicated region
    $region78: #{rnn_cnn_agent_forward.1} parent=1 // pred_check
      _
    $region79: #{rnn_cnn_agent_forward.1} parent=1 // pred_check_branch
      %3144 = sbr.rel (0) target = $region81
    $region80: #{rnn_cnn_agent_forward.1} parent=1 // pred_region
      %3145 = dma.done [#allocation4], 64
    $region81: #{rnn_cnn_agent_forward.1} parent=1 // pred_fallthru
      _
    // Predicated region
    $region82: #{rnn_cnn_agent_forward.1} parent=1 // pred_check
      _
    $region83: #{rnn_cnn_agent_forward.1} parent=1 // pred_check_branch
      %3147 = sbr.rel (0) target = $region85
    $region84: #{rnn_cnn_agent_forward.1} parent=1 // pred_region
      %3148 = dma.done [#allocation7], 64
    $region85: #{rnn_cnn_agent_forward.1} parent=1 // pred_fallthru
      _
    %3149 = vsyncpa [#allocation3], 1
    %3150 = vsyncpa [#allocation4], 1
    %3151 = vsyncpa [#allocation7], 1

</llo_original>
